<compile_context>
chip_gen: v7x
topology: tpu7x:2x2x1
jax: 0.10.0
libtpu: 0.0.40
codegen_flags: <defaults>
</compile_context>

<pallas_src>
import jax
import jax.numpy as jnp
from jax.experimental import pallas as pl
from jax.experimental.pallas import tpu as pltpu


# --------------------------------------------------------------------------
# Pallas kernel.
# Grid = (token tiles [parallel], hidden-dim tiles [arbitrary, innermost]).
#   x_ref : (TN, Din)       bf16/f32    block index (i, 0)
#   w1_ref: (Din, TH)       bf16/f32    block index (0, h)
#   b1_ref: (1, TH)         f32         block index (0, h)
#   w2_ref: (TH, Dout)      bf16/f32    block index (h, 0)
#   b2_ref: (1, Dout)       f32         block index (0, 0)
#   o_ref : (TN, Dout)                  block index (i, 0)
#   acc   : (TN, Dout) f32  VMEM scratch (fc2 partial sums over H tiles)
# GELU is elementwise over the hidden dim, so applying it per-H-slab after
# the full fc1 reduction over Din is exact.
# --------------------------------------------------------------------------
def _mlp_kernel(x_ref, w1_ref, b1_ref, w2_ref, b2_ref, o_ref, acc_ref):
    h_idx = pl.program_id(1)

    @pl.when(h_idx == 0)
    def _():
        acc_ref[...] = jnp.zeros_like(acc_ref)

    # fc1 (full Din reduction, one H slab) + bias; f32 accumulation on MXU.
    h = jnp.dot(x_ref[...], w1_ref[...], preferred_element_type=jnp.float32)
    h = h + b1_ref[...]

    # GELU (tanh approximation), f32 on the VPU/EUP.
    c = 0.7978845608028654  # sqrt(2/pi)
    h = 0.5 * h * (1.0 + jnp.tanh(c * (h + 0.044715 * h * h * h)))

    # fc2 partial: downcast the hidden slab to the weight dtype (bf16) for a
    # native-rate MXU pass, accumulate in f32 scratch.
    acc_ref[...] += jnp.dot(h.astype(w2_ref.dtype), w2_ref[...],
                            preferred_element_type=jnp.float32)

    @pl.when(h_idx == pl.num_programs(1) - 1)
    def _():
        o_ref[...] = (acc_ref[...] + b2_ref[...]).astype(o_ref.dtype)


# --------------------------------------------------------------------------
# Helpers.
# --------------------------------------------------------------------------
def _pick_token_tile(n, tile_n):
    """Largest multiple-of-8 tile <= tile_n that divides n (None if none)."""
    cap = min(tile_n, n)
    for t in range(cap - cap % 8, 7, -8):
        if n % t == 0:
            return t
    return None


def _vmem_limit_bytes(tile, din, tile_h, dout, in_isz, w_isz, out_isz):
    """Derive vmem_limit_bytes from actual buffer sizes (+ headroom)."""
    buffered = (
        2 * tile * din * in_isz          # x tile (double-buffered)
        + 2 * din * tile_h * w_isz       # w1 slab
        + 2 * 8 * tile_h * 4             # b1 (f32, sublane-padded)
        + 2 * tile_h * dout * w_isz      # w2 slab
        + 2 * 8 * dout * 4               # b2
        + 2 * tile * dout * out_isz      # output tile
    )
    scratch = tile * dout * 4            # fc2 accumulator
    live = tile * tile_h * 4             # f32 hidden slab (fc1 + GELU temp)
    need = buffered + scratch + live
    # 50% + 2 MiB headroom for Mosaic internal scratch / spills; clamp to
    # [16 MiB, 100 MiB] (demo footprint is far below v7x's 64 MiB physical).
    return int(min(max(need * 3 // 2 + (2 << 20), 16 << 20), 100 << 20))


# --------------------------------------------------------------------------
# Wrapper.  Weights are expected in the kernel-friendly (in, out) layout and
# (typically) bf16 — convert from the PyTorch nn.Linear (out, in) layout ONCE
# at load time, not per call.
# --------------------------------------------------------------------------
def mlp_forward(x, w1_k, b1, w2_k, b2, *, tile_n=256, tile_h=None):
    orig_shape = x.shape
    Din = orig_shape[-1]
    assert w1_k.shape[0] == Din
    H = w1_k.shape[1]
    assert w2_k.shape[0] == H
    Dout = w2_k.shape[1]

    x2 = x.reshape(-1, Din)
    N = x2.shape[0]

    # Token tile: pick one that divides N so we avoid pad + slice HBM passes.
    tile = _pick_token_tile(N, tile_n)
    pad = 0
    if tile is None:
        # TODO(synk): ragged last tile handled by padding (extra HBM pass);
        # in-kernel row masking would avoid it.
        tile = min(tile_n, ((N + 7) // 8) * 8)
        Ntot = pl.cdiv(N, tile) * tile
        pad = Ntot - N
        x2 = jnp.pad(x2, ((0, pad), (0, 0)))
    Ntot = x2.shape[0]

    # Hidden-dim tile (innermost, "arbitrary"): bounds VMEM for large H
    # (v7x 64 MiB).  Demo: tile_h == H == 512 -> single inner step.
    if tile_h is None:
        tile_h = H if H <= 2048 else 2048
    assert H % tile_h == 0 and (tile_h == H or tile_h % 128 == 0)

    b1_k = b1.reshape(1, H).astype(jnp.float32)
    b2_k = b2.reshape(1, Dout).astype(jnp.float32)

    vmem_limit = _vmem_limit_bytes(
        tile, Din, tile_h, Dout,
        x2.dtype.itemsize, w1_k.dtype.itemsize, x.dtype.itemsize)

    grid = (Ntot // tile, H // tile_h)

    out = pl.pallas_call(
        _mlp_kernel,
        out_shape=jax.ShapeDtypeStruct((Ntot, Dout), x.dtype),
        grid_spec=pltpu.PrefetchScalarGridSpec(
            num_scalar_prefetch=0,
            grid=grid,
            in_specs=[
                pl.BlockSpec((tile, Din), lambda i, h: (i, 0)),
                pl.BlockSpec((Din, tile_h), lambda i, h: (0, h)),
                pl.BlockSpec((1, tile_h), lambda i, h: (0, h)),
                pl.BlockSpec((tile_h, Dout), lambda i, h: (h, 0)),
                pl.BlockSpec((1, Dout), lambda i, h: (0, 0)),
            ],
            out_specs=pl.BlockSpec((tile, Dout), lambda i, h: (i, 0)),
            scratch_shapes=[pltpu.VMEM((tile, Dout), jnp.float32)],
        ),
        compiler_params=pltpu.CompilerParams(
            dimension_semantics=("parallel", "arbitrary"),
            vmem_limit_bytes=vmem_limit,
        ),
    )(x2, w1_k, b1_k, w2_k, b2_k)

    if pad:
        out = out[:N]
    return out.reshape(*orig_shape[:-1], Dout)


# --------------------------------------------------------------------------
# Pure-JAX reference: mirrors the kernel math (bf16 operands, f32 accumulate,
# tanh-GELU, bf16 downcast of the hidden activation before fc2).
# --------------------------------------------------------------------------
def mlp_reference(x, w1_k, b1, w2_k, b2):
    xf = x.astype(jnp.float32)
    h = jnp.dot(xf, w1_k.astype(jnp.float32)) + b1.astype(jnp.float32)
    h = jax.nn.gelu(h, approximate=True)
    h = h.astype(w2_k.dtype)  # mirror the kernel's downcast before fc2
    o = jnp.dot(h.astype(jnp.float32), w2_k.astype(jnp.float32))
    o = o + b2.astype(jnp.float32)
    return o.astype(x.dtype)


if __name__ == "__main__":
    # Small demo shapes: batch=2, seq=1024, in=128, hidden=512, out=128.
    B, S = 2, 1024
    in_features, hidden_features, out_features = 128, 512, 128

    key = jax.random.PRNGKey(0)
    kx, k1, kb1, k2, kb2 = jax.random.split(key, 5)
    x = jax.random.normal(kx, (B, S, in_features), dtype=jnp.float32)

    # PyTorch nn.Linear layout: weight (out, in), bias (out,)
    w1 = 0.05 * jax.random.normal(k1, (hidden_features, in_features), jnp.float32)
    b1 = 0.05 * jax.random.normal(kb1, (hidden_features,), jnp.float32)
    w2 = 0.05 * jax.random.normal(k2, (out_features, hidden_features), jnp.float32)
    b2 = 0.05 * jax.random.normal(kb2, (out_features,), jnp.float32)

    # One-time "load time" conversion: (out, in) -> (in, out) lane-dense
    # layout and bf16 MXU dtype.  This never runs inside the forward path.
    x_bf16 = x.astype(jnp.bfloat16)
    w1_k = jnp.asarray(w1.T, dtype=jnp.bfloat16)   # (Din, H)
    w2_k = jnp.asarray(w2.T, dtype=jnp.bfloat16)   # (H, Dout)
    x_bf16, w1_k, w2_k = jax.block_until_ready((x_bf16, w1_k, w2_k))

    out = mlp_forward(x_bf16, w1_k, b1, w2_k, b2, tile_n=256)
    out = jax.block_until_ready(out)

    ref = mlp_reference(x_bf16, w1_k, b1, w2_k, b2)
    assert out.shape == ref.shape == (B, S, out_features)
    max_err = float(jnp.max(jnp.abs(out.astype(jnp.float32) -
                                    ref.astype(jnp.float32))))
    # bf16 activations/weights with f32 accumulation: tolerance dominated by
    # the final bf16 output rounding and the bf16 hidden downcast.
    assert jnp.allclose(out.astype(jnp.float32), ref.astype(jnp.float32),
                        atol=2e-2, rtol=2e-2), max_err

    print("KERNEL_OK")
</pallas_src>

<mosaic_0001>
module attributes {stable_mosaic.version = 11 : i64} {
  func.func @_mlp_kernel(%arg0: i32, %arg1: i32, %arg2: memref<256x128xbf16, #tpu.memory_space<vmem>>, %arg3: memref<128x512xbf16, #tpu.memory_space<vmem>>, %arg4: memref<1x512xf32, #tpu.memory_space<vmem>>, %arg5: memref<512x128xbf16, #tpu.memory_space<vmem>>, %arg6: memref<1x128xf32, #tpu.memory_space<vmem>>, %arg7: memref<256x128xbf16, #tpu.memory_space<vmem>>, %arg8: memref<256x128xf32, #tpu.memory_space<vmem>>) attributes {dimension_semantics = [#tpu.dimension_semantics<parallel>, #tpu.dimension_semantics<arbitrary>], iteration_bounds = array<i64: 8, 1>, scalar_prefetch = 0 : i64, scratch_operands = 1 : i64, tpu.core_type = #tpu.core_type<tc>, window_params = [{transform_indices = @transform_0, window_bounds = array<i64: 256, 128>}, {transform_indices = @transform_1, window_bounds = array<i64: 128, 512>}, {transform_indices = @transform_2, window_bounds = array<i64: 1, 512>}, {transform_indices = @transform_3, window_bounds = array<i64: 512, 128>}, {pipeline_mode = #tpu.pipeline_mode<synchronous>, transform_indices = @transform_4, window_bounds = array<i64: 1, 128>}, {transform_indices = @transform_5, window_bounds = array<i64: 256, 128>}]} {
    %c0_i32 = arith.constant 0 : i32
    %0 = arith.cmpi eq, %arg1, %c0_i32 : i32
    %1 = arith.extui %0 : i1 to i32
    %c0_i32_0 = arith.constant 0 : i32
    %2 = arith.cmpi ne, %1, %c0_i32_0 : i32
    scf.if %2 {
      %cst_19 = arith.constant 0.000000e+00 : f32
      %31 = vector.broadcast %cst_19 : f32 to vector<256x128xf32>
      %c0_20 = arith.constant 0 : index
      %c0_21 = arith.constant 0 : index
      %32 = vector.load %arg8[%c0_20, %c0_21] : memref<256x128xf32, #tpu.memory_space<vmem>>, vector<256x128xf32>
      tpu.vector_store %arg8[%c0_20, %c0_21], %31 {strides = array<i32>} : memref<256x128xf32, #tpu.memory_space<vmem>>, vector<256x128xf32>,
    } else {
    }
    %c0 = arith.constant 0 : index
    %c0_1 = arith.constant 0 : index
    %3 = vector.load %arg2[%c0, %c0_1] : memref<256x128xbf16, #tpu.memory_space<vmem>>, vector<256x128xbf16>
    %c0_2 = arith.constant 0 : index
    %c0_3 = arith.constant 0 : index
    %4 = vector.load %arg3[%c0_2, %c0_3] : memref<128x512xbf16, #tpu.memory_space<vmem>>, vector<128x512xbf16>
    %cst = arith.constant dense<0.000000e+00> : vector<256x512xf32>
    %5 = tpu.matmul %3, %4, %cst {dimension_numbers = #tpu.dot_dimension_numbers<[1], [0], [0], [1], [0, 0, 1, 1], [], []>} : vector<256x128xbf16>, vector<128x512xbf16>, vector<256x512xf32> -> vector<256x512xf32>
    %c0_4 = arith.constant 0 : index
    %c0_5 = arith.constant 0 : index
    %6 = vector.load %arg4[%c0_4, %c0_5] : memref<1x512xf32, #tpu.memory_space<vmem>>, vector<1x512xf32>
    %7 = vector.broadcast %6 : vector<1x512xf32> to vector<256x512xf32>
    %8 = arith.addf %5, %7 : vector<256x512xf32>
    %cst_6 = arith.constant 5.000000e-01 : f32
    %9 = vector.broadcast %cst_6 : f32 to vector<256x512xf32>
    %10 = arith.mulf %9, %8 : vector<256x512xf32>
    %cst_7 = arith.constant 4.471500e-02 : f32
    %11 = vector.broadcast %cst_7 : f32 to vector<256x512xf32>
    %12 = arith.mulf %11, %8 : vector<256x512xf32>
    %13 = arith.mulf %12, %8 : vector<256x512xf32>
    %14 = arith.mulf %13, %8 : vector<256x512xf32>
    %15 = arith.addf %8, %14 : vector<256x512xf32>
    %cst_8 = arith.constant 0.797884583 : f32
    %16 = vector.broadcast %cst_8 : f32 to vector<256x512xf32>
    %17 = arith.mulf %16, %15 : vector<256x512xf32>
    %18 = math.tanh %17 : vector<256x512xf32>
    %cst_9 = arith.constant 1.000000e+00 : f32
    %19 = vector.broadcast %cst_9 : f32 to vector<256x512xf32>
    %20 = arith.addf %19, %18 : vector<256x512xf32>
    %21 = arith.mulf %10, %20 : vector<256x512xf32>
    %c0_10 = arith.constant 0 : index
    %c0_11 = arith.constant 0 : index
    %22 = vector.load %arg8[%c0_10, %c0_11] : memref<256x128xf32, #tpu.memory_space<vmem>>, vector<256x128xf32>
    %23 = arith.truncf %21 : vector<256x512xf32> to vector<256x512xbf16>
    %c0_12 = arith.constant 0 : index
    %c0_13 = arith.constant 0 : index
    %24 = vector.load %arg5[%c0_12, %c0_13] : memref<512x128xbf16, #tpu.memory_space<vmem>>, vector<512x128xbf16>
    %cst_14 = arith.constant dense<0.000000e+00> : vector<256x128xf32>
    %25 = tpu.matmul %23, %24, %cst_14 {dimension_numbers = #tpu.dot_dimension_numbers<[1], [0], [0], [1], [0, 0, 1, 1], [], []>} : vector<256x512xbf16>, vector<512x128xbf16>, vector<256x128xf32> -> vector<256x128xf32>
    %26 = arith.addf %22, %25 : vector<256x128xf32>
    %c0_15 = arith.constant 0 : index
    %c0_16 = arith.constant 0 : index
    %27 = vector.load %arg8[%c0_15, %c0_16] : memref<256x128xf32, #tpu.memory_space<vmem>>, vector<256x128xf32>
    tpu.vector_store %arg8[%c0_15, %c0_16], %26 {strides = array<i32>} : memref<256x128xf32, #tpu.memory_space<vmem>>, vector<256x128xf32>,
    %c0_i32_17 = arith.constant 0 : i32
    %28 = arith.cmpi eq, %arg1, %c0_i32_17 : i32
    %29 = arith.extui %28 : i1 to i32
    %c0_i32_18 = arith.constant 0 : i32
    %30 = arith.cmpi ne, %29, %c0_i32_18 : i32
    scf.if %30 {
      %c0_19 = arith.constant 0 : index
      %c0_20 = arith.constant 0 : index
      %31 = vector.load %arg8[%c0_19, %c0_20] : memref<256x128xf32, #tpu.memory_space<vmem>>, vector<256x128xf32>
      %c0_21 = arith.constant 0 : index
      %c0_22 = arith.constant 0 : index
      %32 = vector.load %arg6[%c0_21, %c0_22] : memref<1x128xf32, #tpu.memory_space<vmem>>, vector<1x128xf32>
      %33 = vector.broadcast %32 : vector<1x128xf32> to vector<256x128xf32>
      %34 = arith.addf %31, %33 : vector<256x128xf32>
      %35 = arith.truncf %34 : vector<256x128xf32> to vector<256x128xbf16>
      %c0_23 = arith.constant 0 : index
      %c0_24 = arith.constant 0 : index
      %36 = vector.load %arg7[%c0_23, %c0_24] : memref<256x128xbf16, #tpu.memory_space<vmem>>, vector<256x128xbf16>
      tpu.vector_store %arg7[%c0_23, %c0_24], %35 {strides = array<i32>} : memref<256x128xbf16, #tpu.memory_space<vmem>>, vector<256x128xbf16>,
    } else {
    }
    return
  }
  func.func @transform_0(%arg0: i32, %arg1: i32) -> (i32, i32) {
    %c0_i32 = arith.constant 0 : i32
    %c0_i32_0 = arith.constant 0 : i32
    return %arg0, %c0_i32 : i32, i32
  }
  func.func @transform_1(%arg0: i32, %arg1: i32) -> (i32, i32) {
    %c0_i32 = arith.constant 0 : i32
    %c0_i32_0 = arith.constant 0 : i32
    return %c0_i32, %arg1 : i32, i32
  }
  func.func @transform_2(%arg0: i32, %arg1: i32) -> (i32, i32) {
    %c0_i32 = arith.constant 0 : i32
    %c0_i32_0 = arith.constant 0 : i32
    return %c0_i32, %arg1 : i32, i32
  }
  func.func @transform_3(%arg0: i32, %arg1: i32) -> (i32, i32) {
    %c0_i32 = arith.constant 0 : i32
    %c0_i32_0 = arith.constant 0 : i32
    return %arg1, %c0_i32 : i32, i32
  }
  func.func @transform_4(%arg0: i32, %arg1: i32) -> (i32, i32) {
    %c0_i32 = arith.constant 0 : i32
    %c0_i32_0 = arith.constant 0 : i32
    %c0_i32_1 = arith.constant 0 : i32
    return %c0_i32, %c0_i32_0 : i32, i32
  }
  func.func @transform_5(%arg0: i32, %arg1: i32) -> (i32, i32) {
    %c0_i32 = arith.constant 0 : i32
    %c0_i32_0 = arith.constant 0 : i32
    return %arg0, %c0_i32 : i32, i32
  }
}

</mosaic_0001>

<llo_original>
// kernel: tpu_custom_call.1
$region0: #{tpu_custom_call.1}
  #allocation0 [shape = 'u32[]', space=smem, size = 0x4, offset = 0x4, fixed_abs, tag = 'smem constant byte address 0x4 - core index']
  #allocation1 [shape = 'u32[144,128]{1,0:T(1,128)}', space=vmem, size = 0x12000, scoped, tag = 'internal scratch']
  #allocation2 [shape = 'f32[256,128]{1,0:T(8,128)}', space=vmem, size = 0x20000, scoped, tag = 'scratch operand']
  %s0 = inlined_call_operand.hbm [shape: bf16[2048,128], index: 0, kind: input, shape index: {}]
  %s1 = inlined_call_operand.hbm [shape: bf16[128,512], index: 1, kind: input, shape index: {}]
  %s2 = inlined_call_operand.vmem [shape: f32[1,512], index: 2, kind: input, shape index: {}]
  %s3 = inlined_call_operand.hbm [shape: bf16[512,128], index: 3, kind: input, shape index: {}]
  %s4 = inlined_call_operand.vmem [shape: f32[1,128], index: 4, kind: input, shape index: {}]
  %s5 = inlined_call_operand.hbm [shape: bf16[2048,128], index: 5, kind: output, shape index: {}]
  %s6 = sld [smem:[#allocation0]]
  $region73: #{tpu_custom_call.1} parent=0
    _
  %s8 = ssub.s32 1, %s6
  %s9 = scalar_select 0, %s8, %s6
  $region1: #{tpu_custom_call.1} parent=0
    #allocation3 [shape = 'u8[131072]{0}', space=vmem, size = 0x20000, scoped, tag = 'input window, operand 0']
    #allocation4 [shape = 's32[2]{0}', space=sflag, size = 0x8, scoped, tag = 'scoped memory for tpu_custom_call.1']
    #allocation5 [shape = 's32[2]{0}', space=sflag, size = 0x8, scoped, tag = 'scoped memory for tpu_custom_call.1']
    #allocation6 [shape = 'u8[131072]{0}', space=vmem, size = 0x20000, scoped, tag = 'input window, operand 1, single buffered']
    #allocation7 [shape = 's32[1]{0}', space=sflag, size = 0x4, scoped, tag = 'scoped memory for tpu_custom_call.1']
    #allocation8 [shape = 'u8[131072]{0}', space=vmem, size = 0x20000, scoped, tag = 'input window, operand 3, single buffered']
    #allocation9 [shape = 'u8[131072]{0}', space=vmem, size = 0x20000, scoped, tag = 'output window, operand 0']
    %10 = vsyncpa [#allocation4], 0
    %s11 = scalar_lea.sflag [#allocation4], 1
    %12 = vsyncpa %s11, 0
    %13 = vsyncpa [#allocation7], 0
    %14 = vsyncpa [#allocation5], 0
    %s15 = scalar_lea.sflag [#allocation5], 1
    %16 = vsyncpa %s15, 0
    loop: start=0, step=1, limit=10
    $region2: #{tpu_custom_call.1} parent=1 // loop_pre_header
      _
    $region3: #{tpu_custom_call.1} parent=1 // loop_header
      %s18 = sphi 0, %s22
      %p19 = scmp.ge.s32.totalorder %s18, 10
      %s25 = sphi 0, %s37
      %s26 = sphi 0, %s33
      %s27 = sphi 0, %s25
      %s28 = sphi 0, %s26
      %s29 = sphi 0, %s27
      %s30 = sphi 0, %s28
      %s40 = sphi 0, %s42
      %s43 = sphi 0, %s40
      %s44 = sphi 0, %s43
      %s60 = sphi 0, %s44
      %s66 = sphi 0, %s68
      %s69 = sphi 0, %s66
      %s70 = sphi 0, %s69
      %s86 = sphi 0, %s70
      %s92 = sphi 0, %s94
      %s95 = sphi 0, %s92
      %s96 = sphi 0, %s95
      %s112 = sphi 0, %s96
      %s118 = sphi 0, %s120
      %s121 = sphi 0, %s118
      %s122 = sphi 0, %s121
      %s138 = sphi 0, %s122
      %s142 = sphi 0, %s142
      %s144 = sphi 0, %s142
      %s145 = sphi 0, %s144
      %s159 = sphi 0, %s145
      %s165 = sphi 0, %s167
      %s168 = sphi 0, %s165
      %s169 = sphi 0, %s168
      %s185 = sphi 0, %s169
    $region4: #{tpu_custom_call.1} parent=1 // loop_header_branch
      %21 = sbr.rel (%p19) target = $region8
    $region5: #{tpu_custom_call.1} parent=1 // loop_body
      %s23 = ssub.s32 %s18, 1
      %s24 = ssub.s32 %s18, 2
      %s31 = sadd.s32 1, %s26
      %p32 = scmp.ge.s32.totalorder %s31, 1
      %s33 = scalar_select %p32, 0, %s31
      %s34 = sadd.s32 1, %s25
      %s35 = scalar_select %p32, %s34, %s25
      %p36 = scmp.ge.s32.totalorder %s35, 8
      %s37 = scalar_select %p36, 0, %s35
      %s38 = ssub.s32 %s25, %s37
      %p39 = scmp.eq.s32.totalorder %s38, 0
      %s41 = sadd.s32 %s40, 1
      %s42 = scalar_select %p39, %s40, %s41
      %p45 = pneg %p39
      %p46 = scmp.eq.s32.totalorder %s18, 7
      %p47 = por %p45, %p46
      %p48 = scmp.ne.s32.totalorder %s40, %s43
      %p49 = scmp.eq.s32.totalorder %s18, 0
      %p50 = por %p48, %p49
      %p51 = scmp.ne.s32.totalorder %s40, %s43
      %p52 = scmp.eq.s32.totalorder %s23, 7
      %p53 = por %p51, %p52
      %p54 = scmp.ne.s32.totalorder %s43, %s44
      %p55 = scmp.eq.s32.totalorder %s23, 0
      %p56 = por %p54, %p55
      %p57 = scmp.ne.s32.totalorder %s43, %s44
      %p58 = scmp.eq.s32.totalorder %s24, 7
      %p59 = por %p57, %p58
      %p61 = scmp.ne.s32.totalorder %s44, %s60
      %p62 = scmp.eq.s32.totalorder %s24, 0
      %p63 = por %p61, %p62
      %s64 = ssub.s32 %s26, %s33
      %p65 = scmp.eq.s32.totalorder %s64, 0
      %s67 = sadd.s32 %s66, 1
      %s68 = scalar_select %p65, %s66, %s67
      %p71 = pneg %p65
      %p72 = scmp.eq.s32.totalorder %s18, 7
      %p73 = por %p71, %p72
      %p74 = scmp.ne.s32.totalorder %s66, %s69
      %p75 = scmp.eq.s32.totalorder %s18, 0
      %p76 = por %p74, %p75
      %p77 = scmp.ne.s32.totalorder %s66, %s69
      %p78 = scmp.eq.s32.totalorder %s23, 7
      %p79 = por %p77, %p78
      %p80 = scmp.ne.s32.totalorder %s69, %s70
      %p81 = scmp.eq.s32.totalorder %s23, 0
      %p82 = por %p80, %p81
      %p83 = scmp.ne.s32.totalorder %s69, %s70
      %p84 = scmp.eq.s32.totalorder %s24, 7
      %p85 = por %p83, %p84
      %p87 = scmp.ne.s32.totalorder %s70, %s86
      %p88 = scmp.eq.s32.totalorder %s24, 0
      %p89 = por %p87, %p88
      %s90 = ssub.s32 %s26, %s33
      %p91 = scmp.eq.s32.totalorder %s90, 0
      %s93 = sadd.s32 %s92, 1
      %s94 = scalar_select %p91, %s92, %s93
      %p97 = pneg %p91
      %p98 = scmp.eq.s32.totalorder %s18, 7
      %p99 = por %p97, %p98
      %p100 = scmp.ne.s32.totalorder %s92, %s95
      %p101 = scmp.eq.s32.totalorder %s18, 0
      %p102 = por %p100, %p101
      %p103 = scmp.ne.s32.totalorder %s92, %s95
      %p104 = scmp.eq.s32.totalorder %s23, 7
      %p105 = por %p103, %p104
      %p106 = scmp.ne.s32.totalorder %s95, %s96
      %p107 = scmp.eq.s32.totalorder %s23, 0
      %p108 = por %p106, %p107
      %p109 = scmp.ne.s32.totalorder %s95, %s96
      %p110 = scmp.eq.s32.totalorder %s24, 7
      %p111 = por %p109, %p110
      %p113 = scmp.ne.s32.totalorder %s96, %s112
      %p114 = scmp.eq.s32.totalorder %s24, 0
      %p115 = por %p113, %p114
      %s116 = ssub.s32 %s26, %s33
      %p117 = scmp.eq.s32.totalorder %s116, 0
      %s119 = sadd.s32 %s118, 1
      %s120 = scalar_select %p117, %s118, %s119
      %p123 = pneg %p117
      %p124 = scmp.eq.s32.totalorder %s18, 7
      %p125 = por %p123, %p124
      %p126 = scmp.ne.s32.totalorder %s118, %s121
      %p127 = scmp.eq.s32.totalorder %s18, 0
      %p128 = por %p126, %p127
      %p129 = scmp.ne.s32.totalorder %s118, %s121
      %p130 = scmp.eq.s32.totalorder %s23, 7
      %p131 = por %p129, %p130
      %p132 = scmp.ne.s32.totalorder %s121, %s122
      %p133 = scmp.eq.s32.totalorder %s23, 0
      %p134 = por %p132, %p133
      %p135 = scmp.ne.s32.totalorder %s121, %s122
      %p136 = scmp.eq.s32.totalorder %s24, 7
      %p137 = por %p135, %p136
      %p139 = scmp.ne.s32.totalorder %s122, %s138
      %p140 = scmp.eq.s32.totalorder %s24, 0
      %p141 = por %p139, %p140
      %s143 = sadd.s32 %s142, 1
      %p146 = scmp.eq.s32.totalorder %s18, 7
      %p147 = scmp.ne.s32.totalorder %s142, %s144
      %p148 = scmp.eq.s32.totalorder %s18, 0
      %p149 = por %p147, %p148
      %p150 = scmp.ne.s32.totalorder %s142, %s144
      %p151 = scmp.eq.s32.totalorder %s23, 7
      %p152 = por %p150, %p151
      %p153 = scmp.ne.s32.totalorder %s144, %s145
      %p154 = scmp.eq.s32.totalorder %s23, 0
      %p155 = por %p153, %p154
      %p156 = scmp.ne.s32.totalorder %s144, %s145
      %p157 = scmp.eq.s32.totalorder %s24, 7
      %p158 = por %p156, %p157
      %p160 = scmp.ne.s32.totalorder %s145, %s159
      %p161 = scmp.eq.s32.totalorder %s24, 0
      %p162 = por %p160, %p161
      %s163 = ssub.s32 %s25, %s37
      %p164 = scmp.eq.s32.totalorder %s163, 0
      %s166 = sadd.s32 %s165, 1
      %s167 = scalar_select %p164, %s165, %s166
      %p170 = pneg %p164
      %p171 = scmp.eq.s32.totalorder %s18, 7
      %p172 = por %p170, %p171
      %p173 = scmp.ne.s32.totalorder %s165, %s168
      %p174 = scmp.eq.s32.totalorder %s18, 0
      %p175 = por %p173, %p174
      %p176 = scmp.ne.s32.totalorder %s165, %s168
      %p177 = scmp.eq.s32.totalorder %s23, 7
      %p178 = por %p176, %p177
      %p179 = scmp.ne.s32.totalorder %s168, %s169
      %p180 = scmp.eq.s32.totalorder %s23, 0
      %p181 = por %p179, %p180
      %p182 = scmp.ne.s32.totalorder %s168, %s169
      %p183 = scmp.eq.s32.totalorder %s24, 7
      %p184 = por %p182, %p183
      %p186 = scmp.ne.s32.totalorder %s169, %s185
      %p187 = scmp.eq.s32.totalorder %s24, 0
      %p188 = por %p186, %p187
      %p189 = scmp.le.s32.totalorder 1, %s18
      %p190 = scmp.lt.s32.totalorder %s18, 9
      %p191 = pnand %p189, %p190
      %p192 = pneg %p191
      // Predicated region
      $region9: #{tpu_custom_call.1} parent=5 // pred_check
        _
      $region10: #{tpu_custom_call.1} parent=5 // pred_check_branch
        %194 = sbr.rel (%p191) target = $region12
      $region11: #{tpu_custom_call.1} parent=5 // pred_region
        %s195 = ssub.s32 %s18, 1
        // Predicated region
        $region13: #{tpu_custom_call.1} parent=11 // pred_check
          %p196 = pneg %p82
        $region14: #{tpu_custom_call.1} parent=11 // pred_check_branch
          %198 = sbr.rel (%p196) target = $region16
        $region15: #{tpu_custom_call.1} parent=11 // pred_region
          %s199 = smul.u32 4, %s28
          %s201 = ssub.s32 4096, 4096
          %202 = vsyncadd [#allocation7], %s201
          %s203 = smul.addr %s199, 64
          %s204 = scalar_lea.hbm %s1, %s203
          %s205 = sshll.u32 [#allocation6], 4
          %s206 = int_to_ptr.vmem [resolvable:$true] %s205
          %211 = dma.hbm_to_vmem [thread:$0]  %s204, 4096, %s206, [#allocation7], 256, 256, 16
        $region16: #{tpu_custom_call.1} parent=11 // pred_fallthru
          _
        // Predicated region
        $region17: #{tpu_custom_call.1} parent=11 // pred_check
          %p212 = pneg %p108
        $region18: #{tpu_custom_call.1} parent=11 // pred_check_branch
          %214 = sbr.rel (%p212) target = $region20
        $region19: #{tpu_custom_call.1} parent=11 // pred_region
          %s215 = smul.u32 4, %s28
          %p216 = scmp.lt.s32.totalorder %s215, 3
          %s217 = scalar_select %p216, %s215, 3
          %s218 = scalar_lea.vmem %s2, %s217
          %s219 = smul.u32 4, %s28
        $region20: #{tpu_custom_call.1} parent=11 // pred_fallthru
          _
        // Predicated region
        $region21: #{tpu_custom_call.1} parent=11 // pred_check
          %p220 = pneg %p134
        $region22: #{tpu_custom_call.1} parent=11 // pred_check_branch
          %222 = sbr.rel (%p220) target = $region24
        $region23: #{tpu_custom_call.1} parent=11 // pred_region
          %s223 = smul.u32 64, %s28
          %s225 = ssub.s32 4096, 4096
          %226 = vsyncadd [#allocation7], %s225
          %s227 = smul.addr %s223, 64
          %s228 = scalar_lea.hbm %s3, %s227
          %s229 = sshll.u32 [#allocation8], 4
          %s230 = int_to_ptr.vmem [resolvable:$true] %s229
          %235 = dma.hbm_to_vmem [thread:$0]  %s228, 4096, %s230, [#allocation7], 64, 64, 4
        $region24: #{tpu_custom_call.1} parent=11 // pred_fallthru
          _
        // Predicated region
        $region25: #{tpu_custom_call.1} parent=11 // pred_check
          %p236 = pneg %p155
        $region26: #{tpu_custom_call.1} parent=11 // pred_check_branch
          %238 = sbr.rel (%p236) target = $region28
        $region27: #{tpu_custom_call.1} parent=11 // pred_region
          _
        $region28: #{tpu_custom_call.1} parent=11 // pred_fallthru
          _
      $region12: #{tpu_custom_call.1} parent=5 // pred_fallthru
        _
      %p239 = scmp.lt.s32.totalorder %s18, 8
      // Predicated region
      $region29: #{tpu_custom_call.1} parent=5 // pred_check
        %p240 = pneg %p239
      $region30: #{tpu_custom_call.1} parent=5 // pred_check_branch
        %242 = sbr.rel (%p240) target = $region32
      $region31: #{tpu_custom_call.1} parent=5 // pred_region
        // Predicated region
        $region33: #{tpu_custom_call.1} parent=31 // pred_check
          %p243 = pneg %p50
        $region34: #{tpu_custom_call.1} parent=31 // pred_check_branch
          %245 = sbr.rel (%p243) target = $region36
        $region35: #{tpu_custom_call.1} parent=31 // pred_region
          %s246 = sand.u32 %s40, 1
          %s247 = scalar_lea.sflag [#allocation4], %s246
          %s248 = sand.u32 %s40, 1
          %s249 = smul.addr %s248, 128
          %s250 = scalar_lea.vmem [#allocation3], %s249
          %s251 = smul.u32 32, %s25
          %s253 = ssub.s32 2048, 2048
          %254 = vsyncadd %s247, %s253
          %s255 = smul.addr %s251, 64
          %s256 = scalar_lea.hbm %s0, %s255
          %s257 = sshll.u32 %s250, 4
          %s258 = int_to_ptr.vmem [resolvable:$true] %s257
          %263 = dma.hbm_to_vmem [thread:$0]  %s256, 2048, %s258, %s247, 64, 64, 4
        $region36: #{tpu_custom_call.1} parent=31 // pred_fallthru
          _
      $region32: #{tpu_custom_call.1} parent=5 // pred_fallthru
        _
      %p264 = scmp.le.s32.totalorder 1, %s18
      %p265 = scmp.lt.s32.totalorder %s18, 9
      %p266 = pnand %p264, %p265
      %p267 = pneg %p266
      // Predicated region
      $region37: #{tpu_custom_call.1} parent=5 // pred_check
        _
      $region38: #{tpu_custom_call.1} parent=5 // pred_check_branch
        %269 = sbr.rel (%p266) target = $region40
      $region39: #{tpu_custom_call.1} parent=5 // pred_region
        %s270 = ssub.s32 %s18, 1
        %s271 = sand.u32 %s43, 1
        %s272 = scalar_lea.sflag [#allocation4], %s271
        %s273 = sand.u32 %s43, 1
        %s274 = smul.addr %s273, 128
        %s275 = scalar_lea.vmem [#allocation3], %s274
        // Predicated region
        $region41: #{tpu_custom_call.1} parent=39 // pred_check
          %p276 = pneg %p56
        $region42: #{tpu_custom_call.1} parent=39 // pred_check_branch
          %278 = sbr.rel (%p276) target = $region44
        $region43: #{tpu_custom_call.1} parent=39 // pred_region
          %279 = dma.done %s272, 2048
        $region44: #{tpu_custom_call.1} parent=39 // pred_fallthru
          _
        // Predicated region
        $region45: #{tpu_custom_call.1} parent=39 // pred_check
          %p280 = pneg %p82
        $region46: #{tpu_custom_call.1} parent=39 // pred_check_branch
          %282 = sbr.rel (%p280) target = $region48
        $region47: #{tpu_custom_call.1} parent=39 // pred_region
          %283 = dma.done [#allocation7], 4096
        $region48: #{tpu_custom_call.1} parent=39 // pred_fallthru
          _
        // Predicated region
        $region49: #{tpu_custom_call.1} parent=39 // pred_check
          %p284 = pneg %p134
        $region50: #{tpu_custom_call.1} parent=39 // pred_check_branch
          %286 = sbr.rel (%p284) target = $region52
        $region51: #{tpu_custom_call.1} parent=39 // pred_region
          %287 = dma.done [#allocation7], 4096
        $region52: #{tpu_custom_call.1} parent=39 // pred_fallthru
          _
        %s288 = sand.u32 %s43, 1
        %s289 = scalar_lea.sflag [#allocation4], %s288
        %s290 = sand.u32 %s43, 1
        %s291 = smul.addr %s290, 128
        %s292 = scalar_lea.vmem [#allocation3], %s291
        %p293 = pneg %p56
        %p294 = pneg %p53
        %p295 = pneg %p82
        %p296 = pneg %p79
        %s297 = smul.u32 4, %s28
        %p298 = scmp.lt.s32.totalorder %s297, 3
        %s299 = scalar_select %p298, %s297, 3
        %s300 = scalar_lea.vmem %s2, %s299
        %p301 = pneg %p108
        %p302 = pneg %p105
        %p303 = pneg %p134
        %p304 = pneg %p131
        %p305 = pneg %p155
        %p306 = pneg %p152
        %p307 = pneg %p181
        %p308 = pneg %p178
        %s309 = sand.u32 %s168, 1
        %s310 = scalar_lea.sflag [#allocation5], %s309
        %s311 = sand.u32 %s168, 1
        %s312 = smul.addr %s311, 128
        %s313 = scalar_lea.vmem [#allocation9], %s312
        %s314 = smul.u32 32, %s27
        %s315 = smul.u32 4, %s28
        %s316 = smul.u32 4, %s28
        %p317 = scmp.lt.s32.totalorder %s316, 3
        %s318 = scalar_select %p317, %s316, 3
        %s319 = scalar_lea.vmem %s2, %s318
        %s320 = smul.u32 4, %s28
        %s321 = smul.u32 64, %s28
        %s322 = smul.u32 32, %s27
        %p324 = scmp.eq.s32.totalorder %s28, 0
        // Predicated region
        $region53: #{tpu_custom_call.1} parent=39 // pred_check
          %p325 = pneg %p324
        $region54: #{tpu_custom_call.1} parent=39 // pred_check_branch
          %327 = sbr.rel (%p325) target = $region56
        $region55: #{tpu_custom_call.1} parent=39 // pred_region
          %328 = vst [vmem:[#allocation2] sm:$0xff] 0.0
          %329 = vst [vmem:[#allocation2 + $0x8] sm:$0xff] 0.0
          %330 = vst [vmem:[#allocation2 + $0x10] sm:$0xff] 0.0
          %331 = vst [vmem:[#allocation2 + $0x18] sm:$0xff] 0.0
          %332 = vst [vmem:[#allocation2 + $0x20] sm:$0xff] 0.0
          %333 = vst [vmem:[#allocation2 + $0x28] sm:$0xff] 0.0
          %334 = vst [vmem:[#allocation2 + $0x30] sm:$0xff] 0.0
          %335 = vst [vmem:[#allocation2 + $0x38] sm:$0xff] 0.0
          %336 = vst [vmem:[#allocation2 + $0x40] sm:$0xff] 0.0
          %337 = vst [vmem:[#allocation2 + $0x48] sm:$0xff] 0.0
          %338 = vst [vmem:[#allocation2 + $0x50] sm:$0xff] 0.0
          %339 = vst [vmem:[#allocation2 + $0x58] sm:$0xff] 0.0
          %340 = vst [vmem:[#allocation2 + $0x60] sm:$0xff] 0.0
          %341 = vst [vmem:[#allocation2 + $0x68] sm:$0xff] 0.0
          %342 = vst [vmem:[#allocation2 + $0x70] sm:$0xff] 0.0
          %343 = vst [vmem:[#allocation2 + $0x78] sm:$0xff] 0.0
          %344 = vst [vmem:[#allocation2 + $0x80] sm:$0xff] 0.0
          %345 = vst [vmem:[#allocation2 + $0x88] sm:$0xff] 0.0
          %346 = vst [vmem:[#allocation2 + $0x90] sm:$0xff] 0.0
          %347 = vst [vmem:[#allocation2 + $0x98] sm:$0xff] 0.0
          %348 = vst [vmem:[#allocation2 + $0xa0] sm:$0xff] 0.0
          %349 = vst [vmem:[#allocation2 + $0xa8] sm:$0xff] 0.0
          %350 = vst [vmem:[#allocation2 + $0xb0] sm:$0xff] 0.0
          %351 = vst [vmem:[#allocation2 + $0xb8] sm:$0xff] 0.0
          %352 = vst [vmem:[#allocation2 + $0xc0] sm:$0xff] 0.0
          %353 = vst [vmem:[#allocation2 + $0xc8] sm:$0xff] 0.0
          %354 = vst [vmem:[#allocation2 + $0xd0] sm:$0xff] 0.0
          %355 = vst [vmem:[#allocation2 + $0xd8] sm:$0xff] 0.0
          %356 = vst [vmem:[#allocation2 + $0xe0] sm:$0xff] 0.0
          %357 = vst [vmem:[#allocation2 + $0xe8] sm:$0xff] 0.0
          %358 = vst [vmem:[#allocation2 + $0xf0] sm:$0xff] 0.0
          %359 = vst [vmem:[#allocation2 + $0xf8] sm:$0xff] 0.0
        $region56: #{tpu_custom_call.1} parent=39 // pred_fallthru
          _
        %v360 = vld [vmem:[%s275] sm:$0xf]
        %v361 = vld [vmem:[%s275 + $0x4] sm:$0xf]
        %v362 = vld [vmem:[%s275 + $0x8] sm:$0xf]
        %v363 = vld [vmem:[%s275 + $0xc] sm:$0xf]
        %v364 = vld [vmem:[%s275 + $0x10] sm:$0xf]
        %v365 = vld [vmem:[%s275 + $0x14] sm:$0xf]
        %v366 = vld [vmem:[%s275 + $0x18] sm:$0xf]
        %v367 = vld [vmem:[%s275 + $0x1c] sm:$0xf]
        %v368 = vld [vmem:[%s275 + $0x20] sm:$0xf]
        %v369 = vld [vmem:[%s275 + $0x24] sm:$0xf]
        %v370 = vld [vmem:[%s275 + $0x28] sm:$0xf]
        %v371 = vld [vmem:[%s275 + $0x2c] sm:$0xf]
        %v372 = vld [vmem:[%s275 + $0x30] sm:$0xf]
        %v373 = vld [vmem:[%s275 + $0x34] sm:$0xf]
        %v374 = vld [vmem:[%s275 + $0x38] sm:$0xf]
        %v375 = vld [vmem:[%s275 + $0x3c] sm:$0xf]
        %v376 = vld [vmem:[%s275 + $0x40] sm:$0xf]
        %v377 = vld [vmem:[%s275 + $0x44] sm:$0xf]
        %v378 = vld [vmem:[%s275 + $0x48] sm:$0xf]
        %v379 = vld [vmem:[%s275 + $0x4c] sm:$0xf]
        %v380 = vld [vmem:[%s275 + $0x50] sm:$0xf]
        %v381 = vld [vmem:[%s275 + $0x54] sm:$0xf]
        %v382 = vld [vmem:[%s275 + $0x58] sm:$0xf]
        %v383 = vld [vmem:[%s275 + $0x5c] sm:$0xf]
        %v384 = vld [vmem:[%s275 + $0x60] sm:$0xf]
        %v385 = vld [vmem:[%s275 + $0x64] sm:$0xf]
        %v386 = vld [vmem:[%s275 + $0x68] sm:$0xf]
        %v387 = vld [vmem:[%s275 + $0x6c] sm:$0xf]
        %v388 = vld [vmem:[%s275 + $0x70] sm:$0xf]
        %v389 = vld [vmem:[%s275 + $0x74] sm:$0xf]
        %v390 = vld [vmem:[%s275 + $0x78] sm:$0xf]
        %v391 = vld [vmem:[%s275 + $0x7c] sm:$0xf]
        %v392 = vld [vmem:[#allocation6] sm:$0xff]
        %v393 = vld [vmem:[#allocation6 + $0x8] sm:$0xff]
        %v394 = vld [vmem:[#allocation6 + $0x10] sm:$0xff]
        %v395 = vld [vmem:[#allocation6 + $0x18] sm:$0xff]
        %v396 = vld [vmem:[#allocation6 + $0x20] sm:$0xff]
        %v397 = vld [vmem:[#allocation6 + $0x28] sm:$0xff]
        %v398 = vld [vmem:[#allocation6 + $0x30] sm:$0xff]
        %v399 = vld [vmem:[#allocation6 + $0x38] sm:$0xff]
        %v400 = vld [vmem:[#allocation6 + $0x40] sm:$0xff]
        %v401 = vld [vmem:[#allocation6 + $0x48] sm:$0xff]
        %v402 = vld [vmem:[#allocation6 + $0x50] sm:$0xff]
        %v403 = vld [vmem:[#allocation6 + $0x58] sm:$0xff]
        %v404 = vld [vmem:[#allocation6 + $0x60] sm:$0xff]
        %v405 = vld [vmem:[#allocation6 + $0x68] sm:$0xff]
        %v406 = vld [vmem:[#allocation6 + $0x70] sm:$0xff]
        %v407 = vld [vmem:[#allocation6 + $0x78] sm:$0xff]
        %v408 = vld [vmem:[#allocation6 + $0x80] sm:$0xff]
        %v409 = vld [vmem:[#allocation6 + $0x88] sm:$0xff]
        %v410 = vld [vmem:[#allocation6 + $0x90] sm:$0xff]
        %v411 = vld [vmem:[#allocation6 + $0x98] sm:$0xff]
        %v412 = vld [vmem:[#allocation6 + $0xa0] sm:$0xff]
        %v413 = vld [vmem:[#allocation6 + $0xa8] sm:$0xff]
        %v414 = vld [vmem:[#allocation6 + $0xb0] sm:$0xff]
        %v415 = vld [vmem:[#allocation6 + $0xb8] sm:$0xff]
        %v416 = vld [vmem:[#allocation6 + $0xc0] sm:$0xff]
        %v417 = vld [vmem:[#allocation6 + $0xc8] sm:$0xff]
        %v418 = vld [vmem:[#allocation6 + $0xd0] sm:$0xff]
        %v419 = vld [vmem:[#allocation6 + $0xd8] sm:$0xff]
        %v420 = vld [vmem:[#allocation6 + $0xe0] sm:$0xff]
        %v421 = vld [vmem:[#allocation6 + $0xe8] sm:$0xff]
        %v422 = vld [vmem:[#allocation6 + $0xf0] sm:$0xff]
        %v423 = vld [vmem:[#allocation6 + $0xf8] sm:$0xff]
        %v424 = vld [vmem:[%s319] sm:$0xf]
        %v426 = vlaneseq
        %v427 = vshrl.u32 %v426, 7
        %v428 = vsub.s32 0, %v427
        %v429 = vrot.slane %v424, %v428
        %v430 = vlaneseq
        %v431 = vshrl.u32 %v430, 7
        %v432 = vsub.s32 1, %v431
        %v433 = vrot.slane %v424, %v432
        %v434 = vlaneseq
        %v435 = vshrl.u32 %v434, 7
        %v436 = vsub.s32 2, %v435
        %v437 = vrot.slane %v424, %v436
        %v438 = vlaneseq
        %v439 = vshrl.u32 %v438, 7
        %v440 = vsub.s32 3, %v439
        %v441 = vrot.slane %v424, %v440
        %v478 = vunpack.c.l.b16 %v360
        %v479 = vunpack.c.l.b16 %v361
        %v480 = vunpack.c.l.b16 %v362
        %v481 = vunpack.c.l.b16 %v363
        %v482 = vunpack.c.l.b16 %v364
        %v483 = vunpack.c.l.b16 %v365
        %v484 = vunpack.c.l.b16 %v366
        %v485 = vunpack.c.l.b16 %v367
        %v486 = vunpack.c.l.b16 %v368
        %v487 = vunpack.c.l.b16 %v369
        %v488 = vunpack.c.l.b16 %v370
        %v489 = vunpack.c.l.b16 %v371
        %v490 = vunpack.c.l.b16 %v372
        %v491 = vunpack.c.l.b16 %v373
        %v492 = vunpack.c.l.b16 %v374
        %v493 = vunpack.c.l.b16 %v375
        %v494 = vunpack.c.l.b16 %v376
        %v495 = vunpack.c.l.b16 %v377
        %v496 = vunpack.c.l.b16 %v378
        %v497 = vunpack.c.l.b16 %v379
        %v498 = vunpack.c.l.b16 %v380
        %v499 = vunpack.c.l.b16 %v381
        %v500 = vunpack.c.l.b16 %v382
        %v501 = vunpack.c.l.b16 %v383
        %v502 = vunpack.c.l.b16 %v384
        %v503 = vunpack.c.l.b16 %v385
        %v504 = vunpack.c.l.b16 %v386
        %v505 = vunpack.c.l.b16 %v387
        %v506 = vunpack.c.l.b16 %v388
        %v507 = vunpack.c.l.b16 %v389
        %v508 = vunpack.c.l.b16 %v390
        %v509 = vunpack.c.l.b16 %v391
        %v510 = vpack.c.b16 %v479, %v478
        %v511 = vpack.c.b16 %v481, %v480
        %v512 = vpack.c.b16 %v483, %v482
        %v513 = vpack.c.b16 %v485, %v484
        %v514 = vpack.c.b16 %v487, %v486
        %v515 = vpack.c.b16 %v489, %v488
        %v516 = vpack.c.b16 %v491, %v490
        %v517 = vpack.c.b16 %v493, %v492
        %v518 = vpack.c.b16 %v495, %v494
        %v519 = vpack.c.b16 %v497, %v496
        %v520 = vpack.c.b16 %v499, %v498
        %v521 = vpack.c.b16 %v501, %v500
        %v522 = vpack.c.b16 %v503, %v502
        %v523 = vpack.c.b16 %v505, %v504
        %v524 = vpack.c.b16 %v507, %v506
        %v525 = vpack.c.b16 %v509, %v508
        %v574 = vunpack.c.l.b16 %v392
        %v575 = vunpack.c.h.b16 %v392
        %v576 = vunpack.c.l.b16 %v393
        %v577 = vunpack.c.h.b16 %v393
        %v578 = vunpack.c.l.b16 %v394
        %v579 = vunpack.c.h.b16 %v394
        %v580 = vunpack.c.l.b16 %v395
        %v581 = vunpack.c.h.b16 %v395
        %v582 = vunpack.c.l.b16 %v396
        %v583 = vunpack.c.h.b16 %v396
        %v584 = vunpack.c.l.b16 %v397
        %v585 = vunpack.c.h.b16 %v397
        %v586 = vunpack.c.l.b16 %v398
        %v587 = vunpack.c.h.b16 %v398
        %v588 = vunpack.c.l.b16 %v399
        %v589 = vunpack.c.h.b16 %v399
        %v590 = vunpack.c.l.b16 %v400
        %v591 = vunpack.c.h.b16 %v400
        %v592 = vunpack.c.l.b16 %v401
        %v593 = vunpack.c.h.b16 %v401
        %v594 = vunpack.c.l.b16 %v402
        %v595 = vunpack.c.h.b16 %v402
        %v596 = vunpack.c.l.b16 %v403
        %v597 = vunpack.c.h.b16 %v403
        %v598 = vunpack.c.l.b16 %v404
        %v599 = vunpack.c.h.b16 %v404
        %v600 = vunpack.c.l.b16 %v405
        %v601 = vunpack.c.h.b16 %v405
        %v602 = vunpack.c.l.b16 %v406
        %v603 = vunpack.c.h.b16 %v406
        %v604 = vunpack.c.l.b16 %v407
        %v605 = vunpack.c.h.b16 %v407
        %v606 = vunpack.c.l.b16 %v408
        %v607 = vunpack.c.h.b16 %v408
        %v608 = vunpack.c.l.b16 %v409
        %v609 = vunpack.c.h.b16 %v409
        %v610 = vunpack.c.l.b16 %v410
        %v611 = vunpack.c.h.b16 %v410
        %v612 = vunpack.c.l.b16 %v411
        %v613 = vunpack.c.h.b16 %v411
        %v614 = vunpack.c.l.b16 %v412
        %v615 = vunpack.c.h.b16 %v412
        %v616 = vunpack.c.l.b16 %v413
        %v617 = vunpack.c.h.b16 %v413
        %v618 = vunpack.c.l.b16 %v414
        %v619 = vunpack.c.h.b16 %v414
        %v620 = vunpack.c.l.b16 %v415
        %v621 = vunpack.c.h.b16 %v415
        %v622 = vunpack.c.l.b16 %v416
        %v623 = vunpack.c.h.b16 %v416
        %v624 = vunpack.c.l.b16 %v417
        %v625 = vunpack.c.h.b16 %v417
        %v626 = vunpack.c.l.b16 %v418
        %v627 = vunpack.c.h.b16 %v418
        %v628 = vunpack.c.l.b16 %v419
        %v629 = vunpack.c.h.b16 %v419
        %v630 = vunpack.c.l.b16 %v420
        %v631 = vunpack.c.h.b16 %v420
        %v632 = vunpack.c.l.b16 %v421
        %v633 = vunpack.c.h.b16 %v421
        %v634 = vunpack.c.l.b16 %v422
        %v635 = vunpack.c.h.b16 %v422
        %v636 = vunpack.c.l.b16 %v423
        %v637 = vunpack.c.h.b16 %v423
        %v638 = vpack.c.b16 %v578, %v574
        %v639 = vpack.c.b16 %v579, %v575
        %v640 = vpack.c.b16 %v580, %v576
        %v641 = vpack.c.b16 %v581, %v577
        %v642 = vpack.c.b16 %v586, %v582
        %v643 = vpack.c.b16 %v587, %v583
        %v644 = vpack.c.b16 %v588, %v584
        %v645 = vpack.c.b16 %v589, %v585
        %v646 = vpack.c.b16 %v594, %v590
        %v647 = vpack.c.b16 %v595, %v591
        %v648 = vpack.c.b16 %v596, %v592
        %v649 = vpack.c.b16 %v597, %v593
        %v650 = vpack.c.b16 %v602, %v598
        %v651 = vpack.c.b16 %v603, %v599
        %v652 = vpack.c.b16 %v604, %v600
        %v653 = vpack.c.b16 %v605, %v601
        %v654 = vpack.c.b16 %v610, %v606
        %v655 = vpack.c.b16 %v611, %v607
        %v656 = vpack.c.b16 %v612, %v608
        %v657 = vpack.c.b16 %v613, %v609
        %v658 = vpack.c.b16 %v618, %v614
        %v659 = vpack.c.b16 %v619, %v615
        %v660 = vpack.c.b16 %v620, %v616
        %v661 = vpack.c.b16 %v621, %v617
        %v662 = vpack.c.b16 %v626, %v622
        %v663 = vpack.c.b16 %v627, %v623
        %v664 = vpack.c.b16 %v628, %v624
        %v665 = vpack.c.b16 %v629, %v625
        %v666 = vpack.c.b16 %v634, %v630
        %v667 = vpack.c.b16 %v635, %v631
        %v668 = vpack.c.b16 %v636, %v632
        %v669 = vpack.c.b16 %v637, %v633
        %702 = vmatprep.subr.bf16.mxu0 %v639
        %703 = vmatpush1.bf16.msra.mxu0 %v638
        %704 = vmatprep.subr.bf16.mxu0 %v643
        %705 = vmatpush1.bf16.msra.mxu0 %v642
        %706 = vmatprep.subr.bf16.mxu0 %v647
        %707 = vmatpush1.bf16.msra.mxu0 %v646
        %708 = vmatprep.subr.bf16.mxu0 %v651
        %709 = vmatpush1.bf16.msra.mxu0 %v650
        %710 = vmatprep.subr.bf16.mxu0 %v655
        %711 = vmatpush1.bf16.msra.mxu0 %v654
        %712 = vmatprep.subr.bf16.mxu0 %v659
        %713 = vmatpush1.bf16.msra.mxu0 %v658
        %714 = vmatprep.subr.bf16.mxu0 %v663
        %715 = vmatpush1.bf16.msra.mxu0 %v662
        %716 = vmatprep.subr.bf16.mxu0 %v667
        %717 = vmatpush1.bf16.msra.mxu0 %v666
        %718 = vmatprep.subr.bf16.mxu0 0
        %719 = vmatpush1.bf16.msra.mxu0 0
        %720 = vmatprep.subr.bf16.mxu0 0
        %721 = vmatpush1.bf16.msra.mxu0 0
        %722 = vmatprep.subr.bf16.mxu0 0
        %723 = vmatpush1.bf16.msra.mxu0 0
        %724 = vmatprep.subr.bf16.mxu0 0
        %725 = vmatpush1.bf16.msra.mxu0 0
        %726 = vmatprep.subr.bf16.mxu0 0
        %727 = vmatpush1.bf16.msra.mxu0 0
        %728 = vmatprep.subr.bf16.mxu0 0
        %729 = vmatpush1.bf16.msra.mxu0 0
        %730 = vmatprep.subr.bf16.mxu0 0
        %731 = vmatpush1.bf16.msra.mxu0 0
        %732 = vmatprep.subr.bf16.mxu0 0
        %733 = vmatpush1.bf16.msra.mxu0 0
        %734 = vmatprep.mubr.bf16.mxu0 0
        %735 = vmatmul.mubr.bf16.gmra.mrb[0].mxu0 %v510
        %v736 = vpop.f32.mrb[0].mxu0
        %v737 = vadd.f32 %v429, %v736
        %v738 = vpop.f32.mrb[0].mxu0
        %v739 = vadd.f32 %v433, %v738
        %v740 = vpop.f32.mrb[0].mxu0
        %v741 = vadd.f32 %v429, %v740
        %v742 = vpop.f32.mrb[0].mxu0
        %v743 = vadd.f32 %v433, %v742
        %744 = vmatprep.mubr.bf16.mxu0 0
        %745 = vmatmul.mubr.bf16.gmra.mrb[0].mxu0 %v511
        %v746 = vpop.f32.mrb[0].mxu0
        %v747 = vadd.f32 %v429, %v746
        %v748 = vpop.f32.mrb[0].mxu0
        %v749 = vadd.f32 %v433, %v748
        %v750 = vpop.f32.mrb[0].mxu0
        %v751 = vadd.f32 %v429, %v750
        %v752 = vpop.f32.mrb[0].mxu0
        %v753 = vadd.f32 %v433, %v752
        %754 = vmatprep.mubr.bf16.mxu0 0
        %755 = vmatmul.mubr.bf16.gmra.mrb[0].mxu0 %v512
        %v756 = vpop.f32.mrb[0].mxu0
        %v757 = vadd.f32 %v429, %v756
        %v758 = vpop.f32.mrb[0].mxu0
        %v759 = vadd.f32 %v433, %v758
        %v760 = vpop.f32.mrb[0].mxu0
        %v761 = vadd.f32 %v429, %v760
        %v762 = vpop.f32.mrb[0].mxu0
        %v763 = vadd.f32 %v433, %v762
        %764 = vmatprep.mubr.bf16.mxu0 0
        %765 = vmatmul.mubr.bf16.gmra.mrb[0].mxu0 %v513
        %v766 = vpop.f32.mrb[0].mxu0
        %v767 = vadd.f32 %v429, %v766
        %v768 = vpop.f32.mrb[0].mxu0
        %v769 = vadd.f32 %v433, %v768
        %v770 = vpop.f32.mrb[0].mxu0
        %v771 = vadd.f32 %v429, %v770
        %v772 = vpop.f32.mrb[0].mxu0
        %v773 = vadd.f32 %v433, %v772
        %774 = vmatprep.mubr.bf16.mxu0 0
        %775 = vmatmul.mubr.bf16.gmra.mrb[0].mxu0 %v514
        %v776 = vpop.f32.mrb[0].mxu0
        %v777 = vadd.f32 %v429, %v776
        %v778 = vpop.f32.mrb[0].mxu0
        %v779 = vadd.f32 %v433, %v778
        %v780 = vpop.f32.mrb[0].mxu0
        %v781 = vadd.f32 %v429, %v780
        %v782 = vpop.f32.mrb[0].mxu0
        %v783 = vadd.f32 %v433, %v782
        %784 = vmatprep.mubr.bf16.mxu0 0
        %785 = vmatmul.mubr.bf16.gmra.mrb[0].mxu0 %v515
        %v786 = vpop.f32.mrb[0].mxu0
        %v787 = vadd.f32 %v429, %v786
        %v788 = vpop.f32.mrb[0].mxu0
        %v789 = vadd.f32 %v433, %v788
        %v790 = vpop.f32.mrb[0].mxu0
        %v791 = vadd.f32 %v429, %v790
        %v792 = vpop.f32.mrb[0].mxu0
        %v793 = vadd.f32 %v433, %v792
        %794 = vmatprep.mubr.bf16.mxu0 0
        %795 = vmatmul.mubr.bf16.gmra.mrb[0].mxu0 %v516
        %v796 = vpop.f32.mrb[0].mxu0
        %v797 = vadd.f32 %v429, %v796
        %v798 = vpop.f32.mrb[0].mxu0
        %v799 = vadd.f32 %v433, %v798
        %v800 = vpop.f32.mrb[0].mxu0
        %v801 = vadd.f32 %v429, %v800
        %v802 = vpop.f32.mrb[0].mxu0
        %v803 = vadd.f32 %v433, %v802
        %804 = vmatprep.mubr.bf16.mxu0 0
        %805 = vmatmul.mubr.bf16.gmra.mrb[0].mxu0 %v517
        %v806 = vpop.f32.mrb[0].mxu0
        %v807 = vadd.f32 %v429, %v806
        %v808 = vpop.f32.mrb[0].mxu0
        %v809 = vadd.f32 %v433, %v808
        %v810 = vpop.f32.mrb[0].mxu0
        %v811 = vadd.f32 %v429, %v810
        %v812 = vpop.f32.mrb[0].mxu0
        %v813 = vadd.f32 %v433, %v812
        %814 = vmatprep.mubr.bf16.mxu0 0
        %815 = vmatmul.mubr.bf16.gmra.mrb[0].mxu0 %v518
        %v816 = vpop.f32.mrb[0].mxu0
        %v817 = vadd.f32 %v429, %v816
        %v818 = vpop.f32.mrb[0].mxu0
        %v819 = vadd.f32 %v433, %v818
        %v820 = vpop.f32.mrb[0].mxu0
        %v821 = vadd.f32 %v429, %v820
        %v822 = vpop.f32.mrb[0].mxu0
        %v823 = vadd.f32 %v433, %v822
        %824 = vmatprep.mubr.bf16.mxu0 0
        %825 = vmatmul.mubr.bf16.gmra.mrb[0].mxu0 %v519
        %v826 = vpop.f32.mrb[0].mxu0
        %v827 = vadd.f32 %v429, %v826
        %v828 = vpop.f32.mrb[0].mxu0
        %v829 = vadd.f32 %v433, %v828
        %v830 = vpop.f32.mrb[0].mxu0
        %v831 = vadd.f32 %v429, %v830
        %v832 = vpop.f32.mrb[0].mxu0
        %v833 = vadd.f32 %v433, %v832
        %834 = vmatprep.mubr.bf16.mxu0 0
        %835 = vmatmul.mubr.bf16.gmra.mrb[0].mxu0 %v520
        %v836 = vpop.f32.mrb[0].mxu0
        %v837 = vadd.f32 %v429, %v836
        %v838 = vpop.f32.mrb[0].mxu0
        %v839 = vadd.f32 %v433, %v838
        %v840 = vpop.f32.mrb[0].mxu0
        %v841 = vadd.f32 %v429, %v840
        %v842 = vpop.f32.mrb[0].mxu0
        %v843 = vadd.f32 %v433, %v842
        %844 = vmatprep.mubr.bf16.mxu0 0
        %845 = vmatmul.mubr.bf16.gmra.mrb[0].mxu0 %v521
        %v846 = vpop.f32.mrb[0].mxu0
        %v847 = vadd.f32 %v429, %v846
        %v848 = vpop.f32.mrb[0].mxu0
        %v849 = vadd.f32 %v433, %v848
        %v850 = vpop.f32.mrb[0].mxu0
        %v851 = vadd.f32 %v429, %v850
        %v852 = vpop.f32.mrb[0].mxu0
        %v853 = vadd.f32 %v433, %v852
        %854 = vmatprep.mubr.bf16.mxu0 0
        %855 = vmatmul.mubr.bf16.gmra.mrb[0].mxu0 %v522
        %v856 = vpop.f32.mrb[0].mxu0
        %v857 = vadd.f32 %v429, %v856
        %v858 = vpop.f32.mrb[0].mxu0
        %v859 = vadd.f32 %v433, %v858
        %v860 = vpop.f32.mrb[0].mxu0
        %v861 = vadd.f32 %v429, %v860
        %v862 = vpop.f32.mrb[0].mxu0
        %v863 = vadd.f32 %v433, %v862
        %864 = vmatprep.mubr.bf16.mxu0 0
        %865 = vmatmul.mubr.bf16.gmra.mrb[0].mxu0 %v523
        %v866 = vpop.f32.mrb[0].mxu0
        %v867 = vadd.f32 %v429, %v866
        %v868 = vpop.f32.mrb[0].mxu0
        %v869 = vadd.f32 %v433, %v868
        %v870 = vpop.f32.mrb[0].mxu0
        %v871 = vadd.f32 %v429, %v870
        %v872 = vpop.f32.mrb[0].mxu0
        %v873 = vadd.f32 %v433, %v872
        %874 = vmatprep.mubr.bf16.mxu0 0
        %875 = vmatmul.mubr.bf16.gmra.mrb[0].mxu0 %v524
        %v876 = vpop.f32.mrb[0].mxu0
        %v877 = vadd.f32 %v429, %v876
        %v878 = vpop.f32.mrb[0].mxu0
        %v879 = vadd.f32 %v433, %v878
        %v880 = vpop.f32.mrb[0].mxu0
        %v881 = vadd.f32 %v429, %v880
        %v882 = vpop.f32.mrb[0].mxu0
        %v883 = vadd.f32 %v433, %v882
        %884 = vmatprep.mubr.bf16.mxu0 0
        %885 = vmatmul.mubr.bf16.gmra.mrb[0].mxu0 %v525
        %v886 = vpop.f32.mrb[0].mxu0
        %v887 = vadd.f32 %v429, %v886
        %v888 = vpop.f32.mrb[0].mxu0
        %v889 = vadd.f32 %v433, %v888
        %v890 = vpop.f32.mrb[0].mxu0
        %v891 = vadd.f32 %v429, %v890
        %v892 = vpop.f32.mrb[0].mxu0
        %v893 = vadd.f32 %v433, %v892
        %894 = vdwg.mxu0
        %895 = vmatprep.subr.bf16.mxu0 %v641
        %896 = vmatpush1.bf16.msra.mxu0 %v640
        %897 = vmatprep.subr.bf16.mxu0 %v645
        %898 = vmatpush1.bf16.msra.mxu0 %v644
        %899 = vmatprep.subr.bf16.mxu0 %v649
        %900 = vmatpush1.bf16.msra.mxu0 %v648
        %901 = vmatprep.subr.bf16.mxu0 %v653
        %902 = vmatpush1.bf16.msra.mxu0 %v652
        %903 = vmatprep.subr.bf16.mxu0 %v657
        %904 = vmatpush1.bf16.msra.mxu0 %v656
        %905 = vmatprep.subr.bf16.mxu0 %v661
        %906 = vmatpush1.bf16.msra.mxu0 %v660
        %907 = vmatprep.subr.bf16.mxu0 %v665
        %908 = vmatpush1.bf16.msra.mxu0 %v664
        %909 = vmatprep.subr.bf16.mxu0 %v669
        %910 = vmatpush1.bf16.msra.mxu0 %v668
        %911 = vmatprep.subr.bf16.mxu0 0
        %912 = vmatpush1.bf16.msra.mxu0 0
        %913 = vmatprep.subr.bf16.mxu0 0
        %914 = vmatpush1.bf16.msra.mxu0 0
        %915 = vmatprep.subr.bf16.mxu0 0
        %916 = vmatpush1.bf16.msra.mxu0 0
        %917 = vmatprep.subr.bf16.mxu0 0
        %918 = vmatpush1.bf16.msra.mxu0 0
        %919 = vmatprep.subr.bf16.mxu0 0
        %920 = vmatpush1.bf16.msra.mxu0 0
        %921 = vmatprep.subr.bf16.mxu0 0
        %922 = vmatpush1.bf16.msra.mxu0 0
        %923 = vmatprep.subr.bf16.mxu0 0
        %924 = vmatpush1.bf16.msra.mxu0 0
        %925 = vmatprep.subr.bf16.mxu0 0
        %926 = vmatpush1.bf16.msra.mxu0 0
        %927 = vmatprep.mubr.bf16.mxu0 0
        %928 = vmatmul.mubr.bf16.gmra.mrb[0].mxu0 %v510
        %v929 = vpop.f32.mrb[0].mxu0
        %v930 = vadd.f32 %v437, %v929
        %v931 = vpop.f32.mrb[0].mxu0
        %v932 = vadd.f32 %v441, %v931
        %v933 = vpop.f32.mrb[0].mxu0
        %v934 = vadd.f32 %v437, %v933
        %v935 = vpop.f32.mrb[0].mxu0
        %v936 = vadd.f32 %v441, %v935
        %937 = vmatprep.mubr.bf16.mxu0 0
        %938 = vmatmul.mubr.bf16.gmra.mrb[0].mxu0 %v511
        %v939 = vpop.f32.mrb[0].mxu0
        %v940 = vadd.f32 %v437, %v939
        %v941 = vpop.f32.mrb[0].mxu0
        %v942 = vadd.f32 %v441, %v941
        %v943 = vpop.f32.mrb[0].mxu0
        %v944 = vadd.f32 %v437, %v943
        %v945 = vpop.f32.mrb[0].mxu0
        %v946 = vadd.f32 %v441, %v945
        %947 = vmatprep.mubr.bf16.mxu0 0
        %948 = vmatmul.mubr.bf16.gmra.mrb[0].mxu0 %v512
        %v949 = vpop.f32.mrb[0].mxu0
        %v950 = vadd.f32 %v437, %v949
        %v951 = vpop.f32.mrb[0].mxu0
        %v952 = vadd.f32 %v441, %v951
        %v953 = vpop.f32.mrb[0].mxu0
        %v954 = vadd.f32 %v437, %v953
        %v955 = vpop.f32.mrb[0].mxu0
        %v956 = vadd.f32 %v441, %v955
        %957 = vmatprep.mubr.bf16.mxu0 0
        %958 = vmatmul.mubr.bf16.gmra.mrb[0].mxu0 %v513
        %v959 = vpop.f32.mrb[0].mxu0
        %v960 = vadd.f32 %v437, %v959
        %v961 = vpop.f32.mrb[0].mxu0
        %v962 = vadd.f32 %v441, %v961
        %v963 = vpop.f32.mrb[0].mxu0
        %v964 = vadd.f32 %v437, %v963
        %v965 = vpop.f32.mrb[0].mxu0
        %v966 = vadd.f32 %v441, %v965
        %967 = vmatprep.mubr.bf16.mxu0 0
        %968 = vmatmul.mubr.bf16.gmra.mrb[0].mxu0 %v514
        %v969 = vpop.f32.mrb[0].mxu0
        %v970 = vadd.f32 %v437, %v969
        %v971 = vpop.f32.mrb[0].mxu0
        %v972 = vadd.f32 %v441, %v971
        %v973 = vpop.f32.mrb[0].mxu0
        %v974 = vadd.f32 %v437, %v973
        %v975 = vpop.f32.mrb[0].mxu0
        %v976 = vadd.f32 %v441, %v975
        %977 = vmatprep.mubr.bf16.mxu0 0
        %978 = vmatmul.mubr.bf16.gmra.mrb[0].mxu0 %v515
        %v979 = vpop.f32.mrb[0].mxu0
        %v980 = vadd.f32 %v437, %v979
        %v981 = vpop.f32.mrb[0].mxu0
        %v982 = vadd.f32 %v441, %v981
        %v983 = vpop.f32.mrb[0].mxu0
        %v984 = vadd.f32 %v437, %v983
        %v985 = vpop.f32.mrb[0].mxu0
        %v986 = vadd.f32 %v441, %v985
        %987 = vmatprep.mubr.bf16.mxu0 0
        %988 = vmatmul.mubr.bf16.gmra.mrb[0].mxu0 %v516
        %v989 = vpop.f32.mrb[0].mxu0
        %v990 = vadd.f32 %v437, %v989
        %v991 = vpop.f32.mrb[0].mxu0
        %v992 = vadd.f32 %v441, %v991
        %v993 = vpop.f32.mrb[0].mxu0
        %v994 = vadd.f32 %v437, %v993
        %v995 = vpop.f32.mrb[0].mxu0
        %v996 = vadd.f32 %v441, %v995
        %997 = vmatprep.mubr.bf16.mxu0 0
        %998 = vmatmul.mubr.bf16.gmra.mrb[0].mxu0 %v517
        %v999 = vpop.f32.mrb[0].mxu0
        %v1000 = vadd.f32 %v437, %v999
        %v1001 = vpop.f32.mrb[0].mxu0
        %v1002 = vadd.f32 %v441, %v1001
        %v1003 = vpop.f32.mrb[0].mxu0
        %v1004 = vadd.f32 %v437, %v1003
        %v1005 = vpop.f32.mrb[0].mxu0
        %v1006 = vadd.f32 %v441, %v1005
        %1007 = vmatprep.mubr.bf16.mxu0 0
        %1008 = vmatmul.mubr.bf16.gmra.mrb[0].mxu0 %v518
        %v1009 = vpop.f32.mrb[0].mxu0
        %v1010 = vadd.f32 %v437, %v1009
        %v1011 = vpop.f32.mrb[0].mxu0
        %v1012 = vadd.f32 %v441, %v1011
        %v1013 = vpop.f32.mrb[0].mxu0
        %v1014 = vadd.f32 %v437, %v1013
        %v1015 = vpop.f32.mrb[0].mxu0
        %v1016 = vadd.f32 %v441, %v1015
        %1017 = vmatprep.mubr.bf16.mxu0 0
        %1018 = vmatmul.mubr.bf16.gmra.mrb[0].mxu0 %v519
        %v1019 = vpop.f32.mrb[0].mxu0
        %v1020 = vadd.f32 %v437, %v1019
        %v1021 = vpop.f32.mrb[0].mxu0
        %v1022 = vadd.f32 %v441, %v1021
        %v1023 = vpop.f32.mrb[0].mxu0
        %v1024 = vadd.f32 %v437, %v1023
        %v1025 = vpop.f32.mrb[0].mxu0
        %v1026 = vadd.f32 %v441, %v1025
        %1027 = vmatprep.mubr.bf16.mxu0 0
        %1028 = vmatmul.mubr.bf16.gmra.mrb[0].mxu0 %v520
        %v1029 = vpop.f32.mrb[0].mxu0
        %v1030 = vadd.f32 %v437, %v1029
        %v1031 = vpop.f32.mrb[0].mxu0
        %v1032 = vadd.f32 %v441, %v1031
        %v1033 = vpop.f32.mrb[0].mxu0
        %v1034 = vadd.f32 %v437, %v1033
        %v1035 = vpop.f32.mrb[0].mxu0
        %v1036 = vadd.f32 %v441, %v1035
        %1037 = vmatprep.mubr.bf16.mxu0 0
        %1038 = vmatmul.mubr.bf16.gmra.mrb[0].mxu0 %v521
        %v1039 = vpop.f32.mrb[0].mxu0
        %v1040 = vadd.f32 %v437, %v1039
        %v1041 = vpop.f32.mrb[0].mxu0
        %v1042 = vadd.f32 %v441, %v1041
        %v1043 = vpop.f32.mrb[0].mxu0
        %v1044 = vadd.f32 %v437, %v1043
        %v1045 = vpop.f32.mrb[0].mxu0
        %v1046 = vadd.f32 %v441, %v1045
        %1047 = vmatprep.mubr.bf16.mxu0 0
        %1048 = vmatmul.mubr.bf16.gmra.mrb[0].mxu0 %v522
        %v1049 = vpop.f32.mrb[0].mxu0
        %v1050 = vadd.f32 %v437, %v1049
        %v1051 = vpop.f32.mrb[0].mxu0
        %v1052 = vadd.f32 %v441, %v1051
        %v1053 = vpop.f32.mrb[0].mxu0
        %v1054 = vadd.f32 %v437, %v1053
        %v1055 = vpop.f32.mrb[0].mxu0
        %v1056 = vadd.f32 %v441, %v1055
        %1057 = vmatprep.mubr.bf16.mxu0 0
        %1058 = vmatmul.mubr.bf16.gmra.mrb[0].mxu0 %v523
        %v1059 = vpop.f32.mrb[0].mxu0
        %v1060 = vadd.f32 %v437, %v1059
        %v1061 = vpop.f32.mrb[0].mxu0
        %v1062 = vadd.f32 %v441, %v1061
        %v1063 = vpop.f32.mrb[0].mxu0
        %v1064 = vadd.f32 %v437, %v1063
        %v1065 = vpop.f32.mrb[0].mxu0
        %v1066 = vadd.f32 %v441, %v1065
        %1067 = vmatprep.mubr.bf16.mxu0 0
        %1068 = vmatmul.mubr.bf16.gmra.mrb[0].mxu0 %v524
        %v1069 = vpop.f32.mrb[0].mxu0
        %v1070 = vadd.f32 %v437, %v1069
        %v1071 = vpop.f32.mrb[0].mxu0
        %v1072 = vadd.f32 %v441, %v1071
        %v1073 = vpop.f32.mrb[0].mxu0
        %v1074 = vadd.f32 %v437, %v1073
        %v1075 = vpop.f32.mrb[0].mxu0
        %v1076 = vadd.f32 %v441, %v1075
        %1077 = vmatprep.mubr.bf16.mxu0 0
        %1078 = vmatmul.mubr.bf16.gmra.mrb[0].mxu0 %v525
        %v1079 = vpop.f32.mrb[0].mxu0
        %v1080 = vadd.f32 %v437, %v1079
        %v1081 = vpop.f32.mrb[0].mxu0
        %v1082 = vadd.f32 %v441, %v1081
        %v1083 = vpop.f32.mrb[0].mxu0
        %v1084 = vadd.f32 %v437, %v1083
        %v1085 = vpop.f32.mrb[0].mxu0
        %v1086 = vadd.f32 %v441, %v1085
        %1087 = vdwg.mxu0
        %v1088 = vmul.f32 %v737, 0.5
        %v1089 = vmul.f32 %v739, 0.5
        %v1090 = vmul.f32 %v930, 0.5
        %v1091 = vmul.f32 %v932, 0.5
        %v1092 = vmul.f32 %v741, 0.5
        %v1093 = vmul.f32 %v743, 0.5
        %v1094 = vmul.f32 %v934, 0.5
        %v1095 = vmul.f32 %v936, 0.5
        %v1096 = vmul.f32 %v747, 0.5
        %v1097 = vmul.f32 %v749, 0.5
        %v1098 = vmul.f32 %v940, 0.5
        %v1099 = vmul.f32 %v942, 0.5
        %v1100 = vmul.f32 %v751, 0.5
        %v1101 = vmul.f32 %v753, 0.5
        %v1102 = vmul.f32 %v944, 0.5
        %v1103 = vmul.f32 %v946, 0.5
        %v1104 = vmul.f32 %v757, 0.5
        %v1105 = vmul.f32 %v759, 0.5
        %v1106 = vmul.f32 %v950, 0.5
        %v1107 = vmul.f32 %v952, 0.5
        %v1108 = vmul.f32 %v761, 0.5
        %v1109 = vmul.f32 %v763, 0.5
        %v1110 = vmul.f32 %v954, 0.5
        %v1111 = vmul.f32 %v956, 0.5
        %v1112 = vmul.f32 %v767, 0.5
        %v1113 = vmul.f32 %v769, 0.5
        %v1114 = vmul.f32 %v960, 0.5
        %v1115 = vmul.f32 %v962, 0.5
        %v1116 = vmul.f32 %v771, 0.5
        %v1117 = vmul.f32 %v773, 0.5
        %v1118 = vmul.f32 %v964, 0.5
        %v1119 = vmul.f32 %v966, 0.5
        %v1120 = vmul.f32 %v777, 0.5
        %v1121 = vmul.f32 %v779, 0.5
        %v1122 = vmul.f32 %v970, 0.5
        %v1123 = vmul.f32 %v972, 0.5
        %v1124 = vmul.f32 %v781, 0.5
        %v1125 = vmul.f32 %v783, 0.5
        %v1126 = vmul.f32 %v974, 0.5
        %v1127 = vmul.f32 %v976, 0.5
        %v1128 = vmul.f32 %v787, 0.5
        %v1129 = vmul.f32 %v789, 0.5
        %v1130 = vmul.f32 %v980, 0.5
        %v1131 = vmul.f32 %v982, 0.5
        %v1132 = vmul.f32 %v791, 0.5
        %v1133 = vmul.f32 %v793, 0.5
        %v1134 = vmul.f32 %v984, 0.5
        %v1135 = vmul.f32 %v986, 0.5
        %v1136 = vmul.f32 %v797, 0.5
        %v1137 = vmul.f32 %v799, 0.5
        %v1138 = vmul.f32 %v990, 0.5
        %v1139 = vmul.f32 %v992, 0.5
        %v1140 = vmul.f32 %v801, 0.5
        %v1141 = vmul.f32 %v803, 0.5
        %v1142 = vmul.f32 %v994, 0.5
        %v1143 = vmul.f32 %v996, 0.5
        %v1144 = vmul.f32 %v807, 0.5
        %v1145 = vmul.f32 %v809, 0.5
        %v1146 = vmul.f32 %v1000, 0.5
        %v1147 = vmul.f32 %v1002, 0.5
        %v1148 = vmul.f32 %v811, 0.5
        %v1149 = vmul.f32 %v813, 0.5
        %v1150 = vmul.f32 %v1004, 0.5
        %v1151 = vmul.f32 %v1006, 0.5
        %v1152 = vmul.f32 %v817, 0.5
        %v1153 = vmul.f32 %v819, 0.5
        %v1154 = vmul.f32 %v1010, 0.5
        %v1155 = vmul.f32 %v1012, 0.5
        %v1156 = vmul.f32 %v821, 0.5
        %v1157 = vmul.f32 %v823, 0.5
        %v1158 = vmul.f32 %v1014, 0.5
        %v1159 = vmul.f32 %v1016, 0.5
        %v1160 = vmul.f32 %v827, 0.5
        %v1161 = vmul.f32 %v829, 0.5
        %v1162 = vmul.f32 %v1020, 0.5
        %v1163 = vmul.f32 %v1022, 0.5
        %v1164 = vmul.f32 %v831, 0.5
        %v1165 = vmul.f32 %v833, 0.5
        %v1166 = vmul.f32 %v1024, 0.5
        %v1167 = vmul.f32 %v1026, 0.5
        %v1168 = vmul.f32 %v837, 0.5
        %v1169 = vmul.f32 %v839, 0.5
        %v1170 = vmul.f32 %v1030, 0.5
        %v1171 = vmul.f32 %v1032, 0.5
        %v1172 = vmul.f32 %v841, 0.5
        %v1173 = vmul.f32 %v843, 0.5
        %v1174 = vmul.f32 %v1034, 0.5
        %v1175 = vmul.f32 %v1036, 0.5
        %v1176 = vmul.f32 %v847, 0.5
        %v1177 = vmul.f32 %v849, 0.5
        %v1178 = vmul.f32 %v1040, 0.5
        %v1179 = vmul.f32 %v1042, 0.5
        %v1180 = vmul.f32 %v851, 0.5
        %v1181 = vmul.f32 %v853, 0.5
        %v1182 = vmul.f32 %v1044, 0.5
        %v1183 = vmul.f32 %v1046, 0.5
        %v1184 = vmul.f32 %v857, 0.5
        %v1185 = vmul.f32 %v859, 0.5
        %v1186 = vmul.f32 %v1050, 0.5
        %v1187 = vmul.f32 %v1052, 0.5
        %v1188 = vmul.f32 %v861, 0.5
        %v1189 = vmul.f32 %v863, 0.5
        %v1190 = vmul.f32 %v1054, 0.5
        %v1191 = vmul.f32 %v1056, 0.5
        %v1192 = vmul.f32 %v867, 0.5
        %v1193 = vmul.f32 %v869, 0.5
        %v1194 = vmul.f32 %v1060, 0.5
        %v1195 = vmul.f32 %v1062, 0.5
        %v1196 = vmul.f32 %v871, 0.5
        %v1197 = vmul.f32 %v873, 0.5
        %v1198 = vmul.f32 %v1064, 0.5
        %v1199 = vmul.f32 %v1066, 0.5
        %v1200 = vmul.f32 %v877, 0.5
        %v1201 = vmul.f32 %v879, 0.5
        %v1202 = vmul.f32 %v1070, 0.5
        %v1203 = vmul.f32 %v1072, 0.5
        %v1204 = vmul.f32 %v881, 0.5
        %v1205 = vmul.f32 %v883, 0.5
        %v1206 = vmul.f32 %v1074, 0.5
        %v1207 = vmul.f32 %v1076, 0.5
        %v1208 = vmul.f32 %v887, 0.5
        %v1209 = vmul.f32 %v889, 0.5
        %v1210 = vmul.f32 %v1080, 0.5
        %v1211 = vmul.f32 %v1082, 0.5
        %v1212 = vmul.f32 %v891, 0.5
        %v1213 = vmul.f32 %v893, 0.5
        %v1214 = vmul.f32 %v1084, 0.5
        %v1215 = vmul.f32 %v1086, 0.5
        %v1216 = vmul.f32 %v737, 0.044715
        %v1217 = vmul.f32 %v739, 0.044715
        %v1218 = vmul.f32 %v930, 0.044715
        %v1219 = vmul.f32 %v932, 0.044715
        %v1220 = vmul.f32 %v741, 0.044715
        %v1221 = vmul.f32 %v743, 0.044715
        %v1222 = vmul.f32 %v934, 0.044715
        %v1223 = vmul.f32 %v936, 0.044715
        %v1224 = vmul.f32 %v747, 0.044715
        %v1225 = vmul.f32 %v749, 0.044715
        %v1226 = vmul.f32 %v940, 0.044715
        %v1227 = vmul.f32 %v942, 0.044715
        %v1228 = vmul.f32 %v751, 0.044715
        %v1229 = vmul.f32 %v753, 0.044715
        %v1230 = vmul.f32 %v944, 0.044715
        %v1231 = vmul.f32 %v946, 0.044715
        %v1232 = vmul.f32 %v757, 0.044715
        %v1233 = vmul.f32 %v759, 0.044715
        %v1234 = vmul.f32 %v950, 0.044715
        %v1235 = vmul.f32 %v952, 0.044715
        %v1236 = vmul.f32 %v761, 0.044715
        %v1237 = vmul.f32 %v763, 0.044715
        %v1238 = vmul.f32 %v954, 0.044715
        %v1239 = vmul.f32 %v956, 0.044715
        %v1240 = vmul.f32 %v767, 0.044715
        %v1241 = vmul.f32 %v769, 0.044715
        %v1242 = vmul.f32 %v960, 0.044715
        %v1243 = vmul.f32 %v962, 0.044715
        %v1244 = vmul.f32 %v771, 0.044715
        %v1245 = vmul.f32 %v773, 0.044715
        %v1246 = vmul.f32 %v964, 0.044715
        %v1247 = vmul.f32 %v966, 0.044715
        %v1248 = vmul.f32 %v777, 0.044715
        %v1249 = vmul.f32 %v779, 0.044715
        %v1250 = vmul.f32 %v970, 0.044715
        %v1251 = vmul.f32 %v972, 0.044715
        %v1252 = vmul.f32 %v781, 0.044715
        %v1253 = vmul.f32 %v783, 0.044715
        %v1254 = vmul.f32 %v974, 0.044715
        %v1255 = vmul.f32 %v976, 0.044715
        %v1256 = vmul.f32 %v787, 0.044715
        %v1257 = vmul.f32 %v789, 0.044715
        %v1258 = vmul.f32 %v980, 0.044715
        %v1259 = vmul.f32 %v982, 0.044715
        %v1260 = vmul.f32 %v791, 0.044715
        %v1261 = vmul.f32 %v793, 0.044715
        %v1262 = vmul.f32 %v984, 0.044715
        %v1263 = vmul.f32 %v986, 0.044715
        %v1264 = vmul.f32 %v797, 0.044715
        %v1265 = vmul.f32 %v799, 0.044715
        %v1266 = vmul.f32 %v990, 0.044715
        %v1267 = vmul.f32 %v992, 0.044715
        %v1268 = vmul.f32 %v801, 0.044715
        %v1269 = vmul.f32 %v803, 0.044715
        %v1270 = vmul.f32 %v994, 0.044715
        %v1271 = vmul.f32 %v996, 0.044715
        %v1272 = vmul.f32 %v807, 0.044715
        %v1273 = vmul.f32 %v809, 0.044715
        %v1274 = vmul.f32 %v1000, 0.044715
        %v1275 = vmul.f32 %v1002, 0.044715
        %v1276 = vmul.f32 %v811, 0.044715
        %v1277 = vmul.f32 %v813, 0.044715
        %v1278 = vmul.f32 %v1004, 0.044715
        %v1279 = vmul.f32 %v1006, 0.044715
        %v1280 = vmul.f32 %v817, 0.044715
        %v1281 = vmul.f32 %v819, 0.044715
        %v1282 = vmul.f32 %v1010, 0.044715
        %v1283 = vmul.f32 %v1012, 0.044715
        %v1284 = vmul.f32 %v821, 0.044715
        %v1285 = vmul.f32 %v823, 0.044715
        %v1286 = vmul.f32 %v1014, 0.044715
        %v1287 = vmul.f32 %v1016, 0.044715
        %v1288 = vmul.f32 %v827, 0.044715
        %v1289 = vmul.f32 %v829, 0.044715
        %v1290 = vmul.f32 %v1020, 0.044715
        %v1291 = vmul.f32 %v1022, 0.044715
        %v1292 = vmul.f32 %v831, 0.044715
        %v1293 = vmul.f32 %v833, 0.044715
        %v1294 = vmul.f32 %v1024, 0.044715
        %v1295 = vmul.f32 %v1026, 0.044715
        %v1296 = vmul.f32 %v837, 0.044715
        %v1297 = vmul.f32 %v839, 0.044715
        %v1298 = vmul.f32 %v1030, 0.044715
        %v1299 = vmul.f32 %v1032, 0.044715
        %v1300 = vmul.f32 %v841, 0.044715
        %v1301 = vmul.f32 %v843, 0.044715
        %v1302 = vmul.f32 %v1034, 0.044715
        %v1303 = vmul.f32 %v1036, 0.044715
        %v1304 = vmul.f32 %v847, 0.044715
        %v1305 = vmul.f32 %v849, 0.044715
        %v1306 = vmul.f32 %v1040, 0.044715
        %v1307 = vmul.f32 %v1042, 0.044715
        %v1308 = vmul.f32 %v851, 0.044715
        %v1309 = vmul.f32 %v853, 0.044715
        %v1310 = vmul.f32 %v1044, 0.044715
        %v1311 = vmul.f32 %v1046, 0.044715
        %v1312 = vmul.f32 %v857, 0.044715
        %v1313 = vmul.f32 %v859, 0.044715
        %v1314 = vmul.f32 %v1050, 0.044715
        %v1315 = vmul.f32 %v1052, 0.044715
        %v1316 = vmul.f32 %v861, 0.044715
        %v1317 = vmul.f32 %v863, 0.044715
        %v1318 = vmul.f32 %v1054, 0.044715
        %v1319 = vmul.f32 %v1056, 0.044715
        %v1320 = vmul.f32 %v867, 0.044715
        %v1321 = vmul.f32 %v869, 0.044715
        %v1322 = vmul.f32 %v1060, 0.044715
        %v1323 = vmul.f32 %v1062, 0.044715
        %v1324 = vmul.f32 %v871, 0.044715
        %v1325 = vmul.f32 %v873, 0.044715
        %v1326 = vmul.f32 %v1064, 0.044715
        %v1327 = vmul.f32 %v1066, 0.044715
        %v1328 = vmul.f32 %v877, 0.044715
        %v1329 = vmul.f32 %v879, 0.044715
        %v1330 = vmul.f32 %v1070, 0.044715
        %v1331 = vmul.f32 %v1072, 0.044715
        %v1332 = vmul.f32 %v881, 0.044715
        %v1333 = vmul.f32 %v883, 0.044715
        %v1334 = vmul.f32 %v1074, 0.044715
        %v1335 = vmul.f32 %v1076, 0.044715
        %v1336 = vmul.f32 %v887, 0.044715
        %v1337 = vmul.f32 %v889, 0.044715
        %v1338 = vmul.f32 %v1080, 0.044715
        %v1339 = vmul.f32 %v1082, 0.044715
        %v1340 = vmul.f32 %v891, 0.044715
        %v1341 = vmul.f32 %v893, 0.044715
        %v1342 = vmul.f32 %v1084, 0.044715
        %v1343 = vmul.f32 %v1086, 0.044715
        %v1344 = vmul.f32 %v1216, %v737
        %v1345 = vmul.f32 %v1217, %v739
        %v1346 = vmul.f32 %v1218, %v930
        %v1347 = vmul.f32 %v1219, %v932
        %v1348 = vmul.f32 %v1220, %v741
        %v1349 = vmul.f32 %v1221, %v743
        %v1350 = vmul.f32 %v1222, %v934
        %v1351 = vmul.f32 %v1223, %v936
        %v1352 = vmul.f32 %v1224, %v747
        %v1353 = vmul.f32 %v1225, %v749
        %v1354 = vmul.f32 %v1226, %v940
        %v1355 = vmul.f32 %v1227, %v942
        %v1356 = vmul.f32 %v1228, %v751
        %v1357 = vmul.f32 %v1229, %v753
        %v1358 = vmul.f32 %v1230, %v944
        %v1359 = vmul.f32 %v1231, %v946
        %v1360 = vmul.f32 %v1232, %v757
        %v1361 = vmul.f32 %v1233, %v759
        %v1362 = vmul.f32 %v1234, %v950
        %v1363 = vmul.f32 %v1235, %v952
        %v1364 = vmul.f32 %v1236, %v761
        %v1365 = vmul.f32 %v1237, %v763
        %v1366 = vmul.f32 %v1238, %v954
        %v1367 = vmul.f32 %v1239, %v956
        %v1368 = vmul.f32 %v1240, %v767
        %v1369 = vmul.f32 %v1241, %v769
        %v1370 = vmul.f32 %v1242, %v960
        %v1371 = vmul.f32 %v1243, %v962
        %v1372 = vmul.f32 %v1244, %v771
        %v1373 = vmul.f32 %v1245, %v773
        %v1374 = vmul.f32 %v1246, %v964
        %v1375 = vmul.f32 %v1247, %v966
        %v1376 = vmul.f32 %v1248, %v777
        %v1377 = vmul.f32 %v1249, %v779
        %v1378 = vmul.f32 %v1250, %v970
        %v1379 = vmul.f32 %v1251, %v972
        %v1380 = vmul.f32 %v1252, %v781
        %v1381 = vmul.f32 %v1253, %v783
        %v1382 = vmul.f32 %v1254, %v974
        %v1383 = vmul.f32 %v1255, %v976
        %v1384 = vmul.f32 %v1256, %v787
        %v1385 = vmul.f32 %v1257, %v789
        %v1386 = vmul.f32 %v1258, %v980
        %v1387 = vmul.f32 %v1259, %v982
        %v1388 = vmul.f32 %v1260, %v791
        %v1389 = vmul.f32 %v1261, %v793
        %v1390 = vmul.f32 %v1262, %v984
        %v1391 = vmul.f32 %v1263, %v986
        %v1392 = vmul.f32 %v1264, %v797
        %v1393 = vmul.f32 %v1265, %v799
        %v1394 = vmul.f32 %v1266, %v990
        %v1395 = vmul.f32 %v1267, %v992
        %v1396 = vmul.f32 %v1268, %v801
        %v1397 = vmul.f32 %v1269, %v803
        %v1398 = vmul.f32 %v1270, %v994
        %v1399 = vmul.f32 %v1271, %v996
        %v1400 = vmul.f32 %v1272, %v807
        %v1401 = vmul.f32 %v1273, %v809
        %v1402 = vmul.f32 %v1274, %v1000
        %v1403 = vmul.f32 %v1275, %v1002
        %v1404 = vmul.f32 %v1276, %v811
        %v1405 = vmul.f32 %v1277, %v813
        %v1406 = vmul.f32 %v1278, %v1004
        %v1407 = vmul.f32 %v1279, %v1006
        %v1408 = vmul.f32 %v1280, %v817
        %v1409 = vmul.f32 %v1281, %v819
        %v1410 = vmul.f32 %v1282, %v1010
        %v1411 = vmul.f32 %v1283, %v1012
        %v1412 = vmul.f32 %v1284, %v821
        %v1413 = vmul.f32 %v1285, %v823
        %v1414 = vmul.f32 %v1286, %v1014
        %v1415 = vmul.f32 %v1287, %v1016
        %v1416 = vmul.f32 %v1288, %v827
        %v1417 = vmul.f32 %v1289, %v829
        %v1418 = vmul.f32 %v1290, %v1020
        %v1419 = vmul.f32 %v1291, %v1022
        %v1420 = vmul.f32 %v1292, %v831
        %v1421 = vmul.f32 %v1293, %v833
        %v1422 = vmul.f32 %v1294, %v1024
        %v1423 = vmul.f32 %v1295, %v1026
        %v1424 = vmul.f32 %v1296, %v837
        %v1425 = vmul.f32 %v1297, %v839
        %v1426 = vmul.f32 %v1298, %v1030
        %v1427 = vmul.f32 %v1299, %v1032
        %v1428 = vmul.f32 %v1300, %v841
        %v1429 = vmul.f32 %v1301, %v843
        %v1430 = vmul.f32 %v1302, %v1034
        %v1431 = vmul.f32 %v1303, %v1036
        %v1432 = vmul.f32 %v1304, %v847
        %v1433 = vmul.f32 %v1305, %v849
        %v1434 = vmul.f32 %v1306, %v1040
        %v1435 = vmul.f32 %v1307, %v1042
        %v1436 = vmul.f32 %v1308, %v851
        %v1437 = vmul.f32 %v1309, %v853
        %v1438 = vmul.f32 %v1310, %v1044
        %v1439 = vmul.f32 %v1311, %v1046
        %v1440 = vmul.f32 %v1312, %v857
        %v1441 = vmul.f32 %v1313, %v859
        %v1442 = vmul.f32 %v1314, %v1050
        %v1443 = vmul.f32 %v1315, %v1052
        %v1444 = vmul.f32 %v1316, %v861
        %v1445 = vmul.f32 %v1317, %v863
        %v1446 = vmul.f32 %v1318, %v1054
        %v1447 = vmul.f32 %v1319, %v1056
        %v1448 = vmul.f32 %v1320, %v867
        %v1449 = vmul.f32 %v1321, %v869
        %v1450 = vmul.f32 %v1322, %v1060
        %v1451 = vmul.f32 %v1323, %v1062
        %v1452 = vmul.f32 %v1324, %v871
        %v1453 = vmul.f32 %v1325, %v873
        %v1454 = vmul.f32 %v1326, %v1064
        %v1455 = vmul.f32 %v1327, %v1066
        %v1456 = vmul.f32 %v1328, %v877
        %v1457 = vmul.f32 %v1329, %v879
        %v1458 = vmul.f32 %v1330, %v1070
        %v1459 = vmul.f32 %v1331, %v1072
        %v1460 = vmul.f32 %v1332, %v881
        %v1461 = vmul.f32 %v1333, %v883
        %v1462 = vmul.f32 %v1334, %v1074
        %v1463 = vmul.f32 %v1335, %v1076
        %v1464 = vmul.f32 %v1336, %v887
        %v1465 = vmul.f32 %v1337, %v889
        %v1466 = vmul.f32 %v1338, %v1080
        %v1467 = vmul.f32 %v1339, %v1082
        %v1468 = vmul.f32 %v1340, %v891
        %v1469 = vmul.f32 %v1341, %v893
        %v1470 = vmul.f32 %v1342, %v1084
        %v1471 = vmul.f32 %v1343, %v1086
        %v1472 = vmul.f32 %v1344, %v737
        %v1473 = vmul.f32 %v1345, %v739
        %v1474 = vmul.f32 %v1346, %v930
        %v1475 = vmul.f32 %v1347, %v932
        %v1476 = vmul.f32 %v1348, %v741
        %v1477 = vmul.f32 %v1349, %v743
        %v1478 = vmul.f32 %v1350, %v934
        %v1479 = vmul.f32 %v1351, %v936
        %v1480 = vmul.f32 %v1352, %v747
        %v1481 = vmul.f32 %v1353, %v749
        %v1482 = vmul.f32 %v1354, %v940
        %v1483 = vmul.f32 %v1355, %v942
        %v1484 = vmul.f32 %v1356, %v751
        %v1485 = vmul.f32 %v1357, %v753
        %v1486 = vmul.f32 %v1358, %v944
        %v1487 = vmul.f32 %v1359, %v946
        %v1488 = vmul.f32 %v1360, %v757
        %v1489 = vmul.f32 %v1361, %v759
        %v1490 = vmul.f32 %v1362, %v950
        %v1491 = vmul.f32 %v1363, %v952
        %v1492 = vmul.f32 %v1364, %v761
        %v1493 = vmul.f32 %v1365, %v763
        %v1494 = vmul.f32 %v1366, %v954
        %v1495 = vmul.f32 %v1367, %v956
        %v1496 = vmul.f32 %v1368, %v767
        %v1497 = vmul.f32 %v1369, %v769
        %v1498 = vmul.f32 %v1370, %v960
        %v1499 = vmul.f32 %v1371, %v962
        %v1500 = vmul.f32 %v1372, %v771
        %v1501 = vmul.f32 %v1373, %v773
        %v1502 = vmul.f32 %v1374, %v964
        %v1503 = vmul.f32 %v1375, %v966
        %v1504 = vmul.f32 %v1376, %v777
        %v1505 = vmul.f32 %v1377, %v779
        %v1506 = vmul.f32 %v1378, %v970
        %v1507 = vmul.f32 %v1379, %v972
        %v1508 = vmul.f32 %v1380, %v781
        %v1509 = vmul.f32 %v1381, %v783
        %v1510 = vmul.f32 %v1382, %v974
        %v1511 = vmul.f32 %v1383, %v976
        %v1512 = vmul.f32 %v1384, %v787
        %v1513 = vmul.f32 %v1385, %v789
        %v1514 = vmul.f32 %v1386, %v980
        %v1515 = vmul.f32 %v1387, %v982
        %v1516 = vmul.f32 %v1388, %v791
        %v1517 = vmul.f32 %v1389, %v793
        %v1518 = vmul.f32 %v1390, %v984
        %v1519 = vmul.f32 %v1391, %v986
        %v1520 = vmul.f32 %v1392, %v797
        %v1521 = vmul.f32 %v1393, %v799
        %v1522 = vmul.f32 %v1394, %v990
        %v1523 = vmul.f32 %v1395, %v992
        %v1524 = vmul.f32 %v1396, %v801
        %v1525 = vmul.f32 %v1397, %v803
        %v1526 = vmul.f32 %v1398, %v994
        %v1527 = vmul.f32 %v1399, %v996
        %v1528 = vmul.f32 %v1400, %v807
        %v1529 = vmul.f32 %v1401, %v809
        %v1530 = vmul.f32 %v1402, %v1000
        %v1531 = vmul.f32 %v1403, %v1002
        %v1532 = vmul.f32 %v1404, %v811
        %v1533 = vmul.f32 %v1405, %v813
        %v1534 = vmul.f32 %v1406, %v1004
        %v1535 = vmul.f32 %v1407, %v1006
        %v1536 = vmul.f32 %v1408, %v817
        %v1537 = vmul.f32 %v1409, %v819
        %v1538 = vmul.f32 %v1410, %v1010
        %v1539 = vmul.f32 %v1411, %v1012
        %v1540 = vmul.f32 %v1412, %v821
        %v1541 = vmul.f32 %v1413, %v823
        %v1542 = vmul.f32 %v1414, %v1014
        %v1543 = vmul.f32 %v1415, %v1016
        %v1544 = vmul.f32 %v1416, %v827
        %v1545 = vmul.f32 %v1417, %v829
        %v1546 = vmul.f32 %v1418, %v1020
        %v1547 = vmul.f32 %v1419, %v1022
        %v1548 = vmul.f32 %v1420, %v831
        %v1549 = vmul.f32 %v1421, %v833
        %v1550 = vmul.f32 %v1422, %v1024
        %v1551 = vmul.f32 %v1423, %v1026
        %v1552 = vmul.f32 %v1424, %v837
        %v1553 = vmul.f32 %v1425, %v839
        %v1554 = vmul.f32 %v1426, %v1030
        %v1555 = vmul.f32 %v1427, %v1032
        %v1556 = vmul.f32 %v1428, %v841
        %v1557 = vmul.f32 %v1429, %v843
        %v1558 = vmul.f32 %v1430, %v1034
        %v1559 = vmul.f32 %v1431, %v1036
        %v1560 = vmul.f32 %v1432, %v847
        %v1561 = vmul.f32 %v1433, %v849
        %v1562 = vmul.f32 %v1434, %v1040
        %v1563 = vmul.f32 %v1435, %v1042
        %v1564 = vmul.f32 %v1436, %v851
        %v1565 = vmul.f32 %v1437, %v853
        %v1566 = vmul.f32 %v1438, %v1044
        %v1567 = vmul.f32 %v1439, %v1046
        %v1568 = vmul.f32 %v1440, %v857
        %v1569 = vmul.f32 %v1441, %v859
        %v1570 = vmul.f32 %v1442, %v1050
        %v1571 = vmul.f32 %v1443, %v1052
        %v1572 = vmul.f32 %v1444, %v861
        %v1573 = vmul.f32 %v1445, %v863
        %v1574 = vmul.f32 %v1446, %v1054
        %v1575 = vmul.f32 %v1447, %v1056
        %v1576 = vmul.f32 %v1448, %v867
        %v1577 = vmul.f32 %v1449, %v869
        %v1578 = vmul.f32 %v1450, %v1060
        %v1579 = vmul.f32 %v1451, %v1062
        %v1580 = vmul.f32 %v1452, %v871
        %v1581 = vmul.f32 %v1453, %v873
        %v1582 = vmul.f32 %v1454, %v1064
        %v1583 = vmul.f32 %v1455, %v1066
        %v1584 = vmul.f32 %v1456, %v877
        %v1585 = vmul.f32 %v1457, %v879
        %v1586 = vmul.f32 %v1458, %v1070
        %v1587 = vmul.f32 %v1459, %v1072
        %v1588 = vmul.f32 %v1460, %v881
        %v1589 = vmul.f32 %v1461, %v883
        %v1590 = vmul.f32 %v1462, %v1074
        %v1591 = vmul.f32 %v1463, %v1076
        %v1592 = vmul.f32 %v1464, %v887
        %v1593 = vmul.f32 %v1465, %v889
        %v1594 = vmul.f32 %v1466, %v1080
        %v1595 = vmul.f32 %v1467, %v1082
        %v1596 = vmul.f32 %v1468, %v891
        %v1597 = vmul.f32 %v1469, %v893
        %v1598 = vmul.f32 %v1470, %v1084
        %v1599 = vmul.f32 %v1471, %v1086
        %v1600 = vadd.f32 %v737, %v1472
        %v1601 = vadd.f32 %v739, %v1473
        %v1602 = vadd.f32 %v930, %v1474
        %v1603 = vadd.f32 %v932, %v1475
        %v1604 = vadd.f32 %v741, %v1476
        %v1605 = vadd.f32 %v743, %v1477
        %v1606 = vadd.f32 %v934, %v1478
        %v1607 = vadd.f32 %v936, %v1479
        %v1608 = vadd.f32 %v747, %v1480
        %v1609 = vadd.f32 %v749, %v1481
        %v1610 = vadd.f32 %v940, %v1482
        %v1611 = vadd.f32 %v942, %v1483
        %v1612 = vadd.f32 %v751, %v1484
        %v1613 = vadd.f32 %v753, %v1485
        %v1614 = vadd.f32 %v944, %v1486
        %v1615 = vadd.f32 %v946, %v1487
        %v1616 = vadd.f32 %v757, %v1488
        %v1617 = vadd.f32 %v759, %v1489
        %v1618 = vadd.f32 %v950, %v1490
        %v1619 = vadd.f32 %v952, %v1491
        %v1620 = vadd.f32 %v761, %v1492
        %v1621 = vadd.f32 %v763, %v1493
        %v1622 = vadd.f32 %v954, %v1494
        %v1623 = vadd.f32 %v956, %v1495
        %v1624 = vadd.f32 %v767, %v1496
        %v1625 = vadd.f32 %v769, %v1497
        %v1626 = vadd.f32 %v960, %v1498
        %v1627 = vadd.f32 %v962, %v1499
        %v1628 = vadd.f32 %v771, %v1500
        %v1629 = vadd.f32 %v773, %v1501
        %v1630 = vadd.f32 %v964, %v1502
        %v1631 = vadd.f32 %v966, %v1503
        %v1632 = vadd.f32 %v777, %v1504
        %v1633 = vadd.f32 %v779, %v1505
        %v1634 = vadd.f32 %v970, %v1506
        %v1635 = vadd.f32 %v972, %v1507
        %v1636 = vadd.f32 %v781, %v1508
        %v1637 = vadd.f32 %v783, %v1509
        %v1638 = vadd.f32 %v974, %v1510
        %v1639 = vadd.f32 %v976, %v1511
        %v1640 = vadd.f32 %v787, %v1512
        %v1641 = vadd.f32 %v789, %v1513
        %v1642 = vadd.f32 %v980, %v1514
        %v1643 = vadd.f32 %v982, %v1515
        %v1644 = vadd.f32 %v791, %v1516
        %v1645 = vadd.f32 %v793, %v1517
        %v1646 = vadd.f32 %v984, %v1518
        %v1647 = vadd.f32 %v986, %v1519
        %v1648 = vadd.f32 %v797, %v1520
        %v1649 = vadd.f32 %v799, %v1521
        %v1650 = vadd.f32 %v990, %v1522
        %v1651 = vadd.f32 %v992, %v1523
        %v1652 = vadd.f32 %v801, %v1524
        %v1653 = vadd.f32 %v803, %v1525
        %v1654 = vadd.f32 %v994, %v1526
        %v1655 = vadd.f32 %v996, %v1527
        %v1656 = vadd.f32 %v807, %v1528
        %v1657 = vadd.f32 %v809, %v1529
        %v1658 = vadd.f32 %v1000, %v1530
        %v1659 = vadd.f32 %v1002, %v1531
        %v1660 = vadd.f32 %v811, %v1532
        %v1661 = vadd.f32 %v813, %v1533
        %v1662 = vadd.f32 %v1004, %v1534
        %v1663 = vadd.f32 %v1006, %v1535
        %v1664 = vadd.f32 %v817, %v1536
        %v1665 = vadd.f32 %v819, %v1537
        %v1666 = vadd.f32 %v1010, %v1538
        %v1667 = vadd.f32 %v1012, %v1539
        %v1668 = vadd.f32 %v821, %v1540
        %v1669 = vadd.f32 %v823, %v1541
        %v1670 = vadd.f32 %v1014, %v1542
        %v1671 = vadd.f32 %v1016, %v1543
        %v1672 = vadd.f32 %v827, %v1544
        %v1673 = vadd.f32 %v829, %v1545
        %v1674 = vadd.f32 %v1020, %v1546
        %v1675 = vadd.f32 %v1022, %v1547
        %v1676 = vadd.f32 %v831, %v1548
        %v1677 = vadd.f32 %v833, %v1549
        %v1678 = vadd.f32 %v1024, %v1550
        %v1679 = vadd.f32 %v1026, %v1551
        %v1680 = vadd.f32 %v837, %v1552
        %v1681 = vadd.f32 %v839, %v1553
        %v1682 = vadd.f32 %v1030, %v1554
        %v1683 = vadd.f32 %v1032, %v1555
        %v1684 = vadd.f32 %v841, %v1556
        %v1685 = vadd.f32 %v843, %v1557
        %v1686 = vadd.f32 %v1034, %v1558
        %v1687 = vadd.f32 %v1036, %v1559
        %v1688 = vadd.f32 %v847, %v1560
        %v1689 = vadd.f32 %v849, %v1561
        %v1690 = vadd.f32 %v1040, %v1562
        %v1691 = vadd.f32 %v1042, %v1563
        %v1692 = vadd.f32 %v851, %v1564
        %v1693 = vadd.f32 %v853, %v1565
        %v1694 = vadd.f32 %v1044, %v1566
        %v1695 = vadd.f32 %v1046, %v1567
        %v1696 = vadd.f32 %v857, %v1568
        %v1697 = vadd.f32 %v859, %v1569
        %v1698 = vadd.f32 %v1050, %v1570
        %v1699 = vadd.f32 %v1052, %v1571
        %v1700 = vadd.f32 %v861, %v1572
        %v1701 = vadd.f32 %v863, %v1573
        %v1702 = vadd.f32 %v1054, %v1574
        %v1703 = vadd.f32 %v1056, %v1575
        %v1704 = vadd.f32 %v867, %v1576
        %v1705 = vadd.f32 %v869, %v1577
        %v1706 = vadd.f32 %v1060, %v1578
        %v1707 = vadd.f32 %v1062, %v1579
        %v1708 = vadd.f32 %v871, %v1580
        %v1709 = vadd.f32 %v873, %v1581
        %v1710 = vadd.f32 %v1064, %v1582
        %v1711 = vadd.f32 %v1066, %v1583
        %v1712 = vadd.f32 %v877, %v1584
        %v1713 = vadd.f32 %v879, %v1585
        %v1714 = vadd.f32 %v1070, %v1586
        %v1715 = vadd.f32 %v1072, %v1587
        %v1716 = vadd.f32 %v881, %v1588
        %v1717 = vadd.f32 %v883, %v1589
        %v1718 = vadd.f32 %v1074, %v1590
        %v1719 = vadd.f32 %v1076, %v1591
        %v1720 = vadd.f32 %v887, %v1592
        %v1721 = vadd.f32 %v889, %v1593
        %v1722 = vadd.f32 %v1080, %v1594
        %v1723 = vadd.f32 %v1082, %v1595
        %v1724 = vadd.f32 %v891, %v1596
        %v1725 = vadd.f32 %v893, %v1597
        %v1726 = vadd.f32 %v1084, %v1598
        %v1727 = vadd.f32 %v1086, %v1599
        %v1728 = vmul.f32 %v1600, 0.7978846
        %v1729 = vmul.f32 %v1601, 0.7978846
        %v1730 = vmul.f32 %v1602, 0.7978846
        %v1731 = vmul.f32 %v1603, 0.7978846
        %v1732 = vmul.f32 %v1604, 0.7978846
        %v1733 = vmul.f32 %v1605, 0.7978846
        %v1734 = vmul.f32 %v1606, 0.7978846
        %v1735 = vmul.f32 %v1607, 0.7978846
        %v1736 = vmul.f32 %v1608, 0.7978846
        %v1737 = vmul.f32 %v1609, 0.7978846
        %v1738 = vmul.f32 %v1610, 0.7978846
        %v1739 = vmul.f32 %v1611, 0.7978846
        %v1740 = vmul.f32 %v1612, 0.7978846
        %v1741 = vmul.f32 %v1613, 0.7978846
        %v1742 = vmul.f32 %v1614, 0.7978846
        %v1743 = vmul.f32 %v1615, 0.7978846
        %v1744 = vmul.f32 %v1616, 0.7978846
        %v1745 = vmul.f32 %v1617, 0.7978846
        %v1746 = vmul.f32 %v1618, 0.7978846
        %v1747 = vmul.f32 %v1619, 0.7978846
        %v1748 = vmul.f32 %v1620, 0.7978846
        %v1749 = vmul.f32 %v1621, 0.7978846
        %v1750 = vmul.f32 %v1622, 0.7978846
        %v1751 = vmul.f32 %v1623, 0.7978846
        %v1752 = vmul.f32 %v1624, 0.7978846
        %v1753 = vmul.f32 %v1625, 0.7978846
        %v1754 = vmul.f32 %v1626, 0.7978846
        %v1755 = vmul.f32 %v1627, 0.7978846
        %v1756 = vmul.f32 %v1628, 0.7978846
        %v1757 = vmul.f32 %v1629, 0.7978846
        %v1758 = vmul.f32 %v1630, 0.7978846
        %v1759 = vmul.f32 %v1631, 0.7978846
        %v1760 = vmul.f32 %v1632, 0.7978846
        %v1761 = vmul.f32 %v1633, 0.7978846
        %v1762 = vmul.f32 %v1634, 0.7978846
        %v1763 = vmul.f32 %v1635, 0.7978846
        %v1764 = vmul.f32 %v1636, 0.7978846
        %v1765 = vmul.f32 %v1637, 0.7978846
        %v1766 = vmul.f32 %v1638, 0.7978846
        %v1767 = vmul.f32 %v1639, 0.7978846
        %v1768 = vmul.f32 %v1640, 0.7978846
        %v1769 = vmul.f32 %v1641, 0.7978846
        %v1770 = vmul.f32 %v1642, 0.7978846
        %v1771 = vmul.f32 %v1643, 0.7978846
        %v1772 = vmul.f32 %v1644, 0.7978846
        %v1773 = vmul.f32 %v1645, 0.7978846
        %v1774 = vmul.f32 %v1646, 0.7978846
        %v1775 = vmul.f32 %v1647, 0.7978846
        %v1776 = vmul.f32 %v1648, 0.7978846
        %v1777 = vmul.f32 %v1649, 0.7978846
        %v1778 = vmul.f32 %v1650, 0.7978846
        %v1779 = vmul.f32 %v1651, 0.7978846
        %v1780 = vmul.f32 %v1652, 0.7978846
        %v1781 = vmul.f32 %v1653, 0.7978846
        %v1782 = vmul.f32 %v1654, 0.7978846
        %v1783 = vmul.f32 %v1655, 0.7978846
        %v1784 = vmul.f32 %v1656, 0.7978846
        %v1785 = vmul.f32 %v1657, 0.7978846
        %v1786 = vmul.f32 %v1658, 0.7978846
        %v1787 = vmul.f32 %v1659, 0.7978846
        %v1788 = vmul.f32 %v1660, 0.7978846
        %v1789 = vmul.f32 %v1661, 0.7978846
        %v1790 = vmul.f32 %v1662, 0.7978846
        %v1791 = vmul.f32 %v1663, 0.7978846
        %v1792 = vmul.f32 %v1664, 0.7978846
        %v1793 = vmul.f32 %v1665, 0.7978846
        %v1794 = vmul.f32 %v1666, 0.7978846
        %v1795 = vmul.f32 %v1667, 0.7978846
        %v1796 = vmul.f32 %v1668, 0.7978846
        %v1797 = vmul.f32 %v1669, 0.7978846
        %v1798 = vmul.f32 %v1670, 0.7978846
        %v1799 = vmul.f32 %v1671, 0.7978846
        %v1800 = vmul.f32 %v1672, 0.7978846
        %v1801 = vmul.f32 %v1673, 0.7978846
        %v1802 = vmul.f32 %v1674, 0.7978846
        %v1803 = vmul.f32 %v1675, 0.7978846
        %v1804 = vmul.f32 %v1676, 0.7978846
        %v1805 = vmul.f32 %v1677, 0.7978846
        %v1806 = vmul.f32 %v1678, 0.7978846
        %v1807 = vmul.f32 %v1679, 0.7978846
        %v1808 = vmul.f32 %v1680, 0.7978846
        %v1809 = vmul.f32 %v1681, 0.7978846
        %v1810 = vmul.f32 %v1682, 0.7978846
        %v1811 = vmul.f32 %v1683, 0.7978846
        %v1812 = vmul.f32 %v1684, 0.7978846
        %v1813 = vmul.f32 %v1685, 0.7978846
        %v1814 = vmul.f32 %v1686, 0.7978846
        %v1815 = vmul.f32 %v1687, 0.7978846
        %v1816 = vmul.f32 %v1688, 0.7978846
        %v1817 = vmul.f32 %v1689, 0.7978846
        %v1818 = vmul.f32 %v1690, 0.7978846
        %v1819 = vmul.f32 %v1691, 0.7978846
        %v1820 = vmul.f32 %v1692, 0.7978846
        %v1821 = vmul.f32 %v1693, 0.7978846
        %v1822 = vmul.f32 %v1694, 0.7978846
        %v1823 = vmul.f32 %v1695, 0.7978846
        %v1824 = vmul.f32 %v1696, 0.7978846
        %v1825 = vmul.f32 %v1697, 0.7978846
        %v1826 = vmul.f32 %v1698, 0.7978846
        %v1827 = vmul.f32 %v1699, 0.7978846
        %v1828 = vmul.f32 %v1700, 0.7978846
        %v1829 = vmul.f32 %v1701, 0.7978846
        %v1830 = vmul.f32 %v1702, 0.7978846
        %v1831 = vmul.f32 %v1703, 0.7978846
        %v1832 = vmul.f32 %v1704, 0.7978846
        %v1833 = vmul.f32 %v1705, 0.7978846
        %v1834 = vmul.f32 %v1706, 0.7978846
        %v1835 = vmul.f32 %v1707, 0.7978846
        %v1836 = vmul.f32 %v1708, 0.7978846
        %v1837 = vmul.f32 %v1709, 0.7978846
        %v1838 = vmul.f32 %v1710, 0.7978846
        %v1839 = vmul.f32 %v1711, 0.7978846
        %v1840 = vmul.f32 %v1712, 0.7978846
        %v1841 = vmul.f32 %v1713, 0.7978846
        %v1842 = vmul.f32 %v1714, 0.7978846
        %v1843 = vmul.f32 %v1715, 0.7978846
        %v1844 = vmul.f32 %v1716, 0.7978846
        %v1845 = vmul.f32 %v1717, 0.7978846
        %v1846 = vmul.f32 %v1718, 0.7978846
        %v1847 = vmul.f32 %v1719, 0.7978846
        %v1848 = vmul.f32 %v1720, 0.7978846
        %v1849 = vmul.f32 %v1721, 0.7978846
        %v1850 = vmul.f32 %v1722, 0.7978846
        %v1851 = vmul.f32 %v1723, 0.7978846
        %v1852 = vmul.f32 %v1724, 0.7978846
        %v1853 = vmul.f32 %v1725, 0.7978846
        %v1854 = vmul.f32 %v1726, 0.7978846
        %v1855 = vmul.f32 %v1727, 0.7978846
        %v1856 = vtanh.pop %v1728
        %v1857 = vtanh.pop %v1729
        %v1858 = vtanh.pop %v1730
        %v1859 = vtanh.pop %v1731
        %v1860 = vtanh.pop %v1732
        %v1861 = vtanh.pop %v1733
        %v1862 = vtanh.pop %v1734
        %v1863 = vtanh.pop %v1735
        %v1864 = vtanh.pop %v1736
        %v1865 = vtanh.pop %v1737
        %v1866 = vtanh.pop %v1738
        %v1867 = vtanh.pop %v1739
        %v1868 = vtanh.pop %v1740
        %v1869 = vtanh.pop %v1741
        %v1870 = vtanh.pop %v1742
        %v1871 = vtanh.pop %v1743
        %v1872 = vtanh.pop %v1744
        %v1873 = vtanh.pop %v1745
        %v1874 = vtanh.pop %v1746
        %v1875 = vtanh.pop %v1747
        %v1876 = vtanh.pop %v1748
        %v1877 = vtanh.pop %v1749
        %v1878 = vtanh.pop %v1750
        %v1879 = vtanh.pop %v1751
        %v1880 = vtanh.pop %v1752
        %v1881 = vtanh.pop %v1753
        %v1882 = vtanh.pop %v1754
        %v1883 = vtanh.pop %v1755
        %v1884 = vtanh.pop %v1756
        %v1885 = vtanh.pop %v1757
        %v1886 = vtanh.pop %v1758
        %v1887 = vtanh.pop %v1759
        %v1888 = vtanh.pop %v1760
        %v1889 = vtanh.pop %v1761
        %v1890 = vtanh.pop %v1762
        %v1891 = vtanh.pop %v1763
        %v1892 = vtanh.pop %v1764
        %v1893 = vtanh.pop %v1765
        %v1894 = vtanh.pop %v1766
        %v1895 = vtanh.pop %v1767
        %v1896 = vtanh.pop %v1768
        %v1897 = vtanh.pop %v1769
        %v1898 = vtanh.pop %v1770
        %v1899 = vtanh.pop %v1771
        %v1900 = vtanh.pop %v1772
        %v1901 = vtanh.pop %v1773
        %v1902 = vtanh.pop %v1774
        %v1903 = vtanh.pop %v1775
        %v1904 = vtanh.pop %v1776
        %v1905 = vtanh.pop %v1777
        %v1906 = vtanh.pop %v1778
        %v1907 = vtanh.pop %v1779
        %v1908 = vtanh.pop %v1780
        %v1909 = vtanh.pop %v1781
        %v1910 = vtanh.pop %v1782
        %v1911 = vtanh.pop %v1783
        %v1912 = vtanh.pop %v1784
        %v1913 = vtanh.pop %v1785
        %v1914 = vtanh.pop %v1786
        %v1915 = vtanh.pop %v1787
        %v1916 = vtanh.pop %v1788
        %v1917 = vtanh.pop %v1789
        %v1918 = vtanh.pop %v1790
        %v1919 = vtanh.pop %v1791
        %v1920 = vtanh.pop %v1792
        %v1921 = vtanh.pop %v1793
        %v1922 = vtanh.pop %v1794
        %v1923 = vtanh.pop %v1795
        %v1924 = vtanh.pop %v1796
        %v1925 = vtanh.pop %v1797
        %v1926 = vtanh.pop %v1798
        %v1927 = vtanh.pop %v1799
        %v1928 = vtanh.pop %v1800
        %v1929 = vtanh.pop %v1801
        %v1930 = vtanh.pop %v1802
        %v1931 = vtanh.pop %v1803
        %v1932 = vtanh.pop %v1804
        %v1933 = vtanh.pop %v1805
        %v1934 = vtanh.pop %v1806
        %v1935 = vtanh.pop %v1807
        %v1936 = vtanh.pop %v1808
        %v1937 = vtanh.pop %v1809
        %v1938 = vtanh.pop %v1810
        %v1939 = vtanh.pop %v1811
        %v1940 = vtanh.pop %v1812
        %v1941 = vtanh.pop %v1813
        %v1942 = vtanh.pop %v1814
        %v1943 = vtanh.pop %v1815
        %v1944 = vtanh.pop %v1816
        %v1945 = vtanh.pop %v1817
        %v1946 = vtanh.pop %v1818
        %v1947 = vtanh.pop %v1819
        %v1948 = vtanh.pop %v1820
        %v1949 = vtanh.pop %v1821
        %v1950 = vtanh.pop %v1822
        %v1951 = vtanh.pop %v1823
        %v1952 = vtanh.pop %v1824
        %v1953 = vtanh.pop %v1825
        %v1954 = vtanh.pop %v1826
        %v1955 = vtanh.pop %v1827
        %v1956 = vtanh.pop %v1828
        %v1957 = vtanh.pop %v1829
        %v1958 = vtanh.pop %v1830
        %v1959 = vtanh.pop %v1831
        %v1960 = vtanh.pop %v1832
        %v1961 = vtanh.pop %v1833
        %v1962 = vtanh.pop %v1834
        %v1963 = vtanh.pop %v1835
        %v1964 = vtanh.pop %v1836
        %v1965 = vtanh.pop %v1837
        %v1966 = vtanh.pop %v1838
        %v1967 = vtanh.pop %v1839
        %v1968 = vtanh.pop %v1840
        %v1969 = vtanh.pop %v1841
        %v1970 = vtanh.pop %v1842
        %v1971 = vtanh.pop %v1843
        %v1972 = vtanh.pop %v1844
        %v1973 = vtanh.pop %v1845
        %v1974 = vtanh.pop %v1846
        %v1975 = vtanh.pop %v1847
        %v1976 = vtanh.pop %v1848
        %v1977 = vtanh.pop %v1849
        %v1978 = vtanh.pop %v1850
        %v1979 = vtanh.pop %v1851
        %v1980 = vtanh.pop %v1852
        %v1981 = vtanh.pop %v1853
        %v1982 = vtanh.pop %v1854
        %v1983 = vtanh.pop %v1855
        %v1984 = vadd.f32 %v1856, 1.0
        %v1985 = vadd.f32 %v1857, 1.0
        %v1986 = vadd.f32 %v1858, 1.0
        %v1987 = vadd.f32 %v1859, 1.0
        %v1988 = vadd.f32 %v1860, 1.0
        %v1989 = vadd.f32 %v1861, 1.0
        %v1990 = vadd.f32 %v1862, 1.0
        %v1991 = vadd.f32 %v1863, 1.0
        %v1992 = vadd.f32 %v1864, 1.0
        %v1993 = vadd.f32 %v1865, 1.0
        %v1994 = vadd.f32 %v1866, 1.0
        %v1995 = vadd.f32 %v1867, 1.0
        %v1996 = vadd.f32 %v1868, 1.0
        %v1997 = vadd.f32 %v1869, 1.0
        %v1998 = vadd.f32 %v1870, 1.0
        %v1999 = vadd.f32 %v1871, 1.0
        %v2000 = vadd.f32 %v1872, 1.0
        %v2001 = vadd.f32 %v1873, 1.0
        %v2002 = vadd.f32 %v1874, 1.0
        %v2003 = vadd.f32 %v1875, 1.0
        %v2004 = vadd.f32 %v1876, 1.0
        %v2005 = vadd.f32 %v1877, 1.0
        %v2006 = vadd.f32 %v1878, 1.0
        %v2007 = vadd.f32 %v1879, 1.0
        %v2008 = vadd.f32 %v1880, 1.0
        %v2009 = vadd.f32 %v1881, 1.0
        %v2010 = vadd.f32 %v1882, 1.0
        %v2011 = vadd.f32 %v1883, 1.0
        %v2012 = vadd.f32 %v1884, 1.0
        %v2013 = vadd.f32 %v1885, 1.0
        %v2014 = vadd.f32 %v1886, 1.0
        %v2015 = vadd.f32 %v1887, 1.0
        %v2016 = vadd.f32 %v1888, 1.0
        %v2017 = vadd.f32 %v1889, 1.0
        %v2018 = vadd.f32 %v1890, 1.0
        %v2019 = vadd.f32 %v1891, 1.0
        %v2020 = vadd.f32 %v1892, 1.0
        %v2021 = vadd.f32 %v1893, 1.0
        %v2022 = vadd.f32 %v1894, 1.0
        %v2023 = vadd.f32 %v1895, 1.0
        %v2024 = vadd.f32 %v1896, 1.0
        %v2025 = vadd.f32 %v1897, 1.0
        %v2026 = vadd.f32 %v1898, 1.0
        %v2027 = vadd.f32 %v1899, 1.0
        %v2028 = vadd.f32 %v1900, 1.0
        %v2029 = vadd.f32 %v1901, 1.0
        %v2030 = vadd.f32 %v1902, 1.0
        %v2031 = vadd.f32 %v1903, 1.0
        %v2032 = vadd.f32 %v1904, 1.0
        %v2033 = vadd.f32 %v1905, 1.0
        %v2034 = vadd.f32 %v1906, 1.0
        %v2035 = vadd.f32 %v1907, 1.0
        %v2036 = vadd.f32 %v1908, 1.0
        %v2037 = vadd.f32 %v1909, 1.0
        %v2038 = vadd.f32 %v1910, 1.0
        %v2039 = vadd.f32 %v1911, 1.0
        %v2040 = vadd.f32 %v1912, 1.0
        %v2041 = vadd.f32 %v1913, 1.0
        %v2042 = vadd.f32 %v1914, 1.0
        %v2043 = vadd.f32 %v1915, 1.0
        %v2044 = vadd.f32 %v1916, 1.0
        %v2045 = vadd.f32 %v1917, 1.0
        %v2046 = vadd.f32 %v1918, 1.0
        %v2047 = vadd.f32 %v1919, 1.0
        %v2048 = vadd.f32 %v1920, 1.0
        %v2049 = vadd.f32 %v1921, 1.0
        %v2050 = vadd.f32 %v1922, 1.0
        %v2051 = vadd.f32 %v1923, 1.0
        %v2052 = vadd.f32 %v1924, 1.0
        %v2053 = vadd.f32 %v1925, 1.0
        %v2054 = vadd.f32 %v1926, 1.0
        %v2055 = vadd.f32 %v1927, 1.0
        %v2056 = vadd.f32 %v1928, 1.0
        %v2057 = vadd.f32 %v1929, 1.0
        %v2058 = vadd.f32 %v1930, 1.0
        %v2059 = vadd.f32 %v1931, 1.0
        %v2060 = vadd.f32 %v1932, 1.0
        %v2061 = vadd.f32 %v1933, 1.0
        %v2062 = vadd.f32 %v1934, 1.0
        %v2063 = vadd.f32 %v1935, 1.0
        %v2064 = vadd.f32 %v1936, 1.0
        %v2065 = vadd.f32 %v1937, 1.0
        %v2066 = vadd.f32 %v1938, 1.0
        %v2067 = vadd.f32 %v1939, 1.0
        %v2068 = vadd.f32 %v1940, 1.0
        %v2069 = vadd.f32 %v1941, 1.0
        %v2070 = vadd.f32 %v1942, 1.0
        %v2071 = vadd.f32 %v1943, 1.0
        %v2072 = vadd.f32 %v1944, 1.0
        %v2073 = vadd.f32 %v1945, 1.0
        %v2074 = vadd.f32 %v1946, 1.0
        %v2075 = vadd.f32 %v1947, 1.0
        %v2076 = vadd.f32 %v1948, 1.0
        %v2077 = vadd.f32 %v1949, 1.0
        %v2078 = vadd.f32 %v1950, 1.0
        %v2079 = vadd.f32 %v1951, 1.0
        %v2080 = vadd.f32 %v1952, 1.0
        %v2081 = vadd.f32 %v1953, 1.0
        %v2082 = vadd.f32 %v1954, 1.0
        %v2083 = vadd.f32 %v1955, 1.0
        %v2084 = vadd.f32 %v1956, 1.0
        %v2085 = vadd.f32 %v1957, 1.0
        %v2086 = vadd.f32 %v1958, 1.0
        %v2087 = vadd.f32 %v1959, 1.0
        %v2088 = vadd.f32 %v1960, 1.0
        %v2089 = vadd.f32 %v1961, 1.0
        %v2090 = vadd.f32 %v1962, 1.0
        %v2091 = vadd.f32 %v1963, 1.0
        %v2092 = vadd.f32 %v1964, 1.0
        %v2093 = vadd.f32 %v1965, 1.0
        %v2094 = vadd.f32 %v1966, 1.0
        %v2095 = vadd.f32 %v1967, 1.0
        %v2096 = vadd.f32 %v1968, 1.0
        %v2097 = vadd.f32 %v1969, 1.0
        %v2098 = vadd.f32 %v1970, 1.0
        %v2099 = vadd.f32 %v1971, 1.0
        %v2100 = vadd.f32 %v1972, 1.0
        %v2101 = vadd.f32 %v1973, 1.0
        %v2102 = vadd.f32 %v1974, 1.0
        %v2103 = vadd.f32 %v1975, 1.0
        %v2104 = vadd.f32 %v1976, 1.0
        %v2105 = vadd.f32 %v1977, 1.0
        %v2106 = vadd.f32 %v1978, 1.0
        %v2107 = vadd.f32 %v1979, 1.0
        %v2108 = vadd.f32 %v1980, 1.0
        %v2109 = vadd.f32 %v1981, 1.0
        %v2110 = vadd.f32 %v1982, 1.0
        %v2111 = vadd.f32 %v1983, 1.0
        %v2112 = vmul.f32 %v1088, %v1984
        %v2113 = vmul.f32 %v1089, %v1985
        %v2114 = vmul.f32 %v1090, %v1986
        %v2115 = vmul.f32 %v1091, %v1987
        %v2116 = vmul.f32 %v1092, %v1988
        %v2117 = vmul.f32 %v1093, %v1989
        %v2118 = vmul.f32 %v1094, %v1990
        %v2119 = vmul.f32 %v1095, %v1991
        %v2120 = vmul.f32 %v1096, %v1992
        %v2121 = vmul.f32 %v1097, %v1993
        %v2122 = vmul.f32 %v1098, %v1994
        %v2123 = vmul.f32 %v1099, %v1995
        %v2124 = vmul.f32 %v1100, %v1996
        %v2125 = vmul.f32 %v1101, %v1997
        %v2126 = vmul.f32 %v1102, %v1998
        %v2127 = vmul.f32 %v1103, %v1999
        %v2128 = vmul.f32 %v1104, %v2000
        %v2129 = vmul.f32 %v1105, %v2001
        %v2130 = vmul.f32 %v1106, %v2002
        %v2131 = vmul.f32 %v1107, %v2003
        %v2132 = vmul.f32 %v1108, %v2004
        %v2133 = vmul.f32 %v1109, %v2005
        %v2134 = vmul.f32 %v1110, %v2006
        %v2135 = vmul.f32 %v1111, %v2007
        %v2136 = vmul.f32 %v1112, %v2008
        %v2137 = vmul.f32 %v1113, %v2009
        %v2138 = vmul.f32 %v1114, %v2010
        %v2139 = vmul.f32 %v1115, %v2011
        %v2140 = vmul.f32 %v1116, %v2012
        %v2141 = vmul.f32 %v1117, %v2013
        %v2142 = vmul.f32 %v1118, %v2014
        %v2143 = vmul.f32 %v1119, %v2015
        %v2144 = vmul.f32 %v1120, %v2016
        %v2145 = vmul.f32 %v1121, %v2017
        %v2146 = vmul.f32 %v1122, %v2018
        %v2147 = vmul.f32 %v1123, %v2019
        %v2148 = vmul.f32 %v1124, %v2020
        %v2149 = vmul.f32 %v1125, %v2021
        %v2150 = vmul.f32 %v1126, %v2022
        %v2151 = vmul.f32 %v1127, %v2023
        %v2152 = vmul.f32 %v1128, %v2024
        %v2153 = vmul.f32 %v1129, %v2025
        %v2154 = vmul.f32 %v1130, %v2026
        %v2155 = vmul.f32 %v1131, %v2027
        %v2156 = vmul.f32 %v1132, %v2028
        %v2157 = vmul.f32 %v1133, %v2029
        %v2158 = vmul.f32 %v1134, %v2030
        %v2159 = vmul.f32 %v1135, %v2031
        %v2160 = vmul.f32 %v1136, %v2032
        %v2161 = vmul.f32 %v1137, %v2033
        %v2162 = vmul.f32 %v1138, %v2034
        %v2163 = vmul.f32 %v1139, %v2035
        %v2164 = vmul.f32 %v1140, %v2036
        %v2165 = vmul.f32 %v1141, %v2037
        %v2166 = vmul.f32 %v1142, %v2038
        %v2167 = vmul.f32 %v1143, %v2039
        %v2168 = vmul.f32 %v1144, %v2040
        %v2169 = vmul.f32 %v1145, %v2041
        %v2170 = vmul.f32 %v1146, %v2042
        %v2171 = vmul.f32 %v1147, %v2043
        %v2172 = vmul.f32 %v1148, %v2044
        %v2173 = vmul.f32 %v1149, %v2045
        %v2174 = vmul.f32 %v1150, %v2046
        %v2175 = vmul.f32 %v1151, %v2047
        %v2176 = vmul.f32 %v1152, %v2048
        %v2177 = vmul.f32 %v1153, %v2049
        %v2178 = vmul.f32 %v1154, %v2050
        %v2179 = vmul.f32 %v1155, %v2051
        %v2180 = vmul.f32 %v1156, %v2052
        %v2181 = vmul.f32 %v1157, %v2053
        %v2182 = vmul.f32 %v1158, %v2054
        %v2183 = vmul.f32 %v1159, %v2055
        %v2184 = vmul.f32 %v1160, %v2056
        %v2185 = vmul.f32 %v1161, %v2057
        %v2186 = vmul.f32 %v1162, %v2058
        %v2187 = vmul.f32 %v1163, %v2059
        %v2188 = vmul.f32 %v1164, %v2060
        %v2189 = vmul.f32 %v1165, %v2061
        %v2190 = vmul.f32 %v1166, %v2062
        %v2191 = vmul.f32 %v1167, %v2063
        %v2192 = vmul.f32 %v1168, %v2064
        %v2193 = vmul.f32 %v1169, %v2065
        %v2194 = vmul.f32 %v1170, %v2066
        %v2195 = vmul.f32 %v1171, %v2067
        %v2196 = vmul.f32 %v1172, %v2068
        %v2197 = vmul.f32 %v1173, %v2069
        %v2198 = vmul.f32 %v1174, %v2070
        %v2199 = vmul.f32 %v1175, %v2071
        %v2200 = vmul.f32 %v1176, %v2072
        %v2201 = vmul.f32 %v1177, %v2073
        %v2202 = vmul.f32 %v1178, %v2074
        %v2203 = vmul.f32 %v1179, %v2075
        %v2204 = vmul.f32 %v1180, %v2076
        %v2205 = vmul.f32 %v1181, %v2077
        %v2206 = vmul.f32 %v1182, %v2078
        %v2207 = vmul.f32 %v1183, %v2079
        %v2208 = vmul.f32 %v1184, %v2080
        %v2209 = vmul.f32 %v1185, %v2081
        %v2210 = vmul.f32 %v1186, %v2082
        %v2211 = vmul.f32 %v1187, %v2083
        %v2212 = vmul.f32 %v1188, %v2084
        %v2213 = vmul.f32 %v1189, %v2085
        %v2214 = vmul.f32 %v1190, %v2086
        %v2215 = vmul.f32 %v1191, %v2087
        %v2216 = vmul.f32 %v1192, %v2088
        %v2217 = vmul.f32 %v1193, %v2089
        %v2218 = vmul.f32 %v1194, %v2090
        %v2219 = vmul.f32 %v1195, %v2091
        %v2220 = vmul.f32 %v1196, %v2092
        %v2221 = vmul.f32 %v1197, %v2093
        %v2222 = vmul.f32 %v1198, %v2094
        %v2223 = vmul.f32 %v1199, %v2095
        %v2224 = vmul.f32 %v1200, %v2096
        %v2225 = vmul.f32 %v1201, %v2097
        %v2226 = vmul.f32 %v1202, %v2098
        %v2227 = vmul.f32 %v1203, %v2099
        %v2228 = vmul.f32 %v1204, %v2100
        %v2229 = vmul.f32 %v1205, %v2101
        %v2230 = vmul.f32 %v1206, %v2102
        %v2231 = vmul.f32 %v1207, %v2103
        %v2232 = vmul.f32 %v1208, %v2104
        %v2233 = vmul.f32 %v1209, %v2105
        %v2234 = vmul.f32 %v1210, %v2106
        %v2235 = vmul.f32 %v1211, %v2107
        %v2236 = vmul.f32 %v1212, %v2108
        %v2237 = vmul.f32 %v1213, %v2109
        %v2238 = vmul.f32 %v1214, %v2110
        %v2239 = vmul.f32 %v1215, %v2111
        %v2240 = vld [vmem:[#allocation2] sm:$0xff]
        %v2241 = vld [vmem:[#allocation2 + $0x8] sm:$0xff]
        %v2242 = vld [vmem:[#allocation2 + $0x10] sm:$0xff]
        %v2243 = vld [vmem:[#allocation2 + $0x18] sm:$0xff]
        %v2244 = vld [vmem:[#allocation2 + $0x20] sm:$0xff]
        %v2245 = vld [vmem:[#allocation2 + $0x28] sm:$0xff]
        %v2246 = vld [vmem:[#allocation2 + $0x30] sm:$0xff]
        %v2247 = vld [vmem:[#allocation2 + $0x38] sm:$0xff]
        %v2248 = vld [vmem:[#allocation2 + $0x40] sm:$0xff]
        %v2249 = vld [vmem:[#allocation2 + $0x48] sm:$0xff]
        %v2250 = vld [vmem:[#allocation2 + $0x50] sm:$0xff]
        %v2251 = vld [vmem:[#allocation2 + $0x58] sm:$0xff]
        %v2252 = vld [vmem:[#allocation2 + $0x60] sm:$0xff]
        %v2253 = vld [vmem:[#allocation2 + $0x68] sm:$0xff]
        %v2254 = vld [vmem:[#allocation2 + $0x70] sm:$0xff]
        %v2255 = vld [vmem:[#allocation2 + $0x78] sm:$0xff]
        %v2256 = vld [vmem:[#allocation2 + $0x80] sm:$0xff]
        %v2257 = vld [vmem:[#allocation2 + $0x88] sm:$0xff]
        %v2258 = vld [vmem:[#allocation2 + $0x90] sm:$0xff]
        %v2259 = vld [vmem:[#allocation2 + $0x98] sm:$0xff]
        %v2260 = vld [vmem:[#allocation2 + $0xa0] sm:$0xff]
        %v2261 = vld [vmem:[#allocation2 + $0xa8] sm:$0xff]
        %v2262 = vld [vmem:[#allocation2 + $0xb0] sm:$0xff]
        %v2263 = vld [vmem:[#allocation2 + $0xb8] sm:$0xff]
        %v2264 = vld [vmem:[#allocation2 + $0xc0] sm:$0xff]
        %v2265 = vld [vmem:[#allocation2 + $0xc8] sm:$0xff]
        %v2266 = vld [vmem:[#allocation2 + $0xd0] sm:$0xff]
        %v2267 = vld [vmem:[#allocation2 + $0xd8] sm:$0xff]
        %v2268 = vld [vmem:[#allocation2 + $0xe0] sm:$0xff]
        %v2269 = vld [vmem:[#allocation2 + $0xe8] sm:$0xff]
        %v2270 = vld [vmem:[#allocation2 + $0xf0] sm:$0xff]
        %v2271 = vld [vmem:[#allocation2 + $0xf8] sm:$0xff]
        %v2272 = vpack.c.bf16 %v2116, %v2112
        %v2273 = vpack.c.bf16 %v2117, %v2113
        %v2274 = vpack.c.bf16 %v2118, %v2114
        %v2275 = vpack.c.bf16 %v2119, %v2115
        %v2276 = vpack.c.bf16 %v2124, %v2120
        %v2277 = vpack.c.bf16 %v2125, %v2121
        %v2278 = vpack.c.bf16 %v2126, %v2122
        %v2279 = vpack.c.bf16 %v2127, %v2123
        %v2280 = vpack.c.bf16 %v2132, %v2128
        %v2281 = vpack.c.bf16 %v2133, %v2129
        %v2282 = vpack.c.bf16 %v2134, %v2130
        %v2283 = vpack.c.bf16 %v2135, %v2131
        %v2284 = vpack.c.bf16 %v2140, %v2136
        %v2285 = vpack.c.bf16 %v2141, %v2137
        %v2286 = vpack.c.bf16 %v2142, %v2138
        %v2287 = vpack.c.bf16 %v2143, %v2139
        %v2288 = vpack.c.bf16 %v2148, %v2144
        %v2289 = vpack.c.bf16 %v2149, %v2145
        %v2290 = vpack.c.bf16 %v2150, %v2146
        %v2291 = vpack.c.bf16 %v2151, %v2147
        %v2292 = vpack.c.bf16 %v2156, %v2152
        %v2293 = vpack.c.bf16 %v2157, %v2153
        %v2294 = vpack.c.bf16 %v2158, %v2154
        %v2295 = vpack.c.bf16 %v2159, %v2155
        %v2296 = vpack.c.bf16 %v2164, %v2160
        %v2297 = vpack.c.bf16 %v2165, %v2161
        %v2298 = vpack.c.bf16 %v2166, %v2162
        %v2299 = vpack.c.bf16 %v2167, %v2163
        %v2300 = vpack.c.bf16 %v2172, %v2168
        %v2301 = vpack.c.bf16 %v2173, %v2169
        %v2302 = vpack.c.bf16 %v2174, %v2170
        %v2303 = vpack.c.bf16 %v2175, %v2171
        %v2304 = vpack.c.bf16 %v2180, %v2176
        %v2305 = vpack.c.bf16 %v2181, %v2177
        %v2306 = vpack.c.bf16 %v2182, %v2178
        %v2307 = vpack.c.bf16 %v2183, %v2179
        %v2308 = vpack.c.bf16 %v2188, %v2184
        %v2309 = vpack.c.bf16 %v2189, %v2185
        %v2310 = vpack.c.bf16 %v2190, %v2186
        %v2311 = vpack.c.bf16 %v2191, %v2187
        %v2312 = vpack.c.bf16 %v2196, %v2192
        %v2313 = vpack.c.bf16 %v2197, %v2193
        %v2314 = vpack.c.bf16 %v2198, %v2194
        %v2315 = vpack.c.bf16 %v2199, %v2195
        %v2316 = vpack.c.bf16 %v2204, %v2200
        %v2317 = vpack.c.bf16 %v2205, %v2201
        %v2318 = vpack.c.bf16 %v2206, %v2202
        %v2319 = vpack.c.bf16 %v2207, %v2203
        %v2320 = vpack.c.bf16 %v2212, %v2208
        %v2321 = vpack.c.bf16 %v2213, %v2209
        %v2322 = vpack.c.bf16 %v2214, %v2210
        %v2323 = vpack.c.bf16 %v2215, %v2211
        %v2324 = vpack.c.bf16 %v2220, %v2216
        %v2325 = vpack.c.bf16 %v2221, %v2217
        %v2326 = vpack.c.bf16 %v2222, %v2218
        %v2327 = vpack.c.bf16 %v2223, %v2219
        %v2328 = vpack.c.bf16 %v2228, %v2224
        %v2329 = vpack.c.bf16 %v2229, %v2225
        %v2330 = vpack.c.bf16 %v2230, %v2226
        %v2331 = vpack.c.bf16 %v2231, %v2227
        %v2332 = vpack.c.bf16 %v2236, %v2232
        %v2333 = vpack.c.bf16 %v2237, %v2233
        %v2334 = vpack.c.bf16 %v2238, %v2234
        %v2335 = vpack.c.bf16 %v2239, %v2235
        %v2336 = vld [vmem:[#allocation8] sm:$0xf]
        %v2337 = vld [vmem:[#allocation8 + $0x4] sm:$0xf]
        %v2338 = vld [vmem:[#allocation8 + $0x8] sm:$0xf]
        %v2339 = vld [vmem:[#allocation8 + $0xc] sm:$0xf]
        %v2340 = vld [vmem:[#allocation8 + $0x10] sm:$0xf]
        %v2341 = vld [vmem:[#allocation8 + $0x14] sm:$0xf]
        %v2342 = vld [vmem:[#allocation8 + $0x18] sm:$0xf]
        %v2343 = vld [vmem:[#allocation8 + $0x1c] sm:$0xf]
        %v2344 = vld [vmem:[#allocation8 + $0x20] sm:$0xf]
        %v2345 = vld [vmem:[#allocation8 + $0x24] sm:$0xf]
        %v2346 = vld [vmem:[#allocation8 + $0x28] sm:$0xf]
        %v2347 = vld [vmem:[#allocation8 + $0x2c] sm:$0xf]
        %v2348 = vld [vmem:[#allocation8 + $0x30] sm:$0xf]
        %v2349 = vld [vmem:[#allocation8 + $0x34] sm:$0xf]
        %v2350 = vld [vmem:[#allocation8 + $0x38] sm:$0xf]
        %v2351 = vld [vmem:[#allocation8 + $0x3c] sm:$0xf]
        %v2352 = vld [vmem:[#allocation8 + $0x40] sm:$0xf]
        %v2353 = vld [vmem:[#allocation8 + $0x44] sm:$0xf]
        %v2354 = vld [vmem:[#allocation8 + $0x48] sm:$0xf]
        %v2355 = vld [vmem:[#allocation8 + $0x4c] sm:$0xf]
        %v2356 = vld [vmem:[#allocation8 + $0x50] sm:$0xf]
        %v2357 = vld [vmem:[#allocation8 + $0x54] sm:$0xf]
        %v2358 = vld [vmem:[#allocation8 + $0x58] sm:$0xf]
        %v2359 = vld [vmem:[#allocation8 + $0x5c] sm:$0xf]
        %v2360 = vld [vmem:[#allocation8 + $0x60] sm:$0xf]
        %v2361 = vld [vmem:[#allocation8 + $0x64] sm:$0xf]
        %v2362 = vld [vmem:[#allocation8 + $0x68] sm:$0xf]
        %v2363 = vld [vmem:[#allocation8 + $0x6c] sm:$0xf]
        %v2364 = vld [vmem:[#allocation8 + $0x70] sm:$0xf]
        %v2365 = vld [vmem:[#allocation8 + $0x74] sm:$0xf]
        %v2366 = vld [vmem:[#allocation8 + $0x78] sm:$0xf]
        %v2367 = vld [vmem:[#allocation8 + $0x7c] sm:$0xf]
        %v2368 = vld [vmem:[#allocation8 + $0x80] sm:$0xf]
        %v2369 = vld [vmem:[#allocation8 + $0x84] sm:$0xf]
        %v2370 = vld [vmem:[#allocation8 + $0x88] sm:$0xf]
        %v2371 = vld [vmem:[#allocation8 + $0x8c] sm:$0xf]
        %v2372 = vld [vmem:[#allocation8 + $0x90] sm:$0xf]
        %v2373 = vld [vmem:[#allocation8 + $0x94] sm:$0xf]
        %v2374 = vld [vmem:[#allocation8 + $0x98] sm:$0xf]
        %v2375 = vld [vmem:[#allocation8 + $0x9c] sm:$0xf]
        %v2376 = vld [vmem:[#allocation8 + $0xa0] sm:$0xf]
        %v2377 = vld [vmem:[#allocation8 + $0xa4] sm:$0xf]
        %v2378 = vld [vmem:[#allocation8 + $0xa8] sm:$0xf]
        %v2379 = vld [vmem:[#allocation8 + $0xac] sm:$0xf]
        %v2380 = vld [vmem:[#allocation8 + $0xb0] sm:$0xf]
        %v2381 = vld [vmem:[#allocation8 + $0xb4] sm:$0xf]
        %v2382 = vld [vmem:[#allocation8 + $0xb8] sm:$0xf]
        %v2383 = vld [vmem:[#allocation8 + $0xbc] sm:$0xf]
        %v2384 = vld [vmem:[#allocation8 + $0xc0] sm:$0xf]
        %v2385 = vld [vmem:[#allocation8 + $0xc4] sm:$0xf]
        %v2386 = vld [vmem:[#allocation8 + $0xc8] sm:$0xf]
        %v2387 = vld [vmem:[#allocation8 + $0xcc] sm:$0xf]
        %v2388 = vld [vmem:[#allocation8 + $0xd0] sm:$0xf]
        %v2389 = vld [vmem:[#allocation8 + $0xd4] sm:$0xf]
        %v2390 = vld [vmem:[#allocation8 + $0xd8] sm:$0xf]
        %v2391 = vld [vmem:[#allocation8 + $0xdc] sm:$0xf]
        %v2392 = vld [vmem:[#allocation8 + $0xe0] sm:$0xf]
        %v2393 = vld [vmem:[#allocation8 + $0xe4] sm:$0xf]
        %v2394 = vld [vmem:[#allocation8 + $0xe8] sm:$0xf]
        %v2395 = vld [vmem:[#allocation8 + $0xec] sm:$0xf]
        %v2396 = vld [vmem:[#allocation8 + $0xf0] sm:$0xf]
        %v2397 = vld [vmem:[#allocation8 + $0xf4] sm:$0xf]
        %v2398 = vld [vmem:[#allocation8 + $0xf8] sm:$0xf]
        %v2399 = vld [vmem:[#allocation8 + $0xfc] sm:$0xf]
        %v2464 = vunpack.c.l.b16 %v2336
        %v2465 = vunpack.c.l.b16 %v2337
        %v2466 = vunpack.c.l.b16 %v2338
        %v2467 = vunpack.c.l.b16 %v2339
        %v2468 = vunpack.c.l.b16 %v2340
        %v2469 = vunpack.c.l.b16 %v2341
        %v2470 = vunpack.c.l.b16 %v2342
        %v2471 = vunpack.c.l.b16 %v2343
        %v2472 = vunpack.c.l.b16 %v2344
        %v2473 = vunpack.c.l.b16 %v2345
        %v2474 = vunpack.c.l.b16 %v2346
        %v2475 = vunpack.c.l.b16 %v2347
        %v2476 = vunpack.c.l.b16 %v2348
        %v2477 = vunpack.c.l.b16 %v2349
        %v2478 = vunpack.c.l.b16 %v2350
        %v2479 = vunpack.c.l.b16 %v2351
        %v2480 = vunpack.c.l.b16 %v2352
        %v2481 = vunpack.c.l.b16 %v2353
        %v2482 = vunpack.c.l.b16 %v2354
        %v2483 = vunpack.c.l.b16 %v2355
        %v2484 = vunpack.c.l.b16 %v2356
        %v2485 = vunpack.c.l.b16 %v2357
        %v2486 = vunpack.c.l.b16 %v2358
        %v2487 = vunpack.c.l.b16 %v2359
        %v2488 = vunpack.c.l.b16 %v2360
        %v2489 = vunpack.c.l.b16 %v2361
        %v2490 = vunpack.c.l.b16 %v2362
        %v2491 = vunpack.c.l.b16 %v2363
        %v2492 = vunpack.c.l.b16 %v2364
        %v2493 = vunpack.c.l.b16 %v2365
        %v2494 = vunpack.c.l.b16 %v2366
        %v2495 = vunpack.c.l.b16 %v2367
        %v2496 = vunpack.c.l.b16 %v2368
        %v2497 = vunpack.c.l.b16 %v2369
        %v2498 = vunpack.c.l.b16 %v2370
        %v2499 = vunpack.c.l.b16 %v2371
        %v2500 = vunpack.c.l.b16 %v2372
        %v2501 = vunpack.c.l.b16 %v2373
        %v2502 = vunpack.c.l.b16 %v2374
        %v2503 = vunpack.c.l.b16 %v2375
        %v2504 = vunpack.c.l.b16 %v2376
        %v2505 = vunpack.c.l.b16 %v2377
        %v2506 = vunpack.c.l.b16 %v2378
        %v2507 = vunpack.c.l.b16 %v2379
        %v2508 = vunpack.c.l.b16 %v2380
        %v2509 = vunpack.c.l.b16 %v2381
        %v2510 = vunpack.c.l.b16 %v2382
        %v2511 = vunpack.c.l.b16 %v2383
        %v2512 = vunpack.c.l.b16 %v2384
        %v2513 = vunpack.c.l.b16 %v2385
        %v2514 = vunpack.c.l.b16 %v2386
        %v2515 = vunpack.c.l.b16 %v2387
        %v2516 = vunpack.c.l.b16 %v2388
        %v2517 = vunpack.c.l.b16 %v2389
        %v2518 = vunpack.c.l.b16 %v2390
        %v2519 = vunpack.c.l.b16 %v2391
        %v2520 = vunpack.c.l.b16 %v2392
        %v2521 = vunpack.c.l.b16 %v2393
        %v2522 = vunpack.c.l.b16 %v2394
        %v2523 = vunpack.c.l.b16 %v2395
        %v2524 = vunpack.c.l.b16 %v2396
        %v2525 = vunpack.c.l.b16 %v2397
        %v2526 = vunpack.c.l.b16 %v2398
        %v2527 = vunpack.c.l.b16 %v2399
        %v2528 = vpack.c.b16 %v2465, %v2464
        %v2529 = vpack.c.b16 %v2467, %v2466
        %v2530 = vpack.c.b16 %v2469, %v2468
        %v2531 = vpack.c.b16 %v2471, %v2470
        %v2532 = vpack.c.b16 %v2473, %v2472
        %v2533 = vpack.c.b16 %v2475, %v2474
        %v2534 = vpack.c.b16 %v2477, %v2476
        %v2535 = vpack.c.b16 %v2479, %v2478
        %v2536 = vpack.c.b16 %v2481, %v2480
        %v2537 = vpack.c.b16 %v2483, %v2482
        %v2538 = vpack.c.b16 %v2485, %v2484
        %v2539 = vpack.c.b16 %v2487, %v2486
        %v2540 = vpack.c.b16 %v2489, %v2488
        %v2541 = vpack.c.b16 %v2491, %v2490
        %v2542 = vpack.c.b16 %v2493, %v2492
        %v2543 = vpack.c.b16 %v2495, %v2494
        %v2544 = vpack.c.b16 %v2497, %v2496
        %v2545 = vpack.c.b16 %v2499, %v2498
        %v2546 = vpack.c.b16 %v2501, %v2500
        %v2547 = vpack.c.b16 %v2503, %v2502
        %v2548 = vpack.c.b16 %v2505, %v2504
        %v2549 = vpack.c.b16 %v2507, %v2506
        %v2550 = vpack.c.b16 %v2509, %v2508
        %v2551 = vpack.c.b16 %v2511, %v2510
        %v2552 = vpack.c.b16 %v2513, %v2512
        %v2553 = vpack.c.b16 %v2515, %v2514
        %v2554 = vpack.c.b16 %v2517, %v2516
        %v2555 = vpack.c.b16 %v2519, %v2518
        %v2556 = vpack.c.b16 %v2521, %v2520
        %v2557 = vpack.c.b16 %v2523, %v2522
        %v2558 = vpack.c.b16 %v2525, %v2524
        %v2559 = vpack.c.b16 %v2527, %v2526
        %2592 = vmatprep.subr.bf16.mxu0 0
        %2593 = vmatpush1.bf16.msra.mxu0 %v2528
        %2594 = vmatprep.subr.bf16.mxu0 0
        %2595 = vmatpush1.bf16.msra.mxu0 %v2529
        %2596 = vmatprep.subr.bf16.mxu0 0
        %2597 = vmatpush1.bf16.msra.mxu0 %v2530
        %2598 = vmatprep.subr.bf16.mxu0 0
        %2599 = vmatpush1.bf16.msra.mxu0 %v2531
        %2600 = vmatprep.subr.bf16.mxu0 0
        %2601 = vmatpush1.bf16.msra.mxu0 %v2532
        %2602 = vmatprep.subr.bf16.mxu0 0
        %2603 = vmatpush1.bf16.msra.mxu0 %v2533
        %2604 = vmatprep.subr.bf16.mxu0 0
        %2605 = vmatpush1.bf16.msra.mxu0 %v2534
        %2606 = vmatprep.subr.bf16.mxu0 0
        %2607 = vmatpush1.bf16.msra.mxu0 %v2535
        %2608 = vmatprep.subr.bf16.mxu0 0
        %2609 = vmatpush1.bf16.msra.mxu0 %v2536
        %2610 = vmatprep.subr.bf16.mxu0 0
        %2611 = vmatpush1.bf16.msra.mxu0 %v2537
        %2612 = vmatprep.subr.bf16.mxu0 0
        %2613 = vmatpush1.bf16.msra.mxu0 %v2538
        %2614 = vmatprep.subr.bf16.mxu0 0
        %2615 = vmatpush1.bf16.msra.mxu0 %v2539
        %2616 = vmatprep.subr.bf16.mxu0 0
        %2617 = vmatpush1.bf16.msra.mxu0 %v2540
        %2618 = vmatprep.subr.bf16.mxu0 0
        %2619 = vmatpush1.bf16.msra.mxu0 %v2541
        %2620 = vmatprep.subr.bf16.mxu0 0
        %2621 = vmatpush1.bf16.msra.mxu0 %v2542
        %2622 = vmatprep.subr.bf16.mxu0 0
        %2623 = vmatpush1.bf16.msra.mxu0 %v2543
        %2624 = vmatprep.mubr.bf16.mxu0 %v2273
        %2625 = vmatmul.mubr.bf16.gmra.mrb[0].mxu0 %v2272
        %v2626 = vpop.f32.mrb[0].mxu0
        %v2627 = vadd.f32 0.0, %v2626
        %v2628 = vpop.f32.mrb[0].mxu0
        %v2629 = vpop.f32.mrb[0].mxu0
        %v2630 = vadd.f32 0.0, %v2629
        %v2631 = vpop.f32.mrb[0].mxu0
        %2632 = vmatprep.mubr.bf16.mxu0 %v2277
        %2633 = vmatmul.mubr.bf16.gmra.mrb[0].mxu0 %v2276
        %v2634 = vpop.f32.mrb[0].mxu0
        %v2635 = vadd.f32 0.0, %v2634
        %v2636 = vpop.f32.mrb[0].mxu0
        %v2637 = vpop.f32.mrb[0].mxu0
        %v2638 = vadd.f32 0.0, %v2637
        %v2639 = vpop.f32.mrb[0].mxu0
        %2640 = vmatprep.mubr.bf16.mxu0 %v2281
        %2641 = vmatmul.mubr.bf16.gmra.mrb[0].mxu0 %v2280
        %v2642 = vpop.f32.mrb[0].mxu0
        %v2643 = vadd.f32 0.0, %v2642
        %v2644 = vpop.f32.mrb[0].mxu0
        %v2645 = vpop.f32.mrb[0].mxu0
        %v2646 = vadd.f32 0.0, %v2645
        %v2647 = vpop.f32.mrb[0].mxu0
        %2648 = vmatprep.mubr.bf16.mxu0 %v2285
        %2649 = vmatmul.mubr.bf16.gmra.mrb[0].mxu0 %v2284
        %v2650 = vpop.f32.mrb[0].mxu0
        %v2651 = vadd.f32 0.0, %v2650
        %v2652 = vpop.f32.mrb[0].mxu0
        %v2653 = vpop.f32.mrb[0].mxu0
        %v2654 = vadd.f32 0.0, %v2653
        %v2655 = vpop.f32.mrb[0].mxu0
        %2656 = vmatprep.mubr.bf16.mxu0 %v2289
        %2657 = vmatmul.mubr.bf16.gmra.mrb[0].mxu0 %v2288
        %v2658 = vpop.f32.mrb[0].mxu0
        %v2659 = vadd.f32 0.0, %v2658
        %v2660 = vpop.f32.mrb[0].mxu0
        %v2661 = vpop.f32.mrb[0].mxu0
        %v2662 = vadd.f32 0.0, %v2661
        %v2663 = vpop.f32.mrb[0].mxu0
        %2664 = vmatprep.mubr.bf16.mxu0 %v2293
        %2665 = vmatmul.mubr.bf16.gmra.mrb[0].mxu0 %v2292
        %v2666 = vpop.f32.mrb[0].mxu0
        %v2667 = vadd.f32 0.0, %v2666
        %v2668 = vpop.f32.mrb[0].mxu0
        %v2669 = vpop.f32.mrb[0].mxu0
        %v2670 = vadd.f32 0.0, %v2669
        %v2671 = vpop.f32.mrb[0].mxu0
        %2672 = vmatprep.mubr.bf16.mxu0 %v2297
        %2673 = vmatmul.mubr.bf16.gmra.mrb[0].mxu0 %v2296
        %v2674 = vpop.f32.mrb[0].mxu0
        %v2675 = vadd.f32 0.0, %v2674
        %v2676 = vpop.f32.mrb[0].mxu0
        %v2677 = vpop.f32.mrb[0].mxu0
        %v2678 = vadd.f32 0.0, %v2677
        %v2679 = vpop.f32.mrb[0].mxu0
        %2680 = vmatprep.mubr.bf16.mxu0 %v2301
        %2681 = vmatmul.mubr.bf16.gmra.mrb[0].mxu0 %v2300
        %v2682 = vpop.f32.mrb[0].mxu0
        %v2683 = vadd.f32 0.0, %v2682
        %v2684 = vpop.f32.mrb[0].mxu0
        %v2685 = vpop.f32.mrb[0].mxu0
        %v2686 = vadd.f32 0.0, %v2685
        %v2687 = vpop.f32.mrb[0].mxu0
        %2688 = vmatprep.mubr.bf16.mxu0 %v2305
        %2689 = vmatmul.mubr.bf16.gmra.mrb[0].mxu0 %v2304
        %v2690 = vpop.f32.mrb[0].mxu0
        %v2691 = vadd.f32 0.0, %v2690
        %v2692 = vpop.f32.mrb[0].mxu0
        %v2693 = vpop.f32.mrb[0].mxu0
        %v2694 = vadd.f32 0.0, %v2693
        %v2695 = vpop.f32.mrb[0].mxu0
        %2696 = vmatprep.mubr.bf16.mxu0 %v2309
        %2697 = vmatmul.mubr.bf16.gmra.mrb[0].mxu0 %v2308
        %v2698 = vpop.f32.mrb[0].mxu0
        %v2699 = vadd.f32 0.0, %v2698
        %v2700 = vpop.f32.mrb[0].mxu0
        %v2701 = vpop.f32.mrb[0].mxu0
        %v2702 = vadd.f32 0.0, %v2701
        %v2703 = vpop.f32.mrb[0].mxu0
        %2704 = vmatprep.mubr.bf16.mxu0 %v2313
        %2705 = vmatmul.mubr.bf16.gmra.mrb[0].mxu0 %v2312
        %v2706 = vpop.f32.mrb[0].mxu0
        %v2707 = vadd.f32 0.0, %v2706
        %v2708 = vpop.f32.mrb[0].mxu0
        %v2709 = vpop.f32.mrb[0].mxu0
        %v2710 = vadd.f32 0.0, %v2709
        %v2711 = vpop.f32.mrb[0].mxu0
        %2712 = vmatprep.mubr.bf16.mxu0 %v2317
        %2713 = vmatmul.mubr.bf16.gmra.mrb[0].mxu0 %v2316
        %v2714 = vpop.f32.mrb[0].mxu0
        %v2715 = vadd.f32 0.0, %v2714
        %v2716 = vpop.f32.mrb[0].mxu0
        %v2717 = vpop.f32.mrb[0].mxu0
        %v2718 = vadd.f32 0.0, %v2717
        %v2719 = vpop.f32.mrb[0].mxu0
        %2720 = vmatprep.mubr.bf16.mxu0 %v2321
        %2721 = vmatmul.mubr.bf16.gmra.mrb[0].mxu0 %v2320
        %v2722 = vpop.f32.mrb[0].mxu0
        %v2723 = vadd.f32 0.0, %v2722
        %v2724 = vpop.f32.mrb[0].mxu0
        %v2725 = vpop.f32.mrb[0].mxu0
        %v2726 = vadd.f32 0.0, %v2725
        %v2727 = vpop.f32.mrb[0].mxu0
        %2728 = vmatprep.mubr.bf16.mxu0 %v2325
        %2729 = vmatmul.mubr.bf16.gmra.mrb[0].mxu0 %v2324
        %v2730 = vpop.f32.mrb[0].mxu0
        %v2731 = vadd.f32 0.0, %v2730
        %v2732 = vpop.f32.mrb[0].mxu0
        %v2733 = vpop.f32.mrb[0].mxu0
        %v2734 = vadd.f32 0.0, %v2733
        %v2735 = vpop.f32.mrb[0].mxu0
        %2736 = vmatprep.mubr.bf16.mxu0 %v2329
        %2737 = vmatmul.mubr.bf16.gmra.mrb[0].mxu0 %v2328
        %v2738 = vpop.f32.mrb[0].mxu0
        %v2739 = vadd.f32 0.0, %v2738
        %v2740 = vpop.f32.mrb[0].mxu0
        %v2741 = vpop.f32.mrb[0].mxu0
        %v2742 = vadd.f32 0.0, %v2741
        %v2743 = vpop.f32.mrb[0].mxu0
        %2744 = vmatprep.mubr.bf16.mxu0 %v2333
        %2745 = vmatmul.mubr.bf16.gmra.mrb[0].mxu0 %v2332
        %v2746 = vpop.f32.mrb[0].mxu0
        %v2747 = vadd.f32 0.0, %v2746
        %v2748 = vpop.f32.mrb[0].mxu0
        %v2749 = vpop.f32.mrb[0].mxu0
        %v2750 = vadd.f32 0.0, %v2749
        %v2751 = vpop.f32.mrb[0].mxu0
        %2752 = vdwg.mxu0
        %2753 = vmatprep.subr.bf16.mxu0 0
        %2754 = vmatpush1.bf16.msra.mxu0 %v2544
        %2755 = vmatprep.subr.bf16.mxu0 0
        %2756 = vmatpush1.bf16.msra.mxu0 %v2545
        %2757 = vmatprep.subr.bf16.mxu0 0
        %2758 = vmatpush1.bf16.msra.mxu0 %v2546
        %2759 = vmatprep.subr.bf16.mxu0 0
        %2760 = vmatpush1.bf16.msra.mxu0 %v2547
        %2761 = vmatprep.subr.bf16.mxu0 0
        %2762 = vmatpush1.bf16.msra.mxu0 %v2548
        %2763 = vmatprep.subr.bf16.mxu0 0
        %2764 = vmatpush1.bf16.msra.mxu0 %v2549
        %2765 = vmatprep.subr.bf16.mxu0 0
        %2766 = vmatpush1.bf16.msra.mxu0 %v2550
        %2767 = vmatprep.subr.bf16.mxu0 0
        %2768 = vmatpush1.bf16.msra.mxu0 %v2551
        %2769 = vmatprep.subr.bf16.mxu0 0
        %2770 = vmatpush1.bf16.msra.mxu0 %v2552
        %2771 = vmatprep.subr.bf16.mxu0 0
        %2772 = vmatpush1.bf16.msra.mxu0 %v2553
        %2773 = vmatprep.subr.bf16.mxu0 0
        %2774 = vmatpush1.bf16.msra.mxu0 %v2554
        %2775 = vmatprep.subr.bf16.mxu0 0
        %2776 = vmatpush1.bf16.msra.mxu0 %v2555
        %2777 = vmatprep.subr.bf16.mxu0 0
        %2778 = vmatpush1.bf16.msra.mxu0 %v2556
        %2779 = vmatprep.subr.bf16.mxu0 0
        %2780 = vmatpush1.bf16.msra.mxu0 %v2557
        %2781 = vmatprep.subr.bf16.mxu0 0
        %2782 = vmatpush1.bf16.msra.mxu0 %v2558
        %2783 = vmatprep.subr.bf16.mxu0 0
        %2784 = vmatpush1.bf16.msra.mxu0 %v2559
        %2785 = vmatprep.mubr.bf16.mxu0 %v2275
        %2786 = vmatmul.mubr.bf16.gmra.mrb[0].mxu0 %v2274
        %v2787 = vpop.f32.mrb[0].mxu0
        %v2788 = vadd.f32 %v2627, %v2787
        %v2789 = vpop.f32.mrb[0].mxu0
        %v2790 = vpop.f32.mrb[0].mxu0
        %v2791 = vadd.f32 %v2630, %v2790
        %v2792 = vpop.f32.mrb[0].mxu0
        %2793 = vmatprep.mubr.bf16.mxu0 %v2279
        %2794 = vmatmul.mubr.bf16.gmra.mrb[0].mxu0 %v2278
        %v2795 = vpop.f32.mrb[0].mxu0
        %v2796 = vadd.f32 %v2635, %v2795
        %v2797 = vpop.f32.mrb[0].mxu0
        %v2798 = vpop.f32.mrb[0].mxu0
        %v2799 = vadd.f32 %v2638, %v2798
        %v2800 = vpop.f32.mrb[0].mxu0
        %2801 = vmatprep.mubr.bf16.mxu0 %v2283
        %2802 = vmatmul.mubr.bf16.gmra.mrb[0].mxu0 %v2282
        %v2803 = vpop.f32.mrb[0].mxu0
        %v2804 = vadd.f32 %v2643, %v2803
        %v2805 = vpop.f32.mrb[0].mxu0
        %v2806 = vpop.f32.mrb[0].mxu0
        %v2807 = vadd.f32 %v2646, %v2806
        %v2808 = vpop.f32.mrb[0].mxu0
        %2809 = vmatprep.mubr.bf16.mxu0 %v2287
        %2810 = vmatmul.mubr.bf16.gmra.mrb[0].mxu0 %v2286
        %v2811 = vpop.f32.mrb[0].mxu0
        %v2812 = vadd.f32 %v2651, %v2811
        %v2813 = vpop.f32.mrb[0].mxu0
        %v2814 = vpop.f32.mrb[0].mxu0
        %v2815 = vadd.f32 %v2654, %v2814
        %v2816 = vpop.f32.mrb[0].mxu0
        %2817 = vmatprep.mubr.bf16.mxu0 %v2291
        %2818 = vmatmul.mubr.bf16.gmra.mrb[0].mxu0 %v2290
        %v2819 = vpop.f32.mrb[0].mxu0
        %v2820 = vadd.f32 %v2659, %v2819
        %v2821 = vpop.f32.mrb[0].mxu0
        %v2822 = vpop.f32.mrb[0].mxu0
        %v2823 = vadd.f32 %v2662, %v2822
        %v2824 = vpop.f32.mrb[0].mxu0
        %2825 = vmatprep.mubr.bf16.mxu0 %v2295
        %2826 = vmatmul.mubr.bf16.gmra.mrb[0].mxu0 %v2294
        %v2827 = vpop.f32.mrb[0].mxu0
        %v2828 = vadd.f32 %v2667, %v2827
        %v2829 = vpop.f32.mrb[0].mxu0
        %v2830 = vpop.f32.mrb[0].mxu0
        %v2831 = vadd.f32 %v2670, %v2830
        %v2832 = vpop.f32.mrb[0].mxu0
        %2833 = vmatprep.mubr.bf16.mxu0 %v2299
        %2834 = vmatmul.mubr.bf16.gmra.mrb[0].mxu0 %v2298
        %v2835 = vpop.f32.mrb[0].mxu0
        %v2836 = vadd.f32 %v2675, %v2835
        %v2837 = vpop.f32.mrb[0].mxu0
        %v2838 = vpop.f32.mrb[0].mxu0
        %v2839 = vadd.f32 %v2678, %v2838
        %v2840 = vpop.f32.mrb[0].mxu0
        %2841 = vmatprep.mubr.bf16.mxu0 %v2303
        %2842 = vmatmul.mubr.bf16.gmra.mrb[0].mxu0 %v2302
        %v2843 = vpop.f32.mrb[0].mxu0
        %v2844 = vadd.f32 %v2683, %v2843
        %v2845 = vpop.f32.mrb[0].mxu0
        %v2846 = vpop.f32.mrb[0].mxu0
        %v2847 = vadd.f32 %v2686, %v2846
        %v2848 = vpop.f32.mrb[0].mxu0
        %2849 = vmatprep.mubr.bf16.mxu0 %v2307
        %2850 = vmatmul.mubr.bf16.gmra.mrb[0].mxu0 %v2306
        %v2851 = vpop.f32.mrb[0].mxu0
        %v2852 = vadd.f32 %v2691, %v2851
        %v2853 = vpop.f32.mrb[0].mxu0
        %v2854 = vpop.f32.mrb[0].mxu0
        %v2855 = vadd.f32 %v2694, %v2854
        %v2856 = vpop.f32.mrb[0].mxu0
        %2857 = vmatprep.mubr.bf16.mxu0 %v2311
        %2858 = vmatmul.mubr.bf16.gmra.mrb[0].mxu0 %v2310
        %v2859 = vpop.f32.mrb[0].mxu0
        %v2860 = vadd.f32 %v2699, %v2859
        %v2861 = vpop.f32.mrb[0].mxu0
        %v2862 = vpop.f32.mrb[0].mxu0
        %v2863 = vadd.f32 %v2702, %v2862
        %v2864 = vpop.f32.mrb[0].mxu0
        %2865 = vmatprep.mubr.bf16.mxu0 %v2315
        %2866 = vmatmul.mubr.bf16.gmra.mrb[0].mxu0 %v2314
        %v2867 = vpop.f32.mrb[0].mxu0
        %v2868 = vadd.f32 %v2707, %v2867
        %v2869 = vpop.f32.mrb[0].mxu0
        %v2870 = vpop.f32.mrb[0].mxu0
        %v2871 = vadd.f32 %v2710, %v2870
        %v2872 = vpop.f32.mrb[0].mxu0
        %2873 = vmatprep.mubr.bf16.mxu0 %v2319
        %2874 = vmatmul.mubr.bf16.gmra.mrb[0].mxu0 %v2318
        %v2875 = vpop.f32.mrb[0].mxu0
        %v2876 = vadd.f32 %v2715, %v2875
        %v2877 = vpop.f32.mrb[0].mxu0
        %v2878 = vpop.f32.mrb[0].mxu0
        %v2879 = vadd.f32 %v2718, %v2878
        %v2880 = vpop.f32.mrb[0].mxu0
        %2881 = vmatprep.mubr.bf16.mxu0 %v2323
        %2882 = vmatmul.mubr.bf16.gmra.mrb[0].mxu0 %v2322
        %v2883 = vpop.f32.mrb[0].mxu0
        %v2884 = vadd.f32 %v2723, %v2883
        %v2885 = vpop.f32.mrb[0].mxu0
        %v2886 = vpop.f32.mrb[0].mxu0
        %v2887 = vadd.f32 %v2726, %v2886
        %v2888 = vpop.f32.mrb[0].mxu0
        %2889 = vmatprep.mubr.bf16.mxu0 %v2327
        %2890 = vmatmul.mubr.bf16.gmra.mrb[0].mxu0 %v2326
        %v2891 = vpop.f32.mrb[0].mxu0
        %v2892 = vadd.f32 %v2731, %v2891
        %v2893 = vpop.f32.mrb[0].mxu0
        %v2894 = vpop.f32.mrb[0].mxu0
        %v2895 = vadd.f32 %v2734, %v2894
        %v2896 = vpop.f32.mrb[0].mxu0
        %2897 = vmatprep.mubr.bf16.mxu0 %v2331
        %2898 = vmatmul.mubr.bf16.gmra.mrb[0].mxu0 %v2330
        %v2899 = vpop.f32.mrb[0].mxu0
        %v2900 = vadd.f32 %v2739, %v2899
        %v2901 = vpop.f32.mrb[0].mxu0
        %v2902 = vpop.f32.mrb[0].mxu0
        %v2903 = vadd.f32 %v2742, %v2902
        %v2904 = vpop.f32.mrb[0].mxu0
        %2905 = vmatprep.mubr.bf16.mxu0 %v2335
        %2906 = vmatmul.mubr.bf16.gmra.mrb[0].mxu0 %v2334
        %v2907 = vpop.f32.mrb[0].mxu0
        %v2908 = vadd.f32 %v2747, %v2907
        %v2909 = vpop.f32.mrb[0].mxu0
        %v2910 = vpop.f32.mrb[0].mxu0
        %v2911 = vadd.f32 %v2750, %v2910
        %v2912 = vpop.f32.mrb[0].mxu0
        %2913 = vdwg.mxu0
        %v2914 = vadd.f32 %v2240, %v2788
        %v2915 = vadd.f32 %v2241, %v2791
        %v2916 = vadd.f32 %v2242, %v2796
        %v2917 = vadd.f32 %v2243, %v2799
        %v2918 = vadd.f32 %v2244, %v2804
        %v2919 = vadd.f32 %v2245, %v2807
        %v2920 = vadd.f32 %v2246, %v2812
        %v2921 = vadd.f32 %v2247, %v2815
        %v2922 = vadd.f32 %v2248, %v2820
        %v2923 = vadd.f32 %v2249, %v2823
        %v2924 = vadd.f32 %v2250, %v2828
        %v2925 = vadd.f32 %v2251, %v2831
        %v2926 = vadd.f32 %v2252, %v2836
        %v2927 = vadd.f32 %v2253, %v2839
        %v2928 = vadd.f32 %v2254, %v2844
        %v2929 = vadd.f32 %v2255, %v2847
        %v2930 = vadd.f32 %v2256, %v2852
        %v2931 = vadd.f32 %v2257, %v2855
        %v2932 = vadd.f32 %v2258, %v2860
        %v2933 = vadd.f32 %v2259, %v2863
        %v2934 = vadd.f32 %v2260, %v2868
        %v2935 = vadd.f32 %v2261, %v2871
        %v2936 = vadd.f32 %v2262, %v2876
        %v2937 = vadd.f32 %v2263, %v2879
        %v2938 = vadd.f32 %v2264, %v2884
        %v2939 = vadd.f32 %v2265, %v2887
        %v2940 = vadd.f32 %v2266, %v2892
        %v2941 = vadd.f32 %v2267, %v2895
        %v2942 = vadd.f32 %v2268, %v2900
        %v2943 = vadd.f32 %v2269, %v2903
        %v2944 = vadd.f32 %v2270, %v2908
        %v2945 = vadd.f32 %v2271, %v2911
        %2946 = vst [vmem:[#allocation2] sm:$0xff] %v2914
        %2947 = vst [vmem:[#allocation2 + $0x8] sm:$0xff] %v2915
        %2948 = vst [vmem:[#allocation2 + $0x10] sm:$0xff] %v2916
        %2949 = vst [vmem:[#allocation2 + $0x18] sm:$0xff] %v2917
        %2950 = vst [vmem:[#allocation2 + $0x20] sm:$0xff] %v2918
        %2951 = vst [vmem:[#allocation2 + $0x28] sm:$0xff] %v2919
        %2952 = vst [vmem:[#allocation2 + $0x30] sm:$0xff] %v2920
        %2953 = vst [vmem:[#allocation2 + $0x38] sm:$0xff] %v2921
        %2954 = vst [vmem:[#allocation2 + $0x40] sm:$0xff] %v2922
        %2955 = vst [vmem:[#allocation2 + $0x48] sm:$0xff] %v2923
        %2956 = vst [vmem:[#allocation2 + $0x50] sm:$0xff] %v2924
        %2957 = vst [vmem:[#allocation2 + $0x58] sm:$0xff] %v2925
        %2958 = vst [vmem:[#allocation2 + $0x60] sm:$0xff] %v2926
        %2959 = vst [vmem:[#allocation2 + $0x68] sm:$0xff] %v2927
        %2960 = vst [vmem:[#allocation2 + $0x70] sm:$0xff] %v2928
        %2961 = vst [vmem:[#allocation2 + $0x78] sm:$0xff] %v2929
        %2962 = vst [vmem:[#allocation2 + $0x80] sm:$0xff] %v2930
        %2963 = vst [vmem:[#allocation2 + $0x88] sm:$0xff] %v2931
        %2964 = vst [vmem:[#allocation2 + $0x90] sm:$0xff] %v2932
        %2965 = vst [vmem:[#allocation2 + $0x98] sm:$0xff] %v2933
        %2966 = vst [vmem:[#allocation2 + $0xa0] sm:$0xff] %v2934
        %2967 = vst [vmem:[#allocation2 + $0xa8] sm:$0xff] %v2935
        %2968 = vst [vmem:[#allocation2 + $0xb0] sm:$0xff] %v2936
        %2969 = vst [vmem:[#allocation2 + $0xb8] sm:$0xff] %v2937
        %2970 = vst [vmem:[#allocation2 + $0xc0] sm:$0xff] %v2938
        %2971 = vst [vmem:[#allocation2 + $0xc8] sm:$0xff] %v2939
        %2972 = vst [vmem:[#allocation2 + $0xd0] sm:$0xff] %v2940
        %2973 = vst [vmem:[#allocation2 + $0xd8] sm:$0xff] %v2941
        %2974 = vst [vmem:[#allocation2 + $0xe0] sm:$0xff] %v2942
        %2975 = vst [vmem:[#allocation2 + $0xe8] sm:$0xff] %v2943
        %2976 = vst [vmem:[#allocation2 + $0xf0] sm:$0xff] %v2944
        %2977 = vst [vmem:[#allocation2 + $0xf8] sm:$0xff] %v2945
        // Predicated region
        $region57: #{tpu_custom_call.1} parent=39 // pred_check
          %p2978 = pneg %p324
        $region58: #{tpu_custom_call.1} parent=39 // pred_check_branch
          %2980 = sbr.rel (%p2978) target = $region60
        $region59: #{tpu_custom_call.1} parent=39 // pred_region
          %v2981 = vld [vmem:[#allocation2] sm:$0xff]
          %v2982 = vld [vmem:[#allocation2 + $0x8] sm:$0xff]
          %v2983 = vld [vmem:[#allocation2 + $0x10] sm:$0xff]
          %v2984 = vld [vmem:[#allocation2 + $0x18] sm:$0xff]
          %v2985 = vld [vmem:[#allocation2 + $0x20] sm:$0xff]
          %v2986 = vld [vmem:[#allocation2 + $0x28] sm:$0xff]
          %v2987 = vld [vmem:[#allocation2 + $0x30] sm:$0xff]
          %v2988 = vld [vmem:[#allocation2 + $0x38] sm:$0xff]
          %v2989 = vld [vmem:[#allocation2 + $0x40] sm:$0xff]
          %v2990 = vld [vmem:[#allocation2 + $0x48] sm:$0xff]
          %v2991 = vld [vmem:[#allocation2 + $0x50] sm:$0xff]
          %v2992 = vld [vmem:[#allocation2 + $0x58] sm:$0xff]
          %v2993 = vld [vmem:[#allocation2 + $0x60] sm:$0xff]
          %v2994 = vld [vmem:[#allocation2 + $0x68] sm:$0xff]
          %v2995 = vld [vmem:[#allocation2 + $0x70] sm:$0xff]
          %v2996 = vld [vmem:[#allocation2 + $0x78] sm:$0xff]
          %v2997 = vld [vmem:[#allocation2 + $0x80] sm:$0xff]
          %v2998 = vld [vmem:[#allocation2 + $0x88] sm:$0xff]
          %v2999 = vld [vmem:[#allocation2 + $0x90] sm:$0xff]
          %v3000 = vld [vmem:[#allocation2 + $0x98] sm:$0xff]
          %v3001 = vld [vmem:[#allocation2 + $0xa0] sm:$0xff]
          %v3002 = vld [vmem:[#allocation2 + $0xa8] sm:$0xff]
          %v3003 = vld [vmem:[#allocation2 + $0xb0] sm:$0xff]
          %v3004 = vld [vmem:[#allocation2 + $0xb8] sm:$0xff]
          %v3005 = vld [vmem:[#allocation2 + $0xc0] sm:$0xff]
          %v3006 = vld [vmem:[#allocation2 + $0xc8] sm:$0xff]
          %v3007 = vld [vmem:[#allocation2 + $0xd0] sm:$0xff]
          %v3008 = vld [vmem:[#allocation2 + $0xd8] sm:$0xff]
          %v3009 = vld [vmem:[#allocation2 + $0xe0] sm:$0xff]
          %v3010 = vld [vmem:[#allocation2 + $0xe8] sm:$0xff]
          %v3011 = vld [vmem:[#allocation2 + $0xf0] sm:$0xff]
          %v3012 = vld [vmem:[#allocation2 + $0xf8] sm:$0xff]
          %v3013 = vld [vmem:[%s4] sm:$0x1]
          %v3015 = vlaneseq
          %v3016 = vshrl.u32 %v3015, 7
          %v3017 = vsub.s32 0, %v3016
          %v3018 = vrot.slane %v3013, %v3017
          %v3020 = vadd.f32 %v2981, %v3018
          %v3021 = vadd.f32 %v2982, %v3018
          %v3022 = vadd.f32 %v2983, %v3018
          %v3023 = vadd.f32 %v2984, %v3018
          %v3024 = vadd.f32 %v2985, %v3018
          %v3025 = vadd.f32 %v2986, %v3018
          %v3026 = vadd.f32 %v2987, %v3018
          %v3027 = vadd.f32 %v2988, %v3018
          %v3028 = vadd.f32 %v2989, %v3018
          %v3029 = vadd.f32 %v2990, %v3018
          %v3030 = vadd.f32 %v2991, %v3018
          %v3031 = vadd.f32 %v2992, %v3018
          %v3032 = vadd.f32 %v2993, %v3018
          %v3033 = vadd.f32 %v2994, %v3018
          %v3034 = vadd.f32 %v2995, %v3018
          %v3035 = vadd.f32 %v2996, %v3018
          %v3036 = vadd.f32 %v2997, %v3018
          %v3037 = vadd.f32 %v2998, %v3018
          %v3038 = vadd.f32 %v2999, %v3018
          %v3039 = vadd.f32 %v3000, %v3018
          %v3040 = vadd.f32 %v3001, %v3018
          %v3041 = vadd.f32 %v3002, %v3018
          %v3042 = vadd.f32 %v3003, %v3018
          %v3043 = vadd.f32 %v3004, %v3018
          %v3044 = vadd.f32 %v3005, %v3018
          %v3045 = vadd.f32 %v3006, %v3018
          %v3046 = vadd.f32 %v3007, %v3018
          %v3047 = vadd.f32 %v3008, %v3018
          %v3048 = vadd.f32 %v3009, %v3018
          %v3049 = vadd.f32 %v3010, %v3018
          %v3050 = vadd.f32 %v3011, %v3018
          %v3051 = vadd.f32 %v3012, %v3018
          %v3052 = vpack.c.bf16 %v3021, %v3020
          %v3053 = vpack.c.bf16 %v3023, %v3022
          %v3054 = vpack.c.bf16 %v3025, %v3024
          %v3055 = vpack.c.bf16 %v3027, %v3026
          %v3056 = vpack.c.bf16 %v3029, %v3028
          %v3057 = vpack.c.bf16 %v3031, %v3030
          %v3058 = vpack.c.bf16 %v3033, %v3032
          %v3059 = vpack.c.bf16 %v3035, %v3034
          %v3060 = vpack.c.bf16 %v3037, %v3036
          %v3061 = vpack.c.bf16 %v3039, %v3038
          %v3062 = vpack.c.bf16 %v3041, %v3040
          %v3063 = vpack.c.bf16 %v3043, %v3042
          %v3064 = vpack.c.bf16 %v3045, %v3044
          %v3065 = vpack.c.bf16 %v3047, %v3046
          %v3066 = vpack.c.bf16 %v3049, %v3048
          %v3067 = vpack.c.bf16 %v3051, %v3050
          %v3084 = vunpack.c.l.b16 %v3052
          %v3085 = vunpack.c.h.b16 %v3052
          %v3086 = vunpack.c.l.b16 %v3053
          %v3087 = vunpack.c.h.b16 %v3053
          %v3088 = vunpack.c.l.b16 %v3054
          %v3089 = vunpack.c.h.b16 %v3054
          %v3090 = vunpack.c.l.b16 %v3055
          %v3091 = vunpack.c.h.b16 %v3055
          %v3092 = vunpack.c.l.b16 %v3056
          %v3093 = vunpack.c.h.b16 %v3056
          %v3094 = vunpack.c.l.b16 %v3057
          %v3095 = vunpack.c.h.b16 %v3057
          %v3096 = vunpack.c.l.b16 %v3058
          %v3097 = vunpack.c.h.b16 %v3058
          %v3098 = vunpack.c.l.b16 %v3059
          %v3099 = vunpack.c.h.b16 %v3059
          %v3100 = vunpack.c.l.b16 %v3060
          %v3101 = vunpack.c.h.b16 %v3060
          %v3102 = vunpack.c.l.b16 %v3061
          %v3103 = vunpack.c.h.b16 %v3061
          %v3104 = vunpack.c.l.b16 %v3062
          %v3105 = vunpack.c.h.b16 %v3062
          %v3106 = vunpack.c.l.b16 %v3063
          %v3107 = vunpack.c.h.b16 %v3063
          %v3108 = vunpack.c.l.b16 %v3064
          %v3109 = vunpack.c.h.b16 %v3064
          %v3110 = vunpack.c.l.b16 %v3065
          %v3111 = vunpack.c.h.b16 %v3065
          %v3112 = vunpack.c.l.b16 %v3066
          %v3113 = vunpack.c.h.b16 %v3066
          %v3114 = vunpack.c.l.b16 %v3067
          %v3115 = vunpack.c.h.b16 %v3067
          %v3116 = vpack.c.b16 %v3084, %v3084
          %v3117 = vpack.c.b16 %v3085, %v3085
          %v3118 = vpack.c.b16 %v3086, %v3086
          %v3119 = vpack.c.b16 %v3087, %v3087
          %v3120 = vpack.c.b16 %v3088, %v3088
          %v3121 = vpack.c.b16 %v3089, %v3089
          %v3122 = vpack.c.b16 %v3090, %v3090
          %v3123 = vpack.c.b16 %v3091, %v3091
          %v3124 = vpack.c.b16 %v3092, %v3092
          %v3125 = vpack.c.b16 %v3093, %v3093
          %v3126 = vpack.c.b16 %v3094, %v3094
          %v3127 = vpack.c.b16 %v3095, %v3095
          %v3128 = vpack.c.b16 %v3096, %v3096
          %v3129 = vpack.c.b16 %v3097, %v3097
          %v3130 = vpack.c.b16 %v3098, %v3098
          %v3131 = vpack.c.b16 %v3099, %v3099
          %v3132 = vpack.c.b16 %v3100, %v3100
          %v3133 = vpack.c.b16 %v3101, %v3101
          %v3134 = vpack.c.b16 %v3102, %v3102
          %v3135 = vpack.c.b16 %v3103, %v3103
          %v3136 = vpack.c.b16 %v3104, %v3104
          %v3137 = vpack.c.b16 %v3105, %v3105
          %v3138 = vpack.c.b16 %v3106, %v3106
          %v3139 = vpack.c.b16 %v3107, %v3107
          %v3140 = vpack.c.b16 %v3108, %v3108
          %v3141 = vpack.c.b16 %v3109, %v3109
          %v3142 = vpack.c.b16 %v3110, %v3110
          %v3143 = vpack.c.b16 %v3111, %v3111
          %v3144 = vpack.c.b16 %v3112, %v3112
          %v3145 = vpack.c.b16 %v3113, %v3113
          %v3146 = vpack.c.b16 %v3114, %v3114
          %v3147 = vpack.c.b16 %v3115, %v3115
          %3180 = vst [vmem:[%s313] sm:$0xf] %v3116
          %3181 = vst [vmem:[%s313 + $0x4] sm:$0xf] %v3117
          %3182 = vst [vmem:[%s313 + $0x8] sm:$0xf] %v3118
          %3183 = vst [vmem:[%s313 + $0xc] sm:$0xf] %v3119
          %3184 = vst [vmem:[%s313 + $0x10] sm:$0xf] %v3120
          %3185 = vst [vmem:[%s313 + $0x14] sm:$0xf] %v3121
          %3186 = vst [vmem:[%s313 + $0x18] sm:$0xf] %v3122
          %3187 = vst [vmem:[%s313 + $0x1c] sm:$0xf] %v3123
          %3188 = vst [vmem:[%s313 + $0x20] sm:$0xf] %v3124
          %3189 = vst [vmem:[%s313 + $0x24] sm:$0xf] %v3125
          %3190 = vst [vmem:[%s313 + $0x28] sm:$0xf] %v3126
          %3191 = vst [vmem:[%s313 + $0x2c] sm:$0xf] %v3127
          %3192 = vst [vmem:[%s313 + $0x30] sm:$0xf] %v3128
          %3193 = vst [vmem:[%s313 + $0x34] sm:$0xf] %v3129
          %3194 = vst [vmem:[%s313 + $0x38] sm:$0xf] %v3130
          %3195 = vst [vmem:[%s313 + $0x3c] sm:$0xf] %v3131
          %3196 = vst [vmem:[%s313 + $0x40] sm:$0xf] %v3132
          %3197 = vst [vmem:[%s313 + $0x44] sm:$0xf] %v3133
          %3198 = vst [vmem:[%s313 + $0x48] sm:$0xf] %v3134
          %3199 = vst [vmem:[%s313 + $0x4c] sm:$0xf] %v3135
          %3200 = vst [vmem:[%s313 + $0x50] sm:$0xf] %v3136
          %3201 = vst [vmem:[%s313 + $0x54] sm:$0xf] %v3137
          %3202 = vst [vmem:[%s313 + $0x58] sm:$0xf] %v3138
          %3203 = vst [vmem:[%s313 + $0x5c] sm:$0xf] %v3139
          %3204 = vst [vmem:[%s313 + $0x60] sm:$0xf] %v3140
          %3205 = vst [vmem:[%s313 + $0x64] sm:$0xf] %v3141
          %3206 = vst [vmem:[%s313 + $0x68] sm:$0xf] %v3142
          %3207 = vst [vmem:[%s313 + $0x6c] sm:$0xf] %v3143
          %3208 = vst [vmem:[%s313 + $0x70] sm:$0xf] %v3144
          %3209 = vst [vmem:[%s313 + $0x74] sm:$0xf] %v3145
          %3210 = vst [vmem:[%s313 + $0x78] sm:$0xf] %v3146
          %3211 = vst [vmem:[%s313 + $0x7c] sm:$0xf] %v3147
        $region60: #{tpu_custom_call.1} parent=39 // pred_fallthru
          _
        %s3212 = sand.u32 %s168, 1
        %s3213 = scalar_lea.sflag [#allocation5], %s3212
        %s3214 = sand.u32 %s168, 1
        %s3215 = smul.addr %s3214, 128
        %s3216 = scalar_lea.vmem [#allocation9], %s3215
        // Predicated region
        $region61: #{tpu_custom_call.1} parent=39 // pred_check
          %p3217 = pneg %p178
        $region62: #{tpu_custom_call.1} parent=39 // pred_check_branch
          %3219 = sbr.rel (%p3217) target = $region64
        $region63: #{tpu_custom_call.1} parent=39 // pred_region
          %s3220 = smul.u32 32, %s27
          %s3222 = ssub.s32 2048, 2048
          %3223 = vsyncadd %s3213, %s3222
          %s3224 = smul.addr %s3220, 64
          %s3225 = scalar_lea.hbm %s5, %s3224
          %s3226 = sshll.u32 %s3216, 4
          %s3227 = int_to_ptr.vmem [resolvable:$true] %s3226
          %3232 = dma.vmem_to_hbm [thread:$0]  %s3227, 2048, %s3225, %s3213, 64, 64, 4
        $region64: #{tpu_custom_call.1} parent=39 // pred_fallthru
          _
      $region40: #{tpu_custom_call.1} parent=5 // pred_fallthru
        _
      %p3233 = scmp.le.s32.totalorder 2, %s18
      // Predicated region
      $region65: #{tpu_custom_call.1} parent=5 // pred_check
        %p3234 = pneg %p3233
      $region66: #{tpu_custom_call.1} parent=5 // pred_check_branch
        %3236 = sbr.rel (%p3234) target = $region68
      $region67: #{tpu_custom_call.1} parent=5 // pred_region
        %s3237 = ssub.s32 %s18, 2
        // Predicated region
        $region69: #{tpu_custom_call.1} parent=67 // pred_check
          %p3238 = pneg %p184
        $region70: #{tpu_custom_call.1} parent=67 // pred_check_branch
          %3240 = sbr.rel (%p3238) target = $region72
        $region71: #{tpu_custom_call.1} parent=67 // pred_region
          %s3241 = sand.u32 %s169, 1
          %s3242 = scalar_lea.sflag [#allocation5], %s3241
          %s3243 = sand.u32 %s169, 1
          %s3244 = smul.addr %s3243, 128
          %s3245 = scalar_lea.vmem [#allocation9], %s3244
          %3246 = dma.done %s3242, 2048
        $region72: #{tpu_custom_call.1} parent=67 // pred_fallthru
          _
      $region68: #{tpu_custom_call.1} parent=5 // pred_fallthru
        _
    $region6: #{tpu_custom_call.1} parent=1 // loop_footer
      %s22 = sadd.s32 1, %s18
    $region7: #{tpu_custom_call.1} parent=1 // loop_footer_branch
      %17 = sbr.rel target = $region3
    $region8: #{tpu_custom_call.1} parent=1 // loop_exit
      _
    %3247 = vsyncpa [#allocation4], 1
    %s3248 = scalar_lea.sflag [#allocation4], 1
    %3249 = vsyncpa %s3248, 1
    %3250 = vsyncpa [#allocation7], 1
    %3251 = vsyncpa [#allocation5], 1
    %s3252 = scalar_lea.sflag [#allocation5], 1
    %3253 = vsyncpa %s3252, 1

</llo_original>
